<compile_context>
chip_gen: v5e
topology: v5e:2x2
jax: 0.10.0
libtpu: 0.0.40
codegen_flags: <defaults>
</compile_context>

<pallas_src>
import functools

import jax
import jax.numpy as jnp
from jax.experimental import pallas as pl
from jax.experimental.pallas import tpu as pltpu

F32 = jnp.float32
BN_EPS = 1e-5


# ----------------------------------------------------------------------------
# Pallas kernels
# ----------------------------------------------------------------------------
def _pw_bn_kernel(x_ref, w_ref, s_ref, t_ref, o_ref, *, relu):
    # 1x1 conv as matmul + folded-BN (scale/shift) epilogue (+ optional ReLU).
    y = jnp.dot(x_ref[...].astype(F32), w_ref[...].astype(F32),
                preferred_element_type=F32)
    y = y * s_ref[...] + t_ref[...]
    if relu:
        y = jnp.maximum(y, 0.0)
    o_ref[...] = y.astype(o_ref.dtype)


def _pw_bn_res_relu_kernel(x_ref, w_ref, s_ref, t_ref, r_ref, o_ref):
    # 1x1 conv + folded-BN + residual add + ReLU, fully fused.
    y = jnp.dot(x_ref[...].astype(F32), w_ref[...].astype(F32),
                preferred_element_type=F32)
    y = y * s_ref[...] + t_ref[...] + r_ref[...].astype(F32)
    o_ref[...] = jnp.maximum(y, 0.0).astype(o_ref.dtype)


def _conv3x3_bn_relu_kernel(x_ref, w_ref, s_ref, t_ref, o_ref, *, H, W, d):
    # 3x3 conv (stride 1, pad=dilation already applied outside), per image.
    # 9 unrolled taps, each a (H*W, Cin) x (Cin, Cout) matmul into an f32
    # accumulator, then fused BN scale/shift + ReLU.
    Cin = x_ref.shape[-1]
    Cout = o_ref.shape[-1]
    acc = jnp.zeros((H * W, Cout), F32)
    for i in range(3):
        for j in range(3):
            xs = x_ref[0, i * d:i * d + H, j * d:j * d + W, :]
            xs = xs.astype(F32).reshape(H * W, Cin)
            acc = acc + jnp.dot(xs, w_ref[i, j].astype(F32),
                                preferred_element_type=F32)
    y = jnp.maximum(acc * s_ref[...] + t_ref[...], 0.0)
    o_ref[0] = y.reshape(H, W, Cout).astype(o_ref.dtype)


# ----------------------------------------------------------------------------
# kernel wrappers
# ----------------------------------------------------------------------------
def _row_tile(M, target=512):
    # Largest row tile (multiple of 8) that divides M and leaves >= 2 grid
    # steps so the BlockSpec pipeline has depth; falls back to the full M.
    for t in (target, 256, 128, 64, 32, 16, 8):
        if t <= M and M % t == 0 and M // t >= 2:
            return t
    return M


def conv1x1_bn(x, w, scale, shift, *, relu, tm):
    M, K = x.shape
    N = w.shape[1]
    ce = pl.CostEstimate(flops=2 * M * K * N, transcendentals=0,
                         bytes_accessed=4 * (M * K + K * N + M * N))
    return pl.pallas_call(
        functools.partial(_pw_bn_kernel, relu=relu),
        out_shape=jax.ShapeDtypeStruct((M, N), x.dtype),
        grid=(M // tm,),
        in_specs=[pl.BlockSpec((tm, K), lambda i: (i, 0)),
                  pl.BlockSpec((K, N), lambda i: (0, 0)),
                  pl.BlockSpec((1, N), lambda i: (0, 0)),
                  pl.BlockSpec((1, N), lambda i: (0, 0))],
        out_specs=pl.BlockSpec((tm, N), lambda i: (i, 0)),
        compiler_params=pltpu.CompilerParams(
            dimension_semantics=("parallel",)),
        cost_estimate=ce,
    )(x, w, scale, shift)


def conv1x1_bn_add_relu(x, w, scale, shift, residual, *, tm):
    M, K = x.shape
    N = w.shape[1]
    ce = pl.CostEstimate(flops=2 * M * K * N, transcendentals=0,
                         bytes_accessed=4 * (M * K + K * N + 2 * M * N))
    return pl.pallas_call(
        _pw_bn_res_relu_kernel,
        out_shape=jax.ShapeDtypeStruct((M, N), x.dtype),
        grid=(M // tm,),
        in_specs=[pl.BlockSpec((tm, K), lambda i: (i, 0)),
                  pl.BlockSpec((K, N), lambda i: (0, 0)),
                  pl.BlockSpec((1, N), lambda i: (0, 0)),
                  pl.BlockSpec((1, N), lambda i: (0, 0)),
                  pl.BlockSpec((tm, N), lambda i: (i, 0))],
        out_specs=pl.BlockSpec((tm, N), lambda i: (i, 0)),
        compiler_params=pltpu.CompilerParams(
            dimension_semantics=("parallel",)),
        cost_estimate=ce,
    )(x, w, scale, shift, residual)


def conv3x3_bn_relu(x, w, scale, shift, *, dilation=1):
    # x: (N, H, W, Cin) NHWC; w: (3, 3, Cin, Cout); scale/shift: (1, Cout)
    # TODO(synk): for very large H*W on v7x, tile over output rows with a
    # manual overlapping-window DMA instead of one full-image block per step.
    N, H, W, Cin = x.shape
    Cout = w.shape[-1]
    d = dilation
    xp = jnp.pad(x, ((0, 0), (d, d), (d, d), (0, 0)))
    Hp, Wp = H + 2 * d, W + 2 * d
    kern = functools.partial(_conv3x3_bn_relu_kernel, H=H, W=W, d=d)
    return pl.pallas_call(
        kern,
        out_shape=jax.ShapeDtypeStruct((N, H, W, Cout), x.dtype),
        grid=(N,),
        in_specs=[pl.BlockSpec((1, Hp, Wp, Cin), lambda n: (n, 0, 0, 0)),
                  pl.BlockSpec((3, 3, Cin, Cout), lambda n: (0, 0, 0, 0)),
                  pl.BlockSpec((1, Cout), lambda n: (0, 0)),
                  pl.BlockSpec((1, Cout), lambda n: (0, 0))],
        out_specs=pl.BlockSpec((1, H, W, Cout), lambda n: (n, 0, 0, 0)),
        compiler_params=pltpu.CompilerParams(
            dimension_semantics=("parallel",)),
    )(xp, w, scale, shift)


# ----------------------------------------------------------------------------
# Bottleneck forward (orchestration)
# ----------------------------------------------------------------------------
def bottleneck_forward(params, x, *, dilation=1):
    # x: (B, Cin, H, W) NCHW (PyTorch layout).
    # TODO(synk): stride>1, groups>1 and the downsample branch are not
    # implemented (module defaults: stride=1, groups=1, downsample=None).
    B, Cin, H, W = x.shape
    width = params["w1"].shape[1]
    Cout = params["w3"].shape[1]
    assert Cin == Cout, "identity residual requires inplanes == planes*expansion"
    M = B * H * W
    tm = _row_tile(M)

    xf = jnp.transpose(x, (0, 2, 3, 1)).reshape(M, Cin)          # tokens x C

    # conv1 (1x1) -> bn1 -> relu      [fused]
    h = conv1x1_bn(xf, params["w1"], params["bn1_s"], params["bn1_t"],
                   relu=True, tm=tm)
    # conv2 (3x3, pad=dilation) -> bn2 -> relu   [fused]
    h = conv3x3_bn_relu(h.reshape(B, H, W, width), params["w2"],
                        params["bn2_s"], params["bn2_t"], dilation=dilation)
    # conv3 (1x1) -> bn3 -> (+identity) -> relu  [fused]
    out = conv1x1_bn_add_relu(h.reshape(M, width), params["w3"],
                              params["bn3_s"], params["bn3_t"], xf, tm=tm)
    return jnp.transpose(out.reshape(B, H, W, Cout), (0, 3, 1, 2))


# ----------------------------------------------------------------------------
# pure-JAX reference (for validation)
# ----------------------------------------------------------------------------
def bottleneck_reference(params, x, *, dilation=1):
    B, Cin, H, W = x.shape
    d = dilation
    xn = jnp.transpose(x, (0, 2, 3, 1)).astype(F32)

    def bn(y, s, t):
        return y * s.reshape(1, 1, 1, -1) + t.reshape(1, 1, 1, -1)

    h = jnp.einsum("bhwc,co->bhwo", xn, params["w1"], precision="highest")
    h = jax.nn.relu(bn(h, params["bn1_s"], params["bn1_t"]))

    hp = jnp.pad(h, ((0, 0), (d, d), (d, d), (0, 0)))
    acc = jnp.zeros(h.shape[:3] + (params["w2"].shape[-1],), F32)
    for i in range(3):
        for j in range(3):
            acc = acc + jnp.einsum(
                "bhwc,co->bhwo",
                hp[:, i * d:i * d + H, j * d:j * d + W, :],
                params["w2"][i, j], precision="highest")
    h = jax.nn.relu(bn(acc, params["bn2_s"], params["bn2_t"]))

    y = jnp.einsum("bhwc,co->bhwo", h, params["w3"], precision="highest")
    y = jax.nn.relu(bn(y, params["bn3_s"], params["bn3_t"]) + xn)
    return jnp.transpose(y, (0, 3, 1, 2))


# ----------------------------------------------------------------------------
# deterministic parameter init (shapes follow the torch module __init__)
# ----------------------------------------------------------------------------
def init_params(key, inplanes=256, planes=64, base_width=64, groups=1):
    width = int(planes * (base_width / 64.0)) * groups
    out_planes = planes * 4  # expansion = 4
    keys = iter(jax.random.split(key, 16))

    def nrm(shape, s=0.05):
        return s * jax.random.normal(next(keys), shape, F32)

    def bn(c):
        # BatchNorm2d eval-mode: fold (gamma, beta, running_mean, running_var)
        # into a per-channel scale/shift.
        gamma = 1.0 + nrm((1, c))
        beta = nrm((1, c), 0.02)
        rmean = nrm((1, c))
        rvar = 1.0 + jnp.abs(nrm((1, c), 0.1))
        scale = gamma / jnp.sqrt(rvar + BN_EPS)
        shift = beta - rmean * scale
        return scale, shift

    bn1_s, bn1_t = bn(width)
    bn2_s, bn2_t = bn(width)
    bn3_s, bn3_t = bn(out_planes)

    return {
        "w1": nrm((inplanes, width)),            # conv1x1, bias=False
        "bn1_s": bn1_s, "bn1_t": bn1_t,
        "w2": nrm((3, 3, width, width)),         # conv3x3, bias=False
        "bn2_s": bn2_s, "bn2_t": bn2_t,
        "w3": nrm((width, out_planes)),          # conv1x1, bias=False
        "bn3_s": bn3_s, "bn3_t": bn3_t,
    }


if __name__ == "__main__":
    key = jax.random.PRNGKey(0)
    kp, kx = jax.random.split(key)

    # Small shapes consistent with the module (expansion=4, downsample=None
    # requires inplanes == planes*4): classic ResNet-style bottleneck.
    B, inplanes, planes, H, W = 2, 256, 64, 16, 16

    params = init_params(kp, inplanes=inplanes, planes=planes)
    x = jax.random.normal(kx, (B, inplanes, H, W), F32)

    fwd = jax.jit(functools.partial(bottleneck_forward, dilation=1))
    out = fwd(params, x)
    jax.block_until_ready(out)

    assert out.shape == (B, planes * 4, H, W)
    assert bool(jnp.all(jnp.isfinite(out)))

    ref = bottleneck_reference(params, x, dilation=1)
    assert bool(jnp.allclose(out, ref, atol=2e-2, rtol=2e-2)), (
        float(jnp.max(jnp.abs(out - ref))))

    print("KERNEL_OK")
</pallas_src>

<mosaic_0001>
module attributes {stable_mosaic.version = 11 : i64} {
  func.func @_pw_bn_kernel(%arg0: i32, %arg1: memref<256x256xf32, #tpu.memory_space<vmem>>, %arg2: memref<256x64xf32, #tpu.memory_space<vmem>>, %arg3: memref<1x64xf32, #tpu.memory_space<vmem>>, %arg4: memref<1x64xf32, #tpu.memory_space<vmem>>, %arg5: memref<256x64xf32, #tpu.memory_space<vmem>>) attributes {dimension_semantics = [#tpu.dimension_semantics<parallel>], iteration_bounds = array<i64: 2>, scalar_prefetch = 0 : i64, scratch_operands = 0 : i64, tpu.core_type = #tpu.core_type<tc>, window_params = [{transform_indices = @transform_0, window_bounds = array<i64: 256, 256>}, {pipeline_mode = #tpu.pipeline_mode<synchronous>, transform_indices = @transform_1, window_bounds = array<i64: 256, 64>}, {pipeline_mode = #tpu.pipeline_mode<synchronous>, transform_indices = @transform_2, window_bounds = array<i64: 1, 64>}, {pipeline_mode = #tpu.pipeline_mode<synchronous>, transform_indices = @transform_3, window_bounds = array<i64: 1, 64>}, {transform_indices = @transform_4, window_bounds = array<i64: 256, 64>}]} {
    %c0 = arith.constant 0 : index
    %c0_0 = arith.constant 0 : index
    %0 = vector.load %arg1[%c0, %c0_0] : memref<256x256xf32, #tpu.memory_space<vmem>>, vector<256x256xf32>
    %c0_1 = arith.constant 0 : index
    %c0_2 = arith.constant 0 : index
    %1 = vector.load %arg2[%c0_1, %c0_2] : memref<256x64xf32, #tpu.memory_space<vmem>>, vector<256x64xf32>
    %cst = arith.constant dense<0.000000e+00> : vector<256x64xf32>
    %2 = tpu.matmul %0, %1, %cst {dimension_numbers = #tpu.dot_dimension_numbers<[1], [0], [0], [1], [0, 0, 1, 1], [], []>} : vector<256x256xf32>, vector<256x64xf32>, vector<256x64xf32> -> vector<256x64xf32>
    %c0_3 = arith.constant 0 : index
    %c0_4 = arith.constant 0 : index
    %3 = vector.load %arg3[%c0_3, %c0_4] : memref<1x64xf32, #tpu.memory_space<vmem>>, vector<1x64xf32>
    %4 = vector.broadcast %3 : vector<1x64xf32> to vector<256x64xf32>
    %5 = arith.mulf %2, %4 : vector<256x64xf32>
    %c0_5 = arith.constant 0 : index
    %c0_6 = arith.constant 0 : index
    %6 = vector.load %arg4[%c0_5, %c0_6] : memref<1x64xf32, #tpu.memory_space<vmem>>, vector<1x64xf32>
    %7 = vector.broadcast %6 : vector<1x64xf32> to vector<256x64xf32>
    %8 = arith.addf %5, %7 : vector<256x64xf32>
    %cst_7 = arith.constant 0.000000e+00 : f32
    %9 = vector.broadcast %cst_7 : f32 to vector<256x64xf32>
    %10 = arith.maximumf %8, %9 : vector<256x64xf32>
    %c0_8 = arith.constant 0 : index
    %c0_9 = arith.constant 0 : index
    %11 = vector.load %arg5[%c0_8, %c0_9] : memref<256x64xf32, #tpu.memory_space<vmem>>, vector<256x64xf32>
    tpu.vector_store %arg5[%c0_8, %c0_9], %10 {strides = array<i32>} : memref<256x64xf32, #tpu.memory_space<vmem>>, vector<256x64xf32>,
    return
  }
  func.func @transform_0(%arg0: i32) -> (i32, i32) {
    %c0_i32 = arith.constant 0 : i32
    %c0_i32_0 = arith.constant 0 : i32
    return %arg0, %c0_i32 : i32, i32
  }
  func.func @transform_1(%arg0: i32) -> (i32, i32) {
    %c0_i32 = arith.constant 0 : i32
    %c0_i32_0 = arith.constant 0 : i32
    %c0_i32_1 = arith.constant 0 : i32
    return %c0_i32, %c0_i32_0 : i32, i32
  }
  func.func @transform_2(%arg0: i32) -> (i32, i32) {
    %c0_i32 = arith.constant 0 : i32
    %c0_i32_0 = arith.constant 0 : i32
    %c0_i32_1 = arith.constant 0 : i32
    return %c0_i32, %c0_i32_0 : i32, i32
  }
  func.func @transform_3(%arg0: i32) -> (i32, i32) {
    %c0_i32 = arith.constant 0 : i32
    %c0_i32_0 = arith.constant 0 : i32
    %c0_i32_1 = arith.constant 0 : i32
    return %c0_i32, %c0_i32_0 : i32, i32
  }
  func.func @transform_4(%arg0: i32) -> (i32, i32) {
    %c0_i32 = arith.constant 0 : i32
    %c0_i32_0 = arith.constant 0 : i32
    return %arg0, %c0_i32 : i32, i32
  }
}

module attributes {stable_mosaic.version = 11 : i64} {
  func.func @_conv3x3_bn_relu_kernel(%arg0: i32, %arg1: memref<1x18x18x64xf32, #tpu.memory_space<vmem>>, %arg2: memref<3x3x64x64xf32, #tpu.memory_space<vmem>>, %arg3: memref<1x64xf32, #tpu.memory_space<vmem>>, %arg4: memref<1x64xf32, #tpu.memory_space<vmem>>, %arg5: memref<1x16x16x64xf32, #tpu.memory_space<vmem>>) attributes {dimension_semantics = [#tpu.dimension_semantics<parallel>], iteration_bounds = array<i64: 2>, scalar_prefetch = 0 : i64, scratch_operands = 0 : i64, tpu.core_type = #tpu.core_type<tc>, window_params = [{transform_indices = @transform_0, window_bounds = array<i64: 1, 18, 18, 64>}, {pipeline_mode = #tpu.pipeline_mode<synchronous>, transform_indices = @transform_1, window_bounds = array<i64: 3, 3, 64, 64>}, {pipeline_mode = #tpu.pipeline_mode<synchronous>, transform_indices = @transform_2, window_bounds = array<i64: 1, 64>}, {pipeline_mode = #tpu.pipeline_mode<synchronous>, transform_indices = @transform_3, window_bounds = array<i64: 1, 64>}, {transform_indices = @transform_4, window_bounds = array<i64: 1, 16, 16, 64>}]} {
    %cst = arith.constant 0.000000e+00 : f32
    %0 = vector.broadcast %cst : f32 to vector<256x64xf32>
    %c0 = arith.constant 0 : index
    %c0_0 = arith.constant 0 : index
    %c0_1 = arith.constant 0 : index
    %c0_2 = arith.constant 0 : index
    %1 = vector.load %arg1[%c0, %c0_0, %c0_1, %c0_2] : memref<1x18x18x64xf32, #tpu.memory_space<vmem>>, vector<1x16x16x64xf32>
    %2 = vector.shape_cast %1 : vector<1x16x16x64xf32> to vector<16x16x64xf32>
    %3 = vector.shape_cast %2 : vector<16x16x64xf32> to vector<256x64xf32>
    %c0_3 = arith.constant 0 : index
    %c0_4 = arith.constant 0 : index
    %c0_5 = arith.constant 0 : index
    %c0_6 = arith.constant 0 : index
    %4 = vector.load %arg2[%c0_3, %c0_4, %c0_5, %c0_6] : memref<3x3x64x64xf32, #tpu.memory_space<vmem>>, vector<1x1x64x64xf32>
    %5 = vector.shape_cast %4 : vector<1x1x64x64xf32> to vector<64x64xf32>
    %cst_7 = arith.constant dense<0.000000e+00> : vector<256x64xf32>
    %6 = tpu.matmul %3, %5, %cst_7 {dimension_numbers = #tpu.dot_dimension_numbers<[1], [0], [0], [1], [0, 0, 1, 1], [], []>} : vector<256x64xf32>, vector<64x64xf32>, vector<256x64xf32> -> vector<256x64xf32>
    %7 = arith.addf %0, %6 : vector<256x64xf32>
    %c0_8 = arith.constant 0 : index
    %c0_9 = arith.constant 0 : index
    %c1 = arith.constant 1 : index
    %c0_10 = arith.constant 0 : index
    %8 = vector.load %arg1[%c0_8, %c0_9, %c1, %c0_10] : memref<1x18x18x64xf32, #tpu.memory_space<vmem>>, vector<1x16x16x64xf32>
    %9 = vector.shape_cast %8 : vector<1x16x16x64xf32> to vector<16x16x64xf32>
    %10 = vector.shape_cast %9 : vector<16x16x64xf32> to vector<256x64xf32>
    %c0_11 = arith.constant 0 : index
    %c1_12 = arith.constant 1 : index
    %c0_13 = arith.constant 0 : index
    %c0_14 = arith.constant 0 : index
    %11 = vector.load %arg2[%c0_11, %c1_12, %c0_13, %c0_14] : memref<3x3x64x64xf32, #tpu.memory_space<vmem>>, vector<1x1x64x64xf32>
    %12 = vector.shape_cast %11 : vector<1x1x64x64xf32> to vector<64x64xf32>
    %cst_15 = arith.constant dense<0.000000e+00> : vector<256x64xf32>
    %13 = tpu.matmul %10, %12, %cst_15 {dimension_numbers = #tpu.dot_dimension_numbers<[1], [0], [0], [1], [0, 0, 1, 1], [], []>} : vector<256x64xf32>, vector<64x64xf32>, vector<256x64xf32> -> vector<256x64xf32>
    %14 = arith.addf %7, %13 : vector<256x64xf32>
    %c0_16 = arith.constant 0 : index
    %c0_17 = arith.constant 0 : index
    %c2 = arith.constant 2 : index
    %c0_18 = arith.constant 0 : index
    %15 = vector.load %arg1[%c0_16, %c0_17, %c2, %c0_18] : memref<1x18x18x64xf32, #tpu.memory_space<vmem>>, vector<1x16x16x64xf32>
    %16 = vector.shape_cast %15 : vector<1x16x16x64xf32> to vector<16x16x64xf32>
    %17 = vector.shape_cast %16 : vector<16x16x64xf32> to vector<256x64xf32>
    %c0_19 = arith.constant 0 : index
    %c2_20 = arith.constant 2 : index
    %c0_21 = arith.constant 0 : index
    %c0_22 = arith.constant 0 : index
    %18 = vector.load %arg2[%c0_19, %c2_20, %c0_21, %c0_22] : memref<3x3x64x64xf32, #tpu.memory_space<vmem>>, vector<1x1x64x64xf32>
    %19 = vector.shape_cast %18 : vector<1x1x64x64xf32> to vector<64x64xf32>
    %cst_23 = arith.constant dense<0.000000e+00> : vector<256x64xf32>
    %20 = tpu.matmul %17, %19, %cst_23 {dimension_numbers = #tpu.dot_dimension_numbers<[1], [0], [0], [1], [0, 0, 1, 1], [], []>} : vector<256x64xf32>, vector<64x64xf32>, vector<256x64xf32> -> vector<256x64xf32>
    %21 = arith.addf %14, %20 : vector<256x64xf32>
    %c0_24 = arith.constant 0 : index
    %c1_25 = arith.constant 1 : index
    %c0_26 = arith.constant 0 : index
    %c0_27 = arith.constant 0 : index
    %22 = vector.load %arg1[%c0_24, %c1_25, %c0_26, %c0_27] : memref<1x18x18x64xf32, #tpu.memory_space<vmem>>, vector<1x16x16x64xf32>
    %23 = vector.shape_cast %22 : vector<1x16x16x64xf32> to vector<16x16x64xf32>
    %24 = vector.shape_cast %23 : vector<16x16x64xf32> to vector<256x64xf32>
    %c1_28 = arith.constant 1 : index
    %c0_29 = arith.constant 0 : index
    %c0_30 = arith.constant 0 : index
    %c0_31 = arith.constant 0 : index
    %25 = vector.load %arg2[%c1_28, %c0_29, %c0_30, %c0_31] : memref<3x3x64x64xf32, #tpu.memory_space<vmem>>, vector<1x1x64x64xf32>
    %26 = vector.shape_cast %25 : vector<1x1x64x64xf32> to vector<64x64xf32>
    %cst_32 = arith.constant dense<0.000000e+00> : vector<256x64xf32>
    %27 = tpu.matmul %24, %26, %cst_32 {dimension_numbers = #tpu.dot_dimension_numbers<[1], [0], [0], [1], [0, 0, 1, 1], [], []>} : vector<256x64xf32>, vector<64x64xf32>, vector<256x64xf32> -> vector<256x64xf32>
    %28 = arith.addf %21, %27 : vector<256x64xf32>
    %c0_33 = arith.constant 0 : index
    %c1_34 = arith.constant 1 : index
    %c1_35 = arith.constant 1 : index
    %c0_36 = arith.constant 0 : index
    %29 = vector.load %arg1[%c0_33, %c1_34, %c1_35, %c0_36] : memref<1x18x18x64xf32, #tpu.memory_space<vmem>>, vector<1x16x16x64xf32>
    %30 = vector.shape_cast %29 : vector<1x16x16x64xf32> to vector<16x16x64xf32>
    %31 = vector.shape_cast %30 : vector<16x16x64xf32> to vector<256x64xf32>
    %c1_37 = arith.constant 1 : index
    %c1_38 = arith.constant 1 : index
    %c0_39 = arith.constant 0 : index
    %c0_40 = arith.constant 0 : index
    %32 = vector.load %arg2[%c1_37, %c1_38, %c0_39, %c0_40] : memref<3x3x64x64xf32, #tpu.memory_space<vmem>>, vector<1x1x64x64xf32>
    %33 = vector.shape_cast %32 : vector<1x1x64x64xf32> to vector<64x64xf32>
    %cst_41 = arith.constant dense<0.000000e+00> : vector<256x64xf32>
    %34 = tpu.matmul %31, %33, %cst_41 {dimension_numbers = #tpu.dot_dimension_numbers<[1], [0], [0], [1], [0, 0, 1, 1], [], []>} : vector<256x64xf32>, vector<64x64xf32>, vector<256x64xf32> -> vector<256x64xf32>
    %35 = arith.addf %28, %34 : vector<256x64xf32>
    %c0_42 = arith.constant 0 : index
    %c1_43 = arith.constant 1 : index
    %c2_44 = arith.constant 2 : index
    %c0_45 = arith.constant 0 : index
    %36 = vector.load %arg1[%c0_42, %c1_43, %c2_44, %c0_45] : memref<1x18x18x64xf32, #tpu.memory_space<vmem>>, vector<1x16x16x64xf32>
    %37 = vector.shape_cast %36 : vector<1x16x16x64xf32> to vector<16x16x64xf32>
    %38 = vector.shape_cast %37 : vector<16x16x64xf32> to vector<256x64xf32>
    %c1_46 = arith.constant 1 : index
    %c2_47 = arith.constant 2 : index
    %c0_48 = arith.constant 0 : index
    %c0_49 = arith.constant 0 : index
    %39 = vector.load %arg2[%c1_46, %c2_47, %c0_48, %c0_49] : memref<3x3x64x64xf32, #tpu.memory_space<vmem>>, vector<1x1x64x64xf32>
    %40 = vector.shape_cast %39 : vector<1x1x64x64xf32> to vector<64x64xf32>
    %cst_50 = arith.constant dense<0.000000e+00> : vector<256x64xf32>
    %41 = tpu.matmul %38, %40, %cst_50 {dimension_numbers = #tpu.dot_dimension_numbers<[1], [0], [0], [1], [0, 0, 1, 1], [], []>} : vector<256x64xf32>, vector<64x64xf32>, vector<256x64xf32> -> vector<256x64xf32>
    %42 = arith.addf %35, %41 : vector<256x64xf32>
    %c0_51 = arith.constant 0 : index
    %c2_52 = arith.constant 2 : index
    %c0_53 = arith.constant 0 : index
    %c0_54 = arith.constant 0 : index
    %43 = vector.load %arg1[%c0_51, %c2_52, %c0_53, %c0_54] : memref<1x18x18x64xf32, #tpu.memory_space<vmem>>, vector<1x16x16x64xf32>
    %44 = vector.shape_cast %43 : vector<1x16x16x64xf32> to vector<16x16x64xf32>
    %45 = vector.shape_cast %44 : vector<16x16x64xf32> to vector<256x64xf32>
    %c2_55 = arith.constant 2 : index
    %c0_56 = arith.constant 0 : index
    %c0_57 = arith.constant 0 : index
    %c0_58 = arith.constant 0 : index
    %46 = vector.load %arg2[%c2_55, %c0_56, %c0_57, %c0_58] : memref<3x3x64x64xf32, #tpu.memory_space<vmem>>, vector<1x1x64x64xf32>
    %47 = vector.shape_cast %46 : vector<1x1x64x64xf32> to vector<64x64xf32>
    %cst_59 = arith.constant dense<0.000000e+00> : vector<256x64xf32>
    %48 = tpu.matmul %45, %47, %cst_59 {dimension_numbers = #tpu.dot_dimension_numbers<[1], [0], [0], [1], [0, 0, 1, 1], [], []>} : vector<256x64xf32>, vector<64x64xf32>, vector<256x64xf32> -> vector<256x64xf32>
    %49 = arith.addf %42, %48 : vector<256x64xf32>
    %c0_60 = arith.constant 0 : index
    %c2_61 = arith.constant 2 : index
    %c1_62 = arith.constant 1 : index
    %c0_63 = arith.constant 0 : index
    %50 = vector.load %arg1[%c0_60, %c2_61, %c1_62, %c0_63] : memref<1x18x18x64xf32, #tpu.memory_space<vmem>>, vector<1x16x16x64xf32>
    %51 = vector.shape_cast %50 : vector<1x16x16x64xf32> to vector<16x16x64xf32>
    %52 = vector.shape_cast %51 : vector<16x16x64xf32> to vector<256x64xf32>
    %c2_64 = arith.constant 2 : index
    %c1_65 = arith.constant 1 : index
    %c0_66 = arith.constant 0 : index
    %c0_67 = arith.constant 0 : index
    %53 = vector.load %arg2[%c2_64, %c1_65, %c0_66, %c0_67] : memref<3x3x64x64xf32, #tpu.memory_space<vmem>>, vector<1x1x64x64xf32>
    %54 = vector.shape_cast %53 : vector<1x1x64x64xf32> to vector<64x64xf32>
    %cst_68 = arith.constant dense<0.000000e+00> : vector<256x64xf32>
    %55 = tpu.matmul %52, %54, %cst_68 {dimension_numbers = #tpu.dot_dimension_numbers<[1], [0], [0], [1], [0, 0, 1, 1], [], []>} : vector<256x64xf32>, vector<64x64xf32>, vector<256x64xf32> -> vector<256x64xf32>
    %56 = arith.addf %49, %55 : vector<256x64xf32>
    %c0_69 = arith.constant 0 : index
    %c2_70 = arith.constant 2 : index
    %c2_71 = arith.constant 2 : index
    %c0_72 = arith.constant 0 : index
    %57 = vector.load %arg1[%c0_69, %c2_70, %c2_71, %c0_72] : memref<1x18x18x64xf32, #tpu.memory_space<vmem>>, vector<1x16x16x64xf32>
    %58 = vector.shape_cast %57 : vector<1x16x16x64xf32> to vector<16x16x64xf32>
    %59 = vector.shape_cast %58 : vector<16x16x64xf32> to vector<256x64xf32>
    %c2_73 = arith.constant 2 : index
    %c2_74 = arith.constant 2 : index
    %c0_75 = arith.constant 0 : index
    %c0_76 = arith.constant 0 : index
    %60 = vector.load %arg2[%c2_73, %c2_74, %c0_75, %c0_76] : memref<3x3x64x64xf32, #tpu.memory_space<vmem>>, vector<1x1x64x64xf32>
    %61 = vector.shape_cast %60 : vector<1x1x64x64xf32> to vector<64x64xf32>
    %cst_77 = arith.constant dense<0.000000e+00> : vector<256x64xf32>
    %62 = tpu.matmul %59, %61, %cst_77 {dimension_numbers = #tpu.dot_dimension_numbers<[1], [0], [0], [1], [0, 0, 1, 1], [], []>} : vector<256x64xf32>, vector<64x64xf32>, vector<256x64xf32> -> vector<256x64xf32>
    %63 = arith.addf %56, %62 : vector<256x64xf32>
    %c0_78 = arith.constant 0 : index
    %c0_79 = arith.constant 0 : index
    %64 = vector.load %arg3[%c0_78, %c0_79] : memref<1x64xf32, #tpu.memory_space<vmem>>, vector<1x64xf32>
    %65 = vector.broadcast %64 : vector<1x64xf32> to vector<256x64xf32>
    %66 = arith.mulf %63, %65 : vector<256x64xf32>
    %c0_80 = arith.constant 0 : index
    %c0_81 = arith.constant 0 : index
    %67 = vector.load %arg4[%c0_80, %c0_81] : memref<1x64xf32, #tpu.memory_space<vmem>>, vector<1x64xf32>
    %68 = vector.broadcast %67 : vector<1x64xf32> to vector<256x64xf32>
    %69 = arith.addf %66, %68 : vector<256x64xf32>
    %cst_82 = arith.constant 0.000000e+00 : f32
    %70 = vector.broadcast %cst_82 : f32 to vector<256x64xf32>
    %71 = arith.maximumf %69, %70 : vector<256x64xf32>
    %72 = vector.shape_cast %71 : vector<256x64xf32> to vector<16x16x64xf32>
    %c0_83 = arith.constant 0 : index
    %c0_84 = arith.constant 0 : index
    %c0_85 = arith.constant 0 : index
    %c0_86 = arith.constant 0 : index
    %73 = vector.load %arg5[%c0_83, %c0_84, %c0_85, %c0_86] : memref<1x16x16x64xf32, #tpu.memory_space<vmem>>, vector<1x16x16x64xf32>
    %74 = vector.shape_cast %73 : vector<1x16x16x64xf32> to vector<16x16x64xf32>
    %75 = vector.shape_cast %72 : vector<16x16x64xf32> to vector<1x16x16x64xf32>
    tpu.vector_store %arg5[%c0_83, %c0_84, %c0_85, %c0_86], %75 {strides = array<i32>} : memref<1x16x16x64xf32, #tpu.memory_space<vmem>>, vector<1x16x16x64xf32>,
    return
  }
  func.func @transform_0(%arg0: i32) -> (i32, i32, i32, i32) {
    %c0_i32 = arith.constant 0 : i32
    %c0_i32_0 = arith.constant 0 : i32
    %c0_i32_1 = arith.constant 0 : i32
    %c0_i32_2 = arith.constant 0 : i32
    return %arg0, %c0_i32, %c0_i32_0, %c0_i32_1 : i32, i32, i32, i32
  }
  func.func @transform_1(%arg0: i32) -> (i32, i32, i32, i32) {
    %c0_i32 = arith.constant 0 : i32
    %c0_i32_0 = arith.constant 0 : i32
    %c0_i32_1 = arith.constant 0 : i32
    %c0_i32_2 = arith.constant 0 : i32
    %c0_i32_3 = arith.constant 0 : i32
    return %c0_i32, %c0_i32_0, %c0_i32_1, %c0_i32_2 : i32, i32, i32, i32
  }
  func.func @transform_2(%arg0: i32) -> (i32, i32) {
    %c0_i32 = arith.constant 0 : i32
    %c0_i32_0 = arith.constant 0 : i32
    %c0_i32_1 = arith.constant 0 : i32
    return %c0_i32, %c0_i32_0 : i32, i32
  }
  func.func @transform_3(%arg0: i32) -> (i32, i32) {
    %c0_i32 = arith.constant 0 : i32
    %c0_i32_0 = arith.constant 0 : i32
    %c0_i32_1 = arith.constant 0 : i32
    return %c0_i32, %c0_i32_0 : i32, i32
  }
  func.func @transform_4(%arg0: i32) -> (i32, i32, i32, i32) {
    %c0_i32 = arith.constant 0 : i32
    %c0_i32_0 = arith.constant 0 : i32
    %c0_i32_1 = arith.constant 0 : i32
    %c0_i32_2 = arith.constant 0 : i32
    return %arg0, %c0_i32, %c0_i32_0, %c0_i32_1 : i32, i32, i32, i32
  }
}

module attributes {stable_mosaic.version = 11 : i64} {
  func.func @_pw_bn_res_relu_kernel(%arg0: i32, %arg1: memref<256x64xf32, #tpu.memory_space<vmem>>, %arg2: memref<64x256xf32, #tpu.memory_space<vmem>>, %arg3: memref<1x256xf32, #tpu.memory_space<vmem>>, %arg4: memref<1x256xf32, #tpu.memory_space<vmem>>, %arg5: memref<256x256xf32, #tpu.memory_space<vmem>>, %arg6: memref<256x256xf32, #tpu.memory_space<vmem>>) attributes {dimension_semantics = [#tpu.dimension_semantics<parallel>], iteration_bounds = array<i64: 2>, scalar_prefetch = 0 : i64, scratch_operands = 0 : i64, tpu.core_type = #tpu.core_type<tc>, window_params = [{transform_indices = @transform_0, window_bounds = array<i64: 256, 64>}, {pipeline_mode = #tpu.pipeline_mode<synchronous>, transform_indices = @transform_1, window_bounds = array<i64: 64, 256>}, {pipeline_mode = #tpu.pipeline_mode<synchronous>, transform_indices = @transform_2, window_bounds = array<i64: 1, 256>}, {pipeline_mode = #tpu.pipeline_mode<synchronous>, transform_indices = @transform_3, window_bounds = array<i64: 1, 256>}, {transform_indices = @transform_4, window_bounds = array<i64: 256, 256>}, {transform_indices = @transform_5, window_bounds = array<i64: 256, 256>}]} {
    %c0 = arith.constant 0 : index
    %c0_0 = arith.constant 0 : index
    %0 = vector.load %arg1[%c0, %c0_0] : memref<256x64xf32, #tpu.memory_space<vmem>>, vector<256x64xf32>
    %c0_1 = arith.constant 0 : index
    %c0_2 = arith.constant 0 : index
    %1 = vector.load %arg2[%c0_1, %c0_2] : memref<64x256xf32, #tpu.memory_space<vmem>>, vector<64x256xf32>
    %cst = arith.constant dense<0.000000e+00> : vector<256x256xf32>
    %2 = tpu.matmul %0, %1, %cst {dimension_numbers = #tpu.dot_dimension_numbers<[1], [0], [0], [1], [0, 0, 1, 1], [], []>} : vector<256x64xf32>, vector<64x256xf32>, vector<256x256xf32> -> vector<256x256xf32>
    %c0_3 = arith.constant 0 : index
    %c0_4 = arith.constant 0 : index
    %3 = vector.load %arg3[%c0_3, %c0_4] : memref<1x256xf32, #tpu.memory_space<vmem>>, vector<1x256xf32>
    %4 = vector.broadcast %3 : vector<1x256xf32> to vector<256x256xf32>
    %5 = arith.mulf %2, %4 : vector<256x256xf32>
    %c0_5 = arith.constant 0 : index
    %c0_6 = arith.constant 0 : index
    %6 = vector.load %arg4[%c0_5, %c0_6] : memref<1x256xf32, #tpu.memory_space<vmem>>, vector<1x256xf32>
    %7 = vector.broadcast %6 : vector<1x256xf32> to vector<256x256xf32>
    %8 = arith.addf %5, %7 : vector<256x256xf32>
    %c0_7 = arith.constant 0 : index
    %c0_8 = arith.constant 0 : index
    %9 = vector.load %arg5[%c0_7, %c0_8] : memref<256x256xf32, #tpu.memory_space<vmem>>, vector<256x256xf32>
    %10 = arith.addf %8, %9 : vector<256x256xf32>
    %cst_9 = arith.constant 0.000000e+00 : f32
    %11 = vector.broadcast %cst_9 : f32 to vector<256x256xf32>
    %12 = arith.maximumf %10, %11 : vector<256x256xf32>
    %c0_10 = arith.constant 0 : index
    %c0_11 = arith.constant 0 : index
    %13 = vector.load %arg6[%c0_10, %c0_11] : memref<256x256xf32, #tpu.memory_space<vmem>>, vector<256x256xf32>
    tpu.vector_store %arg6[%c0_10, %c0_11], %12 {strides = array<i32>} : memref<256x256xf32, #tpu.memory_space<vmem>>, vector<256x256xf32>,
    return
  }
  func.func @transform_0(%arg0: i32) -> (i32, i32) {
    %c0_i32 = arith.constant 0 : i32
    %c0_i32_0 = arith.constant 0 : i32
    return %arg0, %c0_i32 : i32, i32
  }
  func.func @transform_1(%arg0: i32) -> (i32, i32) {
    %c0_i32 = arith.constant 0 : i32
    %c0_i32_0 = arith.constant 0 : i32
    %c0_i32_1 = arith.constant 0 : i32
    return %c0_i32, %c0_i32_0 : i32, i32
  }
  func.func @transform_2(%arg0: i32) -> (i32, i32) {
    %c0_i32 = arith.constant 0 : i32
    %c0_i32_0 = arith.constant 0 : i32
    %c0_i32_1 = arith.constant 0 : i32
    return %c0_i32, %c0_i32_0 : i32, i32
  }
  func.func @transform_3(%arg0: i32) -> (i32, i32) {
    %c0_i32 = arith.constant 0 : i32
    %c0_i32_0 = arith.constant 0 : i32
    %c0_i32_1 = arith.constant 0 : i32
    return %c0_i32, %c0_i32_0 : i32, i32
  }
  func.func @transform_4(%arg0: i32) -> (i32, i32) {
    %c0_i32 = arith.constant 0 : i32
    %c0_i32_0 = arith.constant 0 : i32
    return %arg0, %c0_i32 : i32, i32
  }
  func.func @transform_5(%arg0: i32) -> (i32, i32) {
    %c0_i32 = arith.constant 0 : i32
    %c0_i32_0 = arith.constant 0 : i32
    return %arg0, %c0_i32 : i32, i32
  }
}

</mosaic_0001>

<llo_original>
// kernel: bottleneck_forward.3
$region0: #{bottleneck_forward.3}
  #allocation0 [shape = 'u32[]', space=smem, size = 0x4, offset = 0x4, fixed_abs, tag = 'smem constant byte address 0x4 - core index']
  #allocation1 [shape = 'u32[72,128]{1,0:T(1,128)}', space=vmem, size = 0x9000, scoped, tag = 'internal scratch']
  %s0 = inlined_call_operand.hbm [shape: f32[512,256], index: 0, kind: input, shape index: {}]
  %s1 = inlined_call_operand.vmem [shape: f32[256,64], index: 1, kind: input, shape index: {}]
  %s2 = inlined_call_operand.vmem [shape: f32[1,64], index: 2, kind: input, shape index: {}]
  %s3 = inlined_call_operand.vmem [shape: f32[1,64], index: 3, kind: input, shape index: {}]
  %s4 = inlined_call_operand.vmem [shape: f32[512,64], index: 4, kind: output, shape index: {}]
  %s5 = sld [smem:[#allocation0]]
  $region53: #{bottleneck_forward.3} parent=0
    _
  %s7 = ssub.s32 1, %s5
  %s8 = scalar_select 0, %s7, %s5
  $region1: #{bottleneck_forward.3} parent=0
    #allocation2 [shape = 'u8[524288]{0}', space=vmem, size = 0x80000, scoped, tag = 'input window, operand 0']
    #allocation3 [shape = 's32[2]{0}', space=sflag, size = 0x8, scoped, tag = 'scoped memory for bottleneck_forward.3']
    %9 = vsyncpa [#allocation3], 0
    %s10 = scalar_lea.sflag [#allocation3], 1
    %11 = vsyncpa %s10, 0
    loop: start=0, step=1, limit=4
    $region2: #{bottleneck_forward.3} parent=1 // loop_pre_header
      _
    $region3: #{bottleneck_forward.3} parent=1 // loop_header
      %s13 = sphi 0, %s17
      %p14 = scmp.ge.s32.totalorder %s13, 4
      %s23 = sphi 0, %s25
      %s26 = sphi 0, %s23
      %s27 = sphi 0, %s26
      %s43 = sphi 0, %s27
      %s47 = sphi 0, %s47
      %s49 = sphi 0, %s47
      %s50 = sphi 0, %s49
      %s64 = sphi 0, %s50
      %s68 = sphi 0, %s68
      %s70 = sphi 0, %s68
      %s71 = sphi 0, %s70
      %s85 = sphi 0, %s71
      %s89 = sphi 0, %s89
      %s91 = sphi 0, %s89
      %s92 = sphi 0, %s91
      %s106 = sphi 0, %s92
      %s112 = sphi 0, %s114
      %s115 = sphi 0, %s112
      %s116 = sphi 0, %s115
      %s132 = sphi 0, %s116
    $region4: #{bottleneck_forward.3} parent=1 // loop_header_branch
      %16 = sbr.rel (%p14) target = $region8
    $region5: #{bottleneck_forward.3} parent=1 // loop_body
      %s18 = ssub.s32 %s13, 1
      %s19 = ssub.s32 %s13, 2
      %s20 = sadd.s32 %s13, 1
      %s21 = ssub.s32 %s13, %s20
      %p22 = scmp.eq.s32.totalorder %s21, 0
      %s24 = sadd.s32 %s23, 1
      %s25 = scalar_select %p22, %s23, %s24
      %p28 = pneg %p22
      %p29 = scmp.eq.s32.totalorder %s13, 1
      %p30 = por %p28, %p29
      %p31 = scmp.ne.s32.totalorder %s23, %s26
      %p32 = scmp.eq.s32.totalorder %s13, 0
      %p33 = por %p31, %p32
      %p34 = scmp.ne.s32.totalorder %s23, %s26
      %p35 = scmp.eq.s32.totalorder %s18, 1
      %p36 = por %p34, %p35
      %p37 = scmp.ne.s32.totalorder %s26, %s27
      %p38 = scmp.eq.s32.totalorder %s18, 0
      %p39 = por %p37, %p38
      %p40 = scmp.ne.s32.totalorder %s26, %s27
      %p41 = scmp.eq.s32.totalorder %s19, 1
      %p42 = por %p40, %p41
      %p44 = scmp.ne.s32.totalorder %s27, %s43
      %p45 = scmp.eq.s32.totalorder %s19, 0
      %p46 = por %p44, %p45
      %s48 = sadd.s32 %s47, 1
      %p51 = scmp.eq.s32.totalorder %s13, 1
      %p52 = scmp.ne.s32.totalorder %s47, %s49
      %p53 = scmp.eq.s32.totalorder %s13, 0
      %p54 = por %p52, %p53
      %p55 = scmp.ne.s32.totalorder %s47, %s49
      %p56 = scmp.eq.s32.totalorder %s18, 1
      %p57 = por %p55, %p56
      %p58 = scmp.ne.s32.totalorder %s49, %s50
      %p59 = scmp.eq.s32.totalorder %s18, 0
      %p60 = por %p58, %p59
      %p61 = scmp.ne.s32.totalorder %s49, %s50
      %p62 = scmp.eq.s32.totalorder %s19, 1
      %p63 = por %p61, %p62
      %p65 = scmp.ne.s32.totalorder %s50, %s64
      %p66 = scmp.eq.s32.totalorder %s19, 0
      %p67 = por %p65, %p66
      %s69 = sadd.s32 %s68, 1
      %p72 = scmp.eq.s32.totalorder %s13, 1
      %p73 = scmp.ne.s32.totalorder %s68, %s70
      %p74 = scmp.eq.s32.totalorder %s13, 0
      %p75 = por %p73, %p74
      %p76 = scmp.ne.s32.totalorder %s68, %s70
      %p77 = scmp.eq.s32.totalorder %s18, 1
      %p78 = por %p76, %p77
      %p79 = scmp.ne.s32.totalorder %s70, %s71
      %p80 = scmp.eq.s32.totalorder %s18, 0
      %p81 = por %p79, %p80
      %p82 = scmp.ne.s32.totalorder %s70, %s71
      %p83 = scmp.eq.s32.totalorder %s19, 1
      %p84 = por %p82, %p83
      %p86 = scmp.ne.s32.totalorder %s71, %s85
      %p87 = scmp.eq.s32.totalorder %s19, 0
      %p88 = por %p86, %p87
      %s90 = sadd.s32 %s89, 1
      %p93 = scmp.eq.s32.totalorder %s13, 1
      %p94 = scmp.ne.s32.totalorder %s89, %s91
      %p95 = scmp.eq.s32.totalorder %s13, 0
      %p96 = por %p94, %p95
      %p97 = scmp.ne.s32.totalorder %s89, %s91
      %p98 = scmp.eq.s32.totalorder %s18, 1
      %p99 = por %p97, %p98
      %p100 = scmp.ne.s32.totalorder %s91, %s92
      %p101 = scmp.eq.s32.totalorder %s18, 0
      %p102 = por %p100, %p101
      %p103 = scmp.ne.s32.totalorder %s91, %s92
      %p104 = scmp.eq.s32.totalorder %s19, 1
      %p105 = por %p103, %p104
      %p107 = scmp.ne.s32.totalorder %s92, %s106
      %p108 = scmp.eq.s32.totalorder %s19, 0
      %p109 = por %p107, %p108
      %s110 = ssub.s32 %s13, %s20
      %p111 = scmp.eq.s32.totalorder %s110, 0
      %s113 = sadd.s32 %s112, 1
      %s114 = scalar_select %p111, %s112, %s113
      %p117 = pneg %p111
      %p118 = scmp.eq.s32.totalorder %s13, 1
      %p119 = por %p117, %p118
      %p120 = scmp.ne.s32.totalorder %s112, %s115
      %p121 = scmp.eq.s32.totalorder %s13, 0
      %p122 = por %p120, %p121
      %p123 = scmp.ne.s32.totalorder %s112, %s115
      %p124 = scmp.eq.s32.totalorder %s18, 1
      %p125 = por %p123, %p124
      %p126 = scmp.ne.s32.totalorder %s115, %s116
      %p127 = scmp.eq.s32.totalorder %s18, 0
      %p128 = por %p126, %p127
      %p129 = scmp.ne.s32.totalorder %s115, %s116
      %p130 = scmp.eq.s32.totalorder %s19, 1
      %p131 = por %p129, %p130
      %p133 = scmp.ne.s32.totalorder %s116, %s132
      %p134 = scmp.eq.s32.totalorder %s19, 0
      %p135 = por %p133, %p134
      %p136 = scmp.le.s32.totalorder 1, %s13
      %p137 = scmp.lt.s32.totalorder %s13, 3
      %p138 = pnand %p136, %p137
      %p139 = pneg %p138
      // Predicated region
      $region9: #{bottleneck_forward.3} parent=5 // pred_check
        _
      $region10: #{bottleneck_forward.3} parent=5 // pred_check_branch
        %141 = sbr.rel (%p138) target = $region12
      $region11: #{bottleneck_forward.3} parent=5 // pred_region
        %s142 = ssub.s32 %s13, 1
        // Predicated region
        $region13: #{bottleneck_forward.3} parent=11 // pred_check
          %p143 = pneg %p60
        $region14: #{bottleneck_forward.3} parent=11 // pred_check_branch
          %145 = sbr.rel (%p143) target = $region16
        $region15: #{bottleneck_forward.3} parent=11 // pred_region
          _
        $region16: #{bottleneck_forward.3} parent=11 // pred_fallthru
          _
        // Predicated region
        $region17: #{bottleneck_forward.3} parent=11 // pred_check
          %p146 = pneg %p81
        $region18: #{bottleneck_forward.3} parent=11 // pred_check_branch
          %148 = sbr.rel (%p146) target = $region20
        $region19: #{bottleneck_forward.3} parent=11 // pred_region
          _
        $region20: #{bottleneck_forward.3} parent=11 // pred_fallthru
          _
        // Predicated region
        $region21: #{bottleneck_forward.3} parent=11 // pred_check
          %p149 = pneg %p102
        $region22: #{bottleneck_forward.3} parent=11 // pred_check_branch
          %151 = sbr.rel (%p149) target = $region24
        $region23: #{bottleneck_forward.3} parent=11 // pred_region
          _
        $region24: #{bottleneck_forward.3} parent=11 // pred_fallthru
          _
      $region12: #{bottleneck_forward.3} parent=5 // pred_fallthru
        _
      %p152 = scmp.lt.s32.totalorder %s13, 2
      // Predicated region
      $region25: #{bottleneck_forward.3} parent=5 // pred_check
        %p153 = pneg %p152
      $region26: #{bottleneck_forward.3} parent=5 // pred_check_branch
        %155 = sbr.rel (%p153) target = $region28
      $region27: #{bottleneck_forward.3} parent=5 // pred_region
        // Predicated region
        $region29: #{bottleneck_forward.3} parent=27 // pred_check
          %p156 = pneg %p33
        $region30: #{bottleneck_forward.3} parent=27 // pred_check_branch
          %158 = sbr.rel (%p156) target = $region32
        $region31: #{bottleneck_forward.3} parent=27 // pred_region
          %s159 = sand.u32 %s23, 1
          %s160 = scalar_lea.sflag [#allocation3], %s159
          %s161 = sand.u32 %s23, 1
          %s162 = smul.addr %s161, 512
          %s163 = scalar_lea.vmem [#allocation2], %s162
          %s164 = smul.u32 32, %s13
          %166 = vsyncadd %s160, 0
          %s167 = smul.addr %s164, 2
          %s168 = smul.addr %s167, 8
          %s169 = scalar_lea.hbm %s0, %s168
          %s170 = sshll.u32 %s169, 4
          %s171 = int_to_ptr.hbm [resolvable:$true] %s170
          %s172 = sshll.u32 %s163, 4
          %s173 = int_to_ptr.vmem [resolvable:$true] %s172
          %178 = dma.hbm_to_vmem [thread:$0]  %s171, 8192, %s173, %s160, 256, 256, 16
        $region32: #{bottleneck_forward.3} parent=27 // pred_fallthru
          _
      $region28: #{bottleneck_forward.3} parent=5 // pred_fallthru
        _
      %p179 = scmp.le.s32.totalorder 1, %s13
      %p180 = scmp.lt.s32.totalorder %s13, 3
      %p181 = pnand %p179, %p180
      %p182 = pneg %p181
      // Predicated region
      $region33: #{bottleneck_forward.3} parent=5 // pred_check
        _
      $region34: #{bottleneck_forward.3} parent=5 // pred_check_branch
        %184 = sbr.rel (%p181) target = $region36
      $region35: #{bottleneck_forward.3} parent=5 // pred_region
        %s185 = ssub.s32 %s13, 1
        %s186 = sand.u32 %s26, 1
        %s187 = scalar_lea.sflag [#allocation3], %s186
        %s188 = sand.u32 %s26, 1
        %s189 = smul.addr %s188, 512
        %s190 = scalar_lea.vmem [#allocation2], %s189
        // Predicated region
        $region37: #{bottleneck_forward.3} parent=35 // pred_check
          %p191 = pneg %p39
        $region38: #{bottleneck_forward.3} parent=35 // pred_check_branch
          %193 = sbr.rel (%p191) target = $region40
        $region39: #{bottleneck_forward.3} parent=35 // pred_region
          %195 = dma.done %s187, 8192
        $region40: #{bottleneck_forward.3} parent=35 // pred_fallthru
          _
        %s196 = sand.u32 %s26, 1
        %s197 = scalar_lea.sflag [#allocation3], %s196
        %s198 = sand.u32 %s26, 1
        %s199 = smul.addr %s198, 512
        %s200 = scalar_lea.vmem [#allocation2], %s199
        %p201 = pneg %p39
        %p202 = pneg %p36
        %p203 = pneg %p60
        %p204 = pneg %p57
        %p205 = pneg %p81
        %p206 = pneg %p78
        %p207 = pneg %p102
        %p208 = pneg %p99
        %p209 = pneg %p128
        %p210 = pneg %p125
        %s211 = smul.u32 32, %s18
        %p212 = scmp.lt.s32.totalorder %s211, 63
        %s213 = scalar_select %p212, %s211, 63
        %s214 = smul.addr %s213, 8
        %s215 = scalar_lea.vmem %s4, %s214
        %s216 = smul.u32 32, %s18
        %s217 = smul.u32 32, %s18
        %p218 = scmp.lt.s32.totalorder %s217, 63
        %s219 = scalar_select %p218, %s217, 63
        %s220 = smul.addr %s219, 8
        %s221 = scalar_lea.vmem %s4, %s220
        %s222 = smul.u32 32, %s18
        %v223 = vld [vmem:[%s190] sm:$0xff]
        %v224 = vld [vmem:[%s190 + $0x8] sm:$0xff]
        %v225 = vld [vmem:[%s190 + $0x10] sm:$0xff]
        %v226 = vld [vmem:[%s190 + $0x18] sm:$0xff]
        %v227 = vld [vmem:[%s190 + $0x20] sm:$0xff]
        %v228 = vld [vmem:[%s190 + $0x28] sm:$0xff]
        %v229 = vld [vmem:[%s190 + $0x30] sm:$0xff]
        %v230 = vld [vmem:[%s190 + $0x38] sm:$0xff]
        %v231 = vld [vmem:[%s190 + $0x40] sm:$0xff]
        %v232 = vld [vmem:[%s190 + $0x48] sm:$0xff]
        %v233 = vld [vmem:[%s190 + $0x50] sm:$0xff]
        %v234 = vld [vmem:[%s190 + $0x58] sm:$0xff]
        %v235 = vld [vmem:[%s190 + $0x60] sm:$0xff]
        %v236 = vld [vmem:[%s190 + $0x68] sm:$0xff]
        %v237 = vld [vmem:[%s190 + $0x70] sm:$0xff]
        %v238 = vld [vmem:[%s190 + $0x78] sm:$0xff]
        %v239 = vld [vmem:[%s190 + $0x80] sm:$0xff]
        %v240 = vld [vmem:[%s190 + $0x88] sm:$0xff]
        %v241 = vld [vmem:[%s190 + $0x90] sm:$0xff]
        %v242 = vld [vmem:[%s190 + $0x98] sm:$0xff]
        %v243 = vld [vmem:[%s190 + $0xa0] sm:$0xff]
        %v244 = vld [vmem:[%s190 + $0xa8] sm:$0xff]
        %v245 = vld [vmem:[%s190 + $0xb0] sm:$0xff]
        %v246 = vld [vmem:[%s190 + $0xb8] sm:$0xff]
        %v247 = vld [vmem:[%s190 + $0xc0] sm:$0xff]
        %v248 = vld [vmem:[%s190 + $0xc8] sm:$0xff]
        %v249 = vld [vmem:[%s190 + $0xd0] sm:$0xff]
        %v250 = vld [vmem:[%s190 + $0xd8] sm:$0xff]
        %v251 = vld [vmem:[%s190 + $0xe0] sm:$0xff]
        %v252 = vld [vmem:[%s190 + $0xe8] sm:$0xff]
        %v253 = vld [vmem:[%s190 + $0xf0] sm:$0xff]
        %v254 = vld [vmem:[%s190 + $0xf8] sm:$0xff]
        %v255 = vld [vmem:[%s190 + $0x100] sm:$0xff]
        %v256 = vld [vmem:[%s190 + $0x108] sm:$0xff]
        %v257 = vld [vmem:[%s190 + $0x110] sm:$0xff]
        %v258 = vld [vmem:[%s190 + $0x118] sm:$0xff]
        %v259 = vld [vmem:[%s190 + $0x120] sm:$0xff]
        %v260 = vld [vmem:[%s190 + $0x128] sm:$0xff]
        %v261 = vld [vmem:[%s190 + $0x130] sm:$0xff]
        %v262 = vld [vmem:[%s190 + $0x138] sm:$0xff]
        %v263 = vld [vmem:[%s190 + $0x140] sm:$0xff]
        %v264 = vld [vmem:[%s190 + $0x148] sm:$0xff]
        %v265 = vld [vmem:[%s190 + $0x150] sm:$0xff]
        %v266 = vld [vmem:[%s190 + $0x158] sm:$0xff]
        %v267 = vld [vmem:[%s190 + $0x160] sm:$0xff]
        %v268 = vld [vmem:[%s190 + $0x168] sm:$0xff]
        %v269 = vld [vmem:[%s190 + $0x170] sm:$0xff]
        %v270 = vld [vmem:[%s190 + $0x178] sm:$0xff]
        %v271 = vld [vmem:[%s190 + $0x180] sm:$0xff]
        %v272 = vld [vmem:[%s190 + $0x188] sm:$0xff]
        %v273 = vld [vmem:[%s190 + $0x190] sm:$0xff]
        %v274 = vld [vmem:[%s190 + $0x198] sm:$0xff]
        %v275 = vld [vmem:[%s190 + $0x1a0] sm:$0xff]
        %v276 = vld [vmem:[%s190 + $0x1a8] sm:$0xff]
        %v277 = vld [vmem:[%s190 + $0x1b0] sm:$0xff]
        %v278 = vld [vmem:[%s190 + $0x1b8] sm:$0xff]
        %v279 = vld [vmem:[%s190 + $0x1c0] sm:$0xff]
        %v280 = vld [vmem:[%s190 + $0x1c8] sm:$0xff]
        %v281 = vld [vmem:[%s190 + $0x1d0] sm:$0xff]
        %v282 = vld [vmem:[%s190 + $0x1d8] sm:$0xff]
        %v283 = vld [vmem:[%s190 + $0x1e0] sm:$0xff]
        %v284 = vld [vmem:[%s190 + $0x1e8] sm:$0xff]
        %v285 = vld [vmem:[%s190 + $0x1f0] sm:$0xff]
        %v286 = vld [vmem:[%s190 + $0x1f8] sm:$0xff]
        %v287 = vld [vmem:[%s1] sm:$0xff]
        %v288 = vld [vmem:[%s1 + $0x8] sm:$0xff]
        %v289 = vld [vmem:[%s1 + $0x10] sm:$0xff]
        %v290 = vld [vmem:[%s1 + $0x18] sm:$0xff]
        %v291 = vld [vmem:[%s1 + $0x20] sm:$0xff]
        %v292 = vld [vmem:[%s1 + $0x28] sm:$0xff]
        %v293 = vld [vmem:[%s1 + $0x30] sm:$0xff]
        %v294 = vld [vmem:[%s1 + $0x38] sm:$0xff]
        %v295 = vld [vmem:[%s1 + $0x40] sm:$0xff]
        %v296 = vld [vmem:[%s1 + $0x48] sm:$0xff]
        %v297 = vld [vmem:[%s1 + $0x50] sm:$0xff]
        %v298 = vld [vmem:[%s1 + $0x58] sm:$0xff]
        %v299 = vld [vmem:[%s1 + $0x60] sm:$0xff]
        %v300 = vld [vmem:[%s1 + $0x68] sm:$0xff]
        %v301 = vld [vmem:[%s1 + $0x70] sm:$0xff]
        %v302 = vld [vmem:[%s1 + $0x78] sm:$0xff]
        %v303 = vld [vmem:[%s1 + $0x80] sm:$0xff]
        %v304 = vld [vmem:[%s1 + $0x88] sm:$0xff]
        %v305 = vld [vmem:[%s1 + $0x90] sm:$0xff]
        %v306 = vld [vmem:[%s1 + $0x98] sm:$0xff]
        %v307 = vld [vmem:[%s1 + $0xa0] sm:$0xff]
        %v308 = vld [vmem:[%s1 + $0xa8] sm:$0xff]
        %v309 = vld [vmem:[%s1 + $0xb0] sm:$0xff]
        %v310 = vld [vmem:[%s1 + $0xb8] sm:$0xff]
        %v311 = vld [vmem:[%s1 + $0xc0] sm:$0xff]
        %v312 = vld [vmem:[%s1 + $0xc8] sm:$0xff]
        %v313 = vld [vmem:[%s1 + $0xd0] sm:$0xff]
        %v314 = vld [vmem:[%s1 + $0xd8] sm:$0xff]
        %v315 = vld [vmem:[%s1 + $0xe0] sm:$0xff]
        %v316 = vld [vmem:[%s1 + $0xe8] sm:$0xff]
        %v317 = vld [vmem:[%s1 + $0xf0] sm:$0xff]
        %v318 = vld [vmem:[%s1 + $0xf8] sm:$0xff]
        %319 = vmatpush.msra.mxu0 %v302
        %320 = vmatpush.msra.mxu0 %v301
        %321 = vmatpush.msra.mxu0 %v300
        %322 = vmatpush.msra.mxu0 %v299
        %323 = vmatpush.msra.mxu0 %v298
        %324 = vmatpush.msra.mxu0 %v297
        %325 = vmatpush.msra.mxu0 %v296
        %326 = vmatpush.msra.mxu0 %v295
        %327 = vmatpush.msra.mxu0 %v294
        %328 = vmatpush.msra.mxu0 %v293
        %329 = vmatpush.msra.mxu0 %v292
        %330 = vmatpush.msra.mxu0 %v291
        %331 = vmatpush.msra.mxu0 %v290
        %332 = vmatpush.msra.mxu0 %v289
        %333 = vmatpush.msra.mxu0 %v288
        %334 = vmatpush.msra.mxu0 %v287
        %335 = vmatmul.f32.gmra.mxu0 %v223
        %v336 = vpop.f32.mrf.mxu0
        %v337 = vadd.f32 0.0, %v336
        %338 = vmatmul.f32.gmra.mxu0 %v225
        %v339 = vpop.f32.mrf.mxu0
        %v340 = vadd.f32 0.0, %v339
        %341 = vmatmul.f32.gmra.mxu0 %v227
        %v342 = vpop.f32.mrf.mxu0
        %v343 = vadd.f32 0.0, %v342
        %344 = vmatmul.f32.gmra.mxu0 %v229
        %v345 = vpop.f32.mrf.mxu0
        %v346 = vadd.f32 0.0, %v345
        %347 = vmatmul.f32.gmra.mxu0 %v231
        %v348 = vpop.f32.mrf.mxu0
        %v349 = vadd.f32 0.0, %v348
        %350 = vmatmul.f32.gmra.mxu0 %v233
        %v351 = vpop.f32.mrf.mxu0
        %v352 = vadd.f32 0.0, %v351
        %353 = vmatmul.f32.gmra.mxu0 %v235
        %v354 = vpop.f32.mrf.mxu0
        %v355 = vadd.f32 0.0, %v354
        %356 = vmatmul.f32.gmra.mxu0 %v237
        %v357 = vpop.f32.mrf.mxu0
        %v358 = vadd.f32 0.0, %v357
        %359 = vmatmul.f32.gmra.mxu0 %v239
        %v360 = vpop.f32.mrf.mxu0
        %v361 = vadd.f32 0.0, %v360
        %362 = vmatmul.f32.gmra.mxu0 %v241
        %v363 = vpop.f32.mrf.mxu0
        %v364 = vadd.f32 0.0, %v363
        %365 = vmatmul.f32.gmra.mxu0 %v243
        %v366 = vpop.f32.mrf.mxu0
        %v367 = vadd.f32 0.0, %v366
        %368 = vmatmul.f32.gmra.mxu0 %v245
        %v369 = vpop.f32.mrf.mxu0
        %v370 = vadd.f32 0.0, %v369
        %371 = vmatmul.f32.gmra.mxu0 %v247
        %v372 = vpop.f32.mrf.mxu0
        %v373 = vadd.f32 0.0, %v372
        %374 = vmatmul.f32.gmra.mxu0 %v249
        %v375 = vpop.f32.mrf.mxu0
        %v376 = vadd.f32 0.0, %v375
        %377 = vmatmul.f32.gmra.mxu0 %v251
        %v378 = vpop.f32.mrf.mxu0
        %v379 = vadd.f32 0.0, %v378
        %380 = vmatmul.f32.gmra.mxu0 %v253
        %v381 = vpop.f32.mrf.mxu0
        %v382 = vadd.f32 0.0, %v381
        %383 = vmatmul.f32.gmra.mxu0 %v255
        %v384 = vpop.f32.mrf.mxu0
        %v385 = vadd.f32 0.0, %v384
        %386 = vmatmul.f32.gmra.mxu0 %v257
        %v387 = vpop.f32.mrf.mxu0
        %v388 = vadd.f32 0.0, %v387
        %389 = vmatmul.f32.gmra.mxu0 %v259
        %v390 = vpop.f32.mrf.mxu0
        %v391 = vadd.f32 0.0, %v390
        %392 = vmatmul.f32.gmra.mxu0 %v261
        %v393 = vpop.f32.mrf.mxu0
        %v394 = vadd.f32 0.0, %v393
        %395 = vmatmul.f32.gmra.mxu0 %v263
        %v396 = vpop.f32.mrf.mxu0
        %v397 = vadd.f32 0.0, %v396
        %398 = vmatmul.f32.gmra.mxu0 %v265
        %v399 = vpop.f32.mrf.mxu0
        %v400 = vadd.f32 0.0, %v399
        %401 = vmatmul.f32.gmra.mxu0 %v267
        %v402 = vpop.f32.mrf.mxu0
        %v403 = vadd.f32 0.0, %v402
        %404 = vmatmul.f32.gmra.mxu0 %v269
        %v405 = vpop.f32.mrf.mxu0
        %v406 = vadd.f32 0.0, %v405
        %407 = vmatmul.f32.gmra.mxu0 %v271
        %v408 = vpop.f32.mrf.mxu0
        %v409 = vadd.f32 0.0, %v408
        %410 = vmatmul.f32.gmra.mxu0 %v273
        %v411 = vpop.f32.mrf.mxu0
        %v412 = vadd.f32 0.0, %v411
        %413 = vmatmul.f32.gmra.mxu0 %v275
        %v414 = vpop.f32.mrf.mxu0
        %v415 = vadd.f32 0.0, %v414
        %416 = vmatmul.f32.gmra.mxu0 %v277
        %v417 = vpop.f32.mrf.mxu0
        %v418 = vadd.f32 0.0, %v417
        %419 = vmatmul.f32.gmra.mxu0 %v279
        %v420 = vpop.f32.mrf.mxu0
        %v421 = vadd.f32 0.0, %v420
        %422 = vmatmul.f32.gmra.mxu0 %v281
        %v423 = vpop.f32.mrf.mxu0
        %v424 = vadd.f32 0.0, %v423
        %425 = vmatmul.f32.gmra.mxu0 %v283
        %v426 = vpop.f32.mrf.mxu0
        %v427 = vadd.f32 0.0, %v426
        %428 = vmatmul.f32.gmra.mxu0 %v285
        %v429 = vpop.f32.mrf.mxu0
        %v430 = vadd.f32 0.0, %v429
        %431 = vdwg.mxu0
        %432 = vmatpush.msra.mxu0 %v318
        %433 = vmatpush.msra.mxu0 %v317
        %434 = vmatpush.msra.mxu0 %v316
        %435 = vmatpush.msra.mxu0 %v315
        %436 = vmatpush.msra.mxu0 %v314
        %437 = vmatpush.msra.mxu0 %v313
        %438 = vmatpush.msra.mxu0 %v312
        %439 = vmatpush.msra.mxu0 %v311
        %440 = vmatpush.msra.mxu0 %v310
        %441 = vmatpush.msra.mxu0 %v309
        %442 = vmatpush.msra.mxu0 %v308
        %443 = vmatpush.msra.mxu0 %v307
        %444 = vmatpush.msra.mxu0 %v306
        %445 = vmatpush.msra.mxu0 %v305
        %446 = vmatpush.msra.mxu0 %v304
        %447 = vmatpush.msra.mxu0 %v303
        %448 = vmatmul.f32.gmra.mxu0 %v224
        %v449 = vpop.f32.mrf.mxu0
        %v450 = vadd.f32 %v337, %v449
        %451 = vmatmul.f32.gmra.mxu0 %v226
        %v452 = vpop.f32.mrf.mxu0
        %v453 = vadd.f32 %v340, %v452
        %454 = vmatmul.f32.gmra.mxu0 %v228
        %v455 = vpop.f32.mrf.mxu0
        %v456 = vadd.f32 %v343, %v455
        %457 = vmatmul.f32.gmra.mxu0 %v230
        %v458 = vpop.f32.mrf.mxu0
        %v459 = vadd.f32 %v346, %v458
        %460 = vmatmul.f32.gmra.mxu0 %v232
        %v461 = vpop.f32.mrf.mxu0
        %v462 = vadd.f32 %v349, %v461
        %463 = vmatmul.f32.gmra.mxu0 %v234
        %v464 = vpop.f32.mrf.mxu0
        %v465 = vadd.f32 %v352, %v464
        %466 = vmatmul.f32.gmra.mxu0 %v236
        %v467 = vpop.f32.mrf.mxu0
        %v468 = vadd.f32 %v355, %v467
        %469 = vmatmul.f32.gmra.mxu0 %v238
        %v470 = vpop.f32.mrf.mxu0
        %v471 = vadd.f32 %v358, %v470
        %472 = vmatmul.f32.gmra.mxu0 %v240
        %v473 = vpop.f32.mrf.mxu0
        %v474 = vadd.f32 %v361, %v473
        %475 = vmatmul.f32.gmra.mxu0 %v242
        %v476 = vpop.f32.mrf.mxu0
        %v477 = vadd.f32 %v364, %v476
        %478 = vmatmul.f32.gmra.mxu0 %v244
        %v479 = vpop.f32.mrf.mxu0
        %v480 = vadd.f32 %v367, %v479
        %481 = vmatmul.f32.gmra.mxu0 %v246
        %v482 = vpop.f32.mrf.mxu0
        %v483 = vadd.f32 %v370, %v482
        %484 = vmatmul.f32.gmra.mxu0 %v248
        %v485 = vpop.f32.mrf.mxu0
        %v486 = vadd.f32 %v373, %v485
        %487 = vmatmul.f32.gmra.mxu0 %v250
        %v488 = vpop.f32.mrf.mxu0
        %v489 = vadd.f32 %v376, %v488
        %490 = vmatmul.f32.gmra.mxu0 %v252
        %v491 = vpop.f32.mrf.mxu0
        %v492 = vadd.f32 %v379, %v491
        %493 = vmatmul.f32.gmra.mxu0 %v254
        %v494 = vpop.f32.mrf.mxu0
        %v495 = vadd.f32 %v382, %v494
        %496 = vmatmul.f32.gmra.mxu0 %v256
        %v497 = vpop.f32.mrf.mxu0
        %v498 = vadd.f32 %v385, %v497
        %499 = vmatmul.f32.gmra.mxu0 %v258
        %v500 = vpop.f32.mrf.mxu0
        %v501 = vadd.f32 %v388, %v500
        %502 = vmatmul.f32.gmra.mxu0 %v260
        %v503 = vpop.f32.mrf.mxu0
        %v504 = vadd.f32 %v391, %v503
        %505 = vmatmul.f32.gmra.mxu0 %v262
        %v506 = vpop.f32.mrf.mxu0
        %v507 = vadd.f32 %v394, %v506
        %508 = vmatmul.f32.gmra.mxu0 %v264
        %v509 = vpop.f32.mrf.mxu0
        %v510 = vadd.f32 %v397, %v509
        %511 = vmatmul.f32.gmra.mxu0 %v266
        %v512 = vpop.f32.mrf.mxu0
        %v513 = vadd.f32 %v400, %v512
        %514 = vmatmul.f32.gmra.mxu0 %v268
        %v515 = vpop.f32.mrf.mxu0
        %v516 = vadd.f32 %v403, %v515
        %517 = vmatmul.f32.gmra.mxu0 %v270
        %v518 = vpop.f32.mrf.mxu0
        %v519 = vadd.f32 %v406, %v518
        %520 = vmatmul.f32.gmra.mxu0 %v272
        %v521 = vpop.f32.mrf.mxu0
        %v522 = vadd.f32 %v409, %v521
        %523 = vmatmul.f32.gmra.mxu0 %v274
        %v524 = vpop.f32.mrf.mxu0
        %v525 = vadd.f32 %v412, %v524
        %526 = vmatmul.f32.gmra.mxu0 %v276
        %v527 = vpop.f32.mrf.mxu0
        %v528 = vadd.f32 %v415, %v527
        %529 = vmatmul.f32.gmra.mxu0 %v278
        %v530 = vpop.f32.mrf.mxu0
        %v531 = vadd.f32 %v418, %v530
        %532 = vmatmul.f32.gmra.mxu0 %v280
        %v533 = vpop.f32.mrf.mxu0
        %v534 = vadd.f32 %v421, %v533
        %535 = vmatmul.f32.gmra.mxu0 %v282
        %v536 = vpop.f32.mrf.mxu0
        %v537 = vadd.f32 %v424, %v536
        %538 = vmatmul.f32.gmra.mxu0 %v284
        %v539 = vpop.f32.mrf.mxu0
        %v540 = vadd.f32 %v427, %v539
        %541 = vmatmul.f32.gmra.mxu0 %v286
        %v542 = vpop.f32.mrf.mxu0
        %v543 = vadd.f32 %v430, %v542
        %544 = vdwg.mxu0
        %v545 = vld [vmem:[%s2] sm:$0x1]
        %v547 = vperm.slane %v545, 0
        %v549 = vmul.f32 %v450, %v547
        %v550 = vmul.f32 %v453, %v547
        %v551 = vmul.f32 %v456, %v547
        %v552 = vmul.f32 %v459, %v547
        %v553 = vmul.f32 %v462, %v547
        %v554 = vmul.f32 %v465, %v547
        %v555 = vmul.f32 %v468, %v547
        %v556 = vmul.f32 %v471, %v547
        %v557 = vmul.f32 %v474, %v547
        %v558 = vmul.f32 %v477, %v547
        %v559 = vmul.f32 %v480, %v547
        %v560 = vmul.f32 %v483, %v547
        %v561 = vmul.f32 %v486, %v547
        %v562 = vmul.f32 %v489, %v547
        %v563 = vmul.f32 %v492, %v547
        %v564 = vmul.f32 %v495, %v547
        %v565 = vmul.f32 %v498, %v547
        %v566 = vmul.f32 %v501, %v547
        %v567 = vmul.f32 %v504, %v547
        %v568 = vmul.f32 %v507, %v547
        %v569 = vmul.f32 %v510, %v547
        %v570 = vmul.f32 %v513, %v547
        %v571 = vmul.f32 %v516, %v547
        %v572 = vmul.f32 %v519, %v547
        %v573 = vmul.f32 %v522, %v547
        %v574 = vmul.f32 %v525, %v547
        %v575 = vmul.f32 %v528, %v547
        %v576 = vmul.f32 %v531, %v547
        %v577 = vmul.f32 %v534, %v547
        %v578 = vmul.f32 %v537, %v547
        %v579 = vmul.f32 %v540, %v547
        %v580 = vmul.f32 %v543, %v547
        %v581 = vld [vmem:[%s3] sm:$0x1]
        %v583 = vperm.slane %v581, 0
        %v585 = vadd.f32 %v549, %v583
        %v586 = vadd.f32 %v550, %v583
        %v587 = vadd.f32 %v551, %v583
        %v588 = vadd.f32 %v552, %v583
        %v589 = vadd.f32 %v553, %v583
        %v590 = vadd.f32 %v554, %v583
        %v591 = vadd.f32 %v555, %v583
        %v592 = vadd.f32 %v556, %v583
        %v593 = vadd.f32 %v557, %v583
        %v594 = vadd.f32 %v558, %v583
        %v595 = vadd.f32 %v559, %v583
        %v596 = vadd.f32 %v560, %v583
        %v597 = vadd.f32 %v561, %v583
        %v598 = vadd.f32 %v562, %v583
        %v599 = vadd.f32 %v563, %v583
        %v600 = vadd.f32 %v564, %v583
        %v601 = vadd.f32 %v565, %v583
        %v602 = vadd.f32 %v566, %v583
        %v603 = vadd.f32 %v567, %v583
        %v604 = vadd.f32 %v568, %v583
        %v605 = vadd.f32 %v569, %v583
        %v606 = vadd.f32 %v570, %v583
        %v607 = vadd.f32 %v571, %v583
        %v608 = vadd.f32 %v572, %v583
        %v609 = vadd.f32 %v573, %v583
        %v610 = vadd.f32 %v574, %v583
        %v611 = vadd.f32 %v575, %v583
        %v612 = vadd.f32 %v576, %v583
        %v613 = vadd.f32 %v577, %v583
        %v614 = vadd.f32 %v578, %v583
        %v615 = vadd.f32 %v579, %v583
        %v616 = vadd.f32 %v580, %v583
        %v617 = vmax.f32 %v585, 0.0
        %v618 = vmax.f32 %v586, 0.0
        %v619 = vmax.f32 %v587, 0.0
        %v620 = vmax.f32 %v588, 0.0
        %v621 = vmax.f32 %v589, 0.0
        %v622 = vmax.f32 %v590, 0.0
        %v623 = vmax.f32 %v591, 0.0
        %v624 = vmax.f32 %v592, 0.0
        %v625 = vmax.f32 %v593, 0.0
        %v626 = vmax.f32 %v594, 0.0
        %v627 = vmax.f32 %v595, 0.0
        %v628 = vmax.f32 %v596, 0.0
        %v629 = vmax.f32 %v597, 0.0
        %v630 = vmax.f32 %v598, 0.0
        %v631 = vmax.f32 %v599, 0.0
        %v632 = vmax.f32 %v600, 0.0
        %v633 = vmax.f32 %v601, 0.0
        %v634 = vmax.f32 %v602, 0.0
        %v635 = vmax.f32 %v603, 0.0
        %v636 = vmax.f32 %v604, 0.0
        %v637 = vmax.f32 %v605, 0.0
        %v638 = vmax.f32 %v606, 0.0
        %v639 = vmax.f32 %v607, 0.0
        %v640 = vmax.f32 %v608, 0.0
        %v641 = vmax.f32 %v609, 0.0
        %v642 = vmax.f32 %v610, 0.0
        %v643 = vmax.f32 %v611, 0.0
        %v644 = vmax.f32 %v612, 0.0
        %v645 = vmax.f32 %v613, 0.0
        %v646 = vmax.f32 %v614, 0.0
        %v647 = vmax.f32 %v615, 0.0
        %v648 = vmax.f32 %v616, 0.0
        %vm649 = vcmask 523264
        %650 = vst.msk [vmem:[%s221] sm:$0xff] %vm649, %v617
        %651 = vst.msk [vmem:[%s221 + $0x8] sm:$0xff] %vm649, %v618
        %652 = vst.msk [vmem:[%s221 + $0x10] sm:$0xff] %vm649, %v619
        %653 = vst.msk [vmem:[%s221 + $0x18] sm:$0xff] %vm649, %v620
        %654 = vst.msk [vmem:[%s221 + $0x20] sm:$0xff] %vm649, %v621
        %655 = vst.msk [vmem:[%s221 + $0x28] sm:$0xff] %vm649, %v622
        %656 = vst.msk [vmem:[%s221 + $0x30] sm:$0xff] %vm649, %v623
        %657 = vst.msk [vmem:[%s221 + $0x38] sm:$0xff] %vm649, %v624
        %658 = vst.msk [vmem:[%s221 + $0x40] sm:$0xff] %vm649, %v625
        %659 = vst.msk [vmem:[%s221 + $0x48] sm:$0xff] %vm649, %v626
        %660 = vst.msk [vmem:[%s221 + $0x50] sm:$0xff] %vm649, %v627
        %661 = vst.msk [vmem:[%s221 + $0x58] sm:$0xff] %vm649, %v628
        %662 = vst.msk [vmem:[%s221 + $0x60] sm:$0xff] %vm649, %v629
        %663 = vst.msk [vmem:[%s221 + $0x68] sm:$0xff] %vm649, %v630
        %664 = vst.msk [vmem:[%s221 + $0x70] sm:$0xff] %vm649, %v631
        %665 = vst.msk [vmem:[%s221 + $0x78] sm:$0xff] %vm649, %v632
        %666 = vst.msk [vmem:[%s221 + $0x80] sm:$0xff] %vm649, %v633
        %667 = vst.msk [vmem:[%s221 + $0x88] sm:$0xff] %vm649, %v634
        %668 = vst.msk [vmem:[%s221 + $0x90] sm:$0xff] %vm649, %v635
        %669 = vst.msk [vmem:[%s221 + $0x98] sm:$0xff] %vm649, %v636
        %670 = vst.msk [vmem:[%s221 + $0xa0] sm:$0xff] %vm649, %v637
        %671 = vst.msk [vmem:[%s221 + $0xa8] sm:$0xff] %vm649, %v638
        %672 = vst.msk [vmem:[%s221 + $0xb0] sm:$0xff] %vm649, %v639
        %673 = vst.msk [vmem:[%s221 + $0xb8] sm:$0xff] %vm649, %v640
        %674 = vst.msk [vmem:[%s221 + $0xc0] sm:$0xff] %vm649, %v641
        %675 = vst.msk [vmem:[%s221 + $0xc8] sm:$0xff] %vm649, %v642
        %676 = vst.msk [vmem:[%s221 + $0xd0] sm:$0xff] %vm649, %v643
        %677 = vst.msk [vmem:[%s221 + $0xd8] sm:$0xff] %vm649, %v644
        %678 = vst.msk [vmem:[%s221 + $0xe0] sm:$0xff] %vm649, %v645
        %679 = vst.msk [vmem:[%s221 + $0xe8] sm:$0xff] %vm649, %v646
        %680 = vst.msk [vmem:[%s221 + $0xf0] sm:$0xff] %vm649, %v647
        %681 = vst.msk [vmem:[%s221 + $0xf8] sm:$0xff] %vm649, %v648
        %s682 = smul.u32 32, %s18
        %p683 = scmp.lt.s32.totalorder %s682, 63
        %s684 = scalar_select %p683, %s682, 63
        %s685 = smul.addr %s684, 8
        %s686 = scalar_lea.vmem %s4, %s685
        // Predicated region
        $region41: #{bottleneck_forward.3} parent=35 // pred_check
          %p687 = pneg %p125
        $region42: #{bottleneck_forward.3} parent=35 // pred_check_branch
          %689 = sbr.rel (%p687) target = $region44
        $region43: #{bottleneck_forward.3} parent=35 // pred_region
          %s690 = smul.u32 32, %s18
        $region44: #{bottleneck_forward.3} parent=35 // pred_fallthru
          _
      $region36: #{bottleneck_forward.3} parent=5 // pred_fallthru
        _
      %p691 = scmp.le.s32.totalorder 2, %s13
      // Predicated region
      $region45: #{bottleneck_forward.3} parent=5 // pred_check
        %p692 = pneg %p691
      $region46: #{bottleneck_forward.3} parent=5 // pred_check_branch
        %694 = sbr.rel (%p692) target = $region48
      $region47: #{bottleneck_forward.3} parent=5 // pred_region
        %s695 = ssub.s32 %s13, 2
        // Predicated region
        $region49: #{bottleneck_forward.3} parent=47 // pred_check
          %p696 = pneg %p131
        $region50: #{bottleneck_forward.3} parent=47 // pred_check_branch
          %698 = sbr.rel (%p696) target = $region52
        $region51: #{bottleneck_forward.3} parent=47 // pred_region
          %s699 = smul.u32 32, %s19
          %p700 = scmp.lt.s32.totalorder %s699, 63
          %s701 = scalar_select %p700, %s699, 63
          %s702 = smul.addr %s701, 8
          %s703 = scalar_lea.vmem %s4, %s702
        $region52: #{bottleneck_forward.3} parent=47 // pred_fallthru
          _
      $region48: #{bottleneck_forward.3} parent=5 // pred_fallthru
        _
    $region6: #{bottleneck_forward.3} parent=1 // loop_footer
      %s17 = sadd.s32 1, %s13
    $region7: #{bottleneck_forward.3} parent=1 // loop_footer_branch
      %12 = sbr.rel target = $region3
    $region8: #{bottleneck_forward.3} parent=1 // loop_exit
      _
    %704 = vsyncpa [#allocation3], 1
    %s705 = scalar_lea.sflag [#allocation3], 1
    %706 = vsyncpa %s705, 1

// kernel: bottleneck_forward.5
$region0: #{bottleneck_forward.5}
  #allocation0 [shape = 'u32[]', space=smem, size = 0x4, offset = 0x4, fixed_abs, tag = 'smem constant byte address 0x4 - core index']
  #allocation1 [shape = 'u32[72,128]{1,0:T(1,128)}', space=vmem, size = 0x9000, scoped, tag = 'internal scratch']
  %s0 = inlined_call_operand.vmem [shape: f32[512,64], index: 0, kind: input, shape index: {}]
  %s1 = inlined_call_operand.vmem [shape: f32[64,256], index: 1, kind: input, shape index: {}]
  %s2 = inlined_call_operand.vmem [shape: f32[1,256], index: 2, kind: input, shape index: {}]
  %s3 = inlined_call_operand.vmem [shape: f32[1,256], index: 3, kind: input, shape index: {}]
  %s4 = inlined_call_operand.vmem [shape: f32[512,256], index: 4, kind: input, shape index: {}]
  %s5 = inlined_call_operand.hbm [shape: f32[512,256], index: 5, kind: output, shape index: {}]
  %s6 = sld [smem:[#allocation0]]
  $region53: #{bottleneck_forward.5} parent=0
    _
  %s8 = ssub.s32 1, %s6
  %s9 = scalar_select 0, %s8, %s6
  $region1: #{bottleneck_forward.5} parent=0
    #allocation2 [shape = 'u8[524288]{0}', space=vmem, size = 0x80000, scoped, tag = 'output window, operand 0']
    #allocation3 [shape = 's32[2]{0}', space=sflag, size = 0x8, scoped, tag = 'scoped memory for bottleneck_forward.5']
    %10 = vsyncpa [#allocation3], 0
    %s11 = scalar_lea.sflag [#allocation3], 1
    %12 = vsyncpa %s11, 0
    loop: start=0, step=1, limit=4
    $region2: #{bottleneck_forward.5} parent=1 // loop_pre_header
      _
    $region3: #{bottleneck_forward.5} parent=1 // loop_header
      %s14 = sphi 0, %s18
      %p15 = scmp.ge.s32.totalorder %s14, 4
      %s24 = sphi 0, %s26
      %s27 = sphi 0, %s24
      %s28 = sphi 0, %s27
      %s44 = sphi 0, %s28
      %s48 = sphi 0, %s48
      %s50 = sphi 0, %s48
      %s51 = sphi 0, %s50
      %s65 = sphi 0, %s51
      %s69 = sphi 0, %s69
      %s71 = sphi 0, %s69
      %s72 = sphi 0, %s71
      %s86 = sphi 0, %s72
      %s90 = sphi 0, %s90
      %s92 = sphi 0, %s90
      %s93 = sphi 0, %s92
      %s107 = sphi 0, %s93
      %s113 = sphi 0, %s115
      %s116 = sphi 0, %s113
      %s117 = sphi 0, %s116
      %s133 = sphi 0, %s117
      %s139 = sphi 0, %s141
      %s142 = sphi 0, %s139
      %s143 = sphi 0, %s142
      %s159 = sphi 0, %s143
    $region4: #{bottleneck_forward.5} parent=1 // loop_header_branch
      %17 = sbr.rel (%p15) target = $region8
    $region5: #{bottleneck_forward.5} parent=1 // loop_body
      %s19 = ssub.s32 %s14, 1
      %s20 = ssub.s32 %s14, 2
      %s21 = sadd.s32 %s14, 1
      %s22 = ssub.s32 %s14, %s21
      %p23 = scmp.eq.s32.totalorder %s22, 0
      %s25 = sadd.s32 %s24, 1
      %s26 = scalar_select %p23, %s24, %s25
      %p29 = pneg %p23
      %p30 = scmp.eq.s32.totalorder %s14, 1
      %p31 = por %p29, %p30
      %p32 = scmp.ne.s32.totalorder %s24, %s27
      %p33 = scmp.eq.s32.totalorder %s14, 0
      %p34 = por %p32, %p33
      %p35 = scmp.ne.s32.totalorder %s24, %s27
      %p36 = scmp.eq.s32.totalorder %s19, 1
      %p37 = por %p35, %p36
      %p38 = scmp.ne.s32.totalorder %s27, %s28
      %p39 = scmp.eq.s32.totalorder %s19, 0
      %p40 = por %p38, %p39
      %p41 = scmp.ne.s32.totalorder %s27, %s28
      %p42 = scmp.eq.s32.totalorder %s20, 1
      %p43 = por %p41, %p42
      %p45 = scmp.ne.s32.totalorder %s28, %s44
      %p46 = scmp.eq.s32.totalorder %s20, 0
      %p47 = por %p45, %p46
      %s49 = sadd.s32 %s48, 1
      %p52 = scmp.eq.s32.totalorder %s14, 1
      %p53 = scmp.ne.s32.totalorder %s48, %s50
      %p54 = scmp.eq.s32.totalorder %s14, 0
      %p55 = por %p53, %p54
      %p56 = scmp.ne.s32.totalorder %s48, %s50
      %p57 = scmp.eq.s32.totalorder %s19, 1
      %p58 = por %p56, %p57
      %p59 = scmp.ne.s32.totalorder %s50, %s51
      %p60 = scmp.eq.s32.totalorder %s19, 0
      %p61 = por %p59, %p60
      %p62 = scmp.ne.s32.totalorder %s50, %s51
      %p63 = scmp.eq.s32.totalorder %s20, 1
      %p64 = por %p62, %p63
      %p66 = scmp.ne.s32.totalorder %s51, %s65
      %p67 = scmp.eq.s32.totalorder %s20, 0
      %p68 = por %p66, %p67
      %s70 = sadd.s32 %s69, 1
      %p73 = scmp.eq.s32.totalorder %s14, 1
      %p74 = scmp.ne.s32.totalorder %s69, %s71
      %p75 = scmp.eq.s32.totalorder %s14, 0
      %p76 = por %p74, %p75
      %p77 = scmp.ne.s32.totalorder %s69, %s71
      %p78 = scmp.eq.s32.totalorder %s19, 1
      %p79 = por %p77, %p78
      %p80 = scmp.ne.s32.totalorder %s71, %s72
      %p81 = scmp.eq.s32.totalorder %s19, 0
      %p82 = por %p80, %p81
      %p83 = scmp.ne.s32.totalorder %s71, %s72
      %p84 = scmp.eq.s32.totalorder %s20, 1
      %p85 = por %p83, %p84
      %p87 = scmp.ne.s32.totalorder %s72, %s86
      %p88 = scmp.eq.s32.totalorder %s20, 0
      %p89 = por %p87, %p88
      %s91 = sadd.s32 %s90, 1
      %p94 = scmp.eq.s32.totalorder %s14, 1
      %p95 = scmp.ne.s32.totalorder %s90, %s92
      %p96 = scmp.eq.s32.totalorder %s14, 0
      %p97 = por %p95, %p96
      %p98 = scmp.ne.s32.totalorder %s90, %s92
      %p99 = scmp.eq.s32.totalorder %s19, 1
      %p100 = por %p98, %p99
      %p101 = scmp.ne.s32.totalorder %s92, %s93
      %p102 = scmp.eq.s32.totalorder %s19, 0
      %p103 = por %p101, %p102
      %p104 = scmp.ne.s32.totalorder %s92, %s93
      %p105 = scmp.eq.s32.totalorder %s20, 1
      %p106 = por %p104, %p105
      %p108 = scmp.ne.s32.totalorder %s93, %s107
      %p109 = scmp.eq.s32.totalorder %s20, 0
      %p110 = por %p108, %p109
      %s111 = ssub.s32 %s14, %s21
      %p112 = scmp.eq.s32.totalorder %s111, 0
      %s114 = sadd.s32 %s113, 1
      %s115 = scalar_select %p112, %s113, %s114
      %p118 = pneg %p112
      %p119 = scmp.eq.s32.totalorder %s14, 1
      %p120 = por %p118, %p119
      %p121 = scmp.ne.s32.totalorder %s113, %s116
      %p122 = scmp.eq.s32.totalorder %s14, 0
      %p123 = por %p121, %p122
      %p124 = scmp.ne.s32.totalorder %s113, %s116
      %p125 = scmp.eq.s32.totalorder %s19, 1
      %p126 = por %p124, %p125
      %p127 = scmp.ne.s32.totalorder %s116, %s117
      %p128 = scmp.eq.s32.totalorder %s19, 0
      %p129 = por %p127, %p128
      %p130 = scmp.ne.s32.totalorder %s116, %s117
      %p131 = scmp.eq.s32.totalorder %s20, 1
      %p132 = por %p130, %p131
      %p134 = scmp.ne.s32.totalorder %s117, %s133
      %p135 = scmp.eq.s32.totalorder %s20, 0
      %p136 = por %p134, %p135
      %s137 = ssub.s32 %s14, %s21
      %p138 = scmp.eq.s32.totalorder %s137, 0
      %s140 = sadd.s32 %s139, 1
      %s141 = scalar_select %p138, %s139, %s140
      %p144 = pneg %p138
      %p145 = scmp.eq.s32.totalorder %s14, 1
      %p146 = por %p144, %p145
      %p147 = scmp.ne.s32.totalorder %s139, %s142
      %p148 = scmp.eq.s32.totalorder %s14, 0
      %p149 = por %p147, %p148
      %p150 = scmp.ne.s32.totalorder %s139, %s142
      %p151 = scmp.eq.s32.totalorder %s19, 1
      %p152 = por %p150, %p151
      %p153 = scmp.ne.s32.totalorder %s142, %s143
      %p154 = scmp.eq.s32.totalorder %s19, 0
      %p155 = por %p153, %p154
      %p156 = scmp.ne.s32.totalorder %s142, %s143
      %p157 = scmp.eq.s32.totalorder %s20, 1
      %p158 = por %p156, %p157
      %p160 = scmp.ne.s32.totalorder %s143, %s159
      %p161 = scmp.eq.s32.totalorder %s20, 0
      %p162 = por %p160, %p161
      %p163 = scmp.le.s32.totalorder 1, %s14
      %p164 = scmp.lt.s32.totalorder %s14, 3
      %p165 = pnand %p163, %p164
      %p166 = pneg %p165
      // Predicated region
      $region9: #{bottleneck_forward.5} parent=5 // pred_check
        _
      $region10: #{bottleneck_forward.5} parent=5 // pred_check_branch
        %168 = sbr.rel (%p165) target = $region12
      $region11: #{bottleneck_forward.5} parent=5 // pred_region
        %s169 = ssub.s32 %s14, 1
        // Predicated region
        $region13: #{bottleneck_forward.5} parent=11 // pred_check
          %p170 = pneg %p61
        $region14: #{bottleneck_forward.5} parent=11 // pred_check_branch
          %172 = sbr.rel (%p170) target = $region16
        $region15: #{bottleneck_forward.5} parent=11 // pred_region
          _
        $region16: #{bottleneck_forward.5} parent=11 // pred_fallthru
          _
        // Predicated region
        $region17: #{bottleneck_forward.5} parent=11 // pred_check
          %p173 = pneg %p82
        $region18: #{bottleneck_forward.5} parent=11 // pred_check_branch
          %175 = sbr.rel (%p173) target = $region20
        $region19: #{bottleneck_forward.5} parent=11 // pred_region
          _
        $region20: #{bottleneck_forward.5} parent=11 // pred_fallthru
          _
        // Predicated region
        $region21: #{bottleneck_forward.5} parent=11 // pred_check
          %p176 = pneg %p103
        $region22: #{bottleneck_forward.5} parent=11 // pred_check_branch
          %178 = sbr.rel (%p176) target = $region24
        $region23: #{bottleneck_forward.5} parent=11 // pred_region
          _
        $region24: #{bottleneck_forward.5} parent=11 // pred_fallthru
          _
      $region12: #{bottleneck_forward.5} parent=5 // pred_fallthru
        _
      %p179 = scmp.lt.s32.totalorder %s14, 2
      // Predicated region
      $region25: #{bottleneck_forward.5} parent=5 // pred_check
        %p180 = pneg %p179
      $region26: #{bottleneck_forward.5} parent=5 // pred_check_branch
        %182 = sbr.rel (%p180) target = $region28
      $region27: #{bottleneck_forward.5} parent=5 // pred_region
        // Predicated region
        $region29: #{bottleneck_forward.5} parent=27 // pred_check
          %p183 = pneg %p34
        $region30: #{bottleneck_forward.5} parent=27 // pred_check_branch
          %185 = sbr.rel (%p183) target = $region32
        $region31: #{bottleneck_forward.5} parent=27 // pred_region
          %s186 = smul.u32 32, %s14
          %p187 = scmp.lt.s32.totalorder %s186, 63
          %s188 = scalar_select %p187, %s186, 63
          %s189 = smul.addr %s188, 8
          %s190 = scalar_lea.vmem %s0, %s189
          %s191 = smul.u32 32, %s14
        $region32: #{bottleneck_forward.5} parent=27 // pred_fallthru
          _
        // Predicated region
        $region33: #{bottleneck_forward.5} parent=27 // pred_check
          %p192 = pneg %p123
        $region34: #{bottleneck_forward.5} parent=27 // pred_check_branch
          %194 = sbr.rel (%p192) target = $region36
        $region35: #{bottleneck_forward.5} parent=27 // pred_region
          %s195 = smul.u32 32, %s14
          %p196 = scmp.lt.s32.totalorder %s195, 63
          %s197 = scalar_select %p196, %s195, 63
          %s198 = smul.addr %s197, 2
          %s199 = smul.addr %s198, 8
          %s200 = scalar_lea.vmem %s4, %s199
          %s201 = smul.u32 32, %s14
        $region36: #{bottleneck_forward.5} parent=27 // pred_fallthru
          _
      $region28: #{bottleneck_forward.5} parent=5 // pred_fallthru
        _
      %p202 = scmp.le.s32.totalorder 1, %s14
      %p203 = scmp.lt.s32.totalorder %s14, 3
      %p204 = pnand %p202, %p203
      %p205 = pneg %p204
      // Predicated region
      $region37: #{bottleneck_forward.5} parent=5 // pred_check
        _
      $region38: #{bottleneck_forward.5} parent=5 // pred_check_branch
        %207 = sbr.rel (%p204) target = $region40
      $region39: #{bottleneck_forward.5} parent=5 // pred_region
        %s208 = ssub.s32 %s14, 1
        %s209 = smul.u32 32, %s19
        %p210 = scmp.lt.s32.totalorder %s209, 63
        %s211 = scalar_select %p210, %s209, 63
        %s212 = smul.addr %s211, 8
        %s213 = scalar_lea.vmem %s0, %s212
        %p214 = pneg %p40
        %p215 = pneg %p37
        %p216 = pneg %p61
        %p217 = pneg %p58
        %p218 = pneg %p82
        %p219 = pneg %p79
        %p220 = pneg %p103
        %p221 = pneg %p100
        %s222 = smul.u32 32, %s19
        %p223 = scmp.lt.s32.totalorder %s222, 63
        %s224 = scalar_select %p223, %s222, 63
        %s225 = smul.addr %s224, 2
        %s226 = smul.addr %s225, 8
        %s227 = scalar_lea.vmem %s4, %s226
        %p228 = pneg %p129
        %p229 = pneg %p126
        %p230 = pneg %p155
        %p231 = pneg %p152
        %s232 = sand.u32 %s142, 1
        %s233 = scalar_lea.sflag [#allocation3], %s232
        %s234 = sand.u32 %s142, 1
        %s235 = smul.addr %s234, 512
        %s236 = scalar_lea.vmem [#allocation2], %s235
        %s237 = smul.u32 32, %s19
        %p238 = scmp.lt.s32.totalorder %s237, 63
        %s239 = scalar_select %p238, %s237, 63
        %s240 = smul.addr %s239, 8
        %s241 = scalar_lea.vmem %s0, %s240
        %s242 = smul.u32 32, %s19
        %s243 = smul.u32 32, %s19
        %p244 = scmp.lt.s32.totalorder %s243, 63
        %s245 = scalar_select %p244, %s243, 63
        %s246 = smul.addr %s245, 2
        %s247 = smul.addr %s246, 8
        %s248 = scalar_lea.vmem %s4, %s247
        %s249 = smul.u32 32, %s19
        %s250 = smul.u32 32, %s19
        %v251 = vld [vmem:[%s241] sm:$0xff]
        %v252 = vld [vmem:[%s241 + $0x8] sm:$0xff]
        %v253 = vld [vmem:[%s241 + $0x10] sm:$0xff]
        %v254 = vld [vmem:[%s241 + $0x18] sm:$0xff]
        %v255 = vld [vmem:[%s241 + $0x20] sm:$0xff]
        %v256 = vld [vmem:[%s241 + $0x28] sm:$0xff]
        %v257 = vld [vmem:[%s241 + $0x30] sm:$0xff]
        %v258 = vld [vmem:[%s241 + $0x38] sm:$0xff]
        %v259 = vld [vmem:[%s241 + $0x40] sm:$0xff]
        %v260 = vld [vmem:[%s241 + $0x48] sm:$0xff]
        %v261 = vld [vmem:[%s241 + $0x50] sm:$0xff]
        %v262 = vld [vmem:[%s241 + $0x58] sm:$0xff]
        %v263 = vld [vmem:[%s241 + $0x60] sm:$0xff]
        %v264 = vld [vmem:[%s241 + $0x68] sm:$0xff]
        %v265 = vld [vmem:[%s241 + $0x70] sm:$0xff]
        %v266 = vld [vmem:[%s241 + $0x78] sm:$0xff]
        %v267 = vld [vmem:[%s241 + $0x80] sm:$0xff]
        %v268 = vld [vmem:[%s241 + $0x88] sm:$0xff]
        %v269 = vld [vmem:[%s241 + $0x90] sm:$0xff]
        %v270 = vld [vmem:[%s241 + $0x98] sm:$0xff]
        %v271 = vld [vmem:[%s241 + $0xa0] sm:$0xff]
        %v272 = vld [vmem:[%s241 + $0xa8] sm:$0xff]
        %v273 = vld [vmem:[%s241 + $0xb0] sm:$0xff]
        %v274 = vld [vmem:[%s241 + $0xb8] sm:$0xff]
        %v275 = vld [vmem:[%s241 + $0xc0] sm:$0xff]
        %v276 = vld [vmem:[%s241 + $0xc8] sm:$0xff]
        %v277 = vld [vmem:[%s241 + $0xd0] sm:$0xff]
        %v278 = vld [vmem:[%s241 + $0xd8] sm:$0xff]
        %v279 = vld [vmem:[%s241 + $0xe0] sm:$0xff]
        %v280 = vld [vmem:[%s241 + $0xe8] sm:$0xff]
        %v281 = vld [vmem:[%s241 + $0xf0] sm:$0xff]
        %v282 = vld [vmem:[%s241 + $0xf8] sm:$0xff]
        %v283 = vld [vmem:[%s1] sm:$0xff]
        %v284 = vld [vmem:[%s1 + $0x8] sm:$0xff]
        %v285 = vld [vmem:[%s1 + $0x10] sm:$0xff]
        %v286 = vld [vmem:[%s1 + $0x18] sm:$0xff]
        %v287 = vld [vmem:[%s1 + $0x20] sm:$0xff]
        %v288 = vld [vmem:[%s1 + $0x28] sm:$0xff]
        %v289 = vld [vmem:[%s1 + $0x30] sm:$0xff]
        %v290 = vld [vmem:[%s1 + $0x38] sm:$0xff]
        %v291 = vld [vmem:[%s1 + $0x40] sm:$0xff]
        %v292 = vld [vmem:[%s1 + $0x48] sm:$0xff]
        %v293 = vld [vmem:[%s1 + $0x50] sm:$0xff]
        %v294 = vld [vmem:[%s1 + $0x58] sm:$0xff]
        %v295 = vld [vmem:[%s1 + $0x60] sm:$0xff]
        %v296 = vld [vmem:[%s1 + $0x68] sm:$0xff]
        %v297 = vld [vmem:[%s1 + $0x70] sm:$0xff]
        %v298 = vld [vmem:[%s1 + $0x78] sm:$0xff]
        %vm299 = vcmask 523264
        %v301 = vsel %vm299, %v251, 0
        %v304 = vsel %vm299, %v252, 0
        %v307 = vsel %vm299, %v253, 0
        %v310 = vsel %vm299, %v254, 0
        %v313 = vsel %vm299, %v255, 0
        %v316 = vsel %vm299, %v256, 0
        %v319 = vsel %vm299, %v257, 0
        %v322 = vsel %vm299, %v258, 0
        %v325 = vsel %vm299, %v259, 0
        %v328 = vsel %vm299, %v260, 0
        %v331 = vsel %vm299, %v261, 0
        %v334 = vsel %vm299, %v262, 0
        %v337 = vsel %vm299, %v263, 0
        %v340 = vsel %vm299, %v264, 0
        %v343 = vsel %vm299, %v265, 0
        %v346 = vsel %vm299, %v266, 0
        %v349 = vsel %vm299, %v267, 0
        %v352 = vsel %vm299, %v268, 0
        %v355 = vsel %vm299, %v269, 0
        %v358 = vsel %vm299, %v270, 0
        %v361 = vsel %vm299, %v271, 0
        %v364 = vsel %vm299, %v272, 0
        %v367 = vsel %vm299, %v273, 0
        %v370 = vsel %vm299, %v274, 0
        %v373 = vsel %vm299, %v275, 0
        %v376 = vsel %vm299, %v276, 0
        %v379 = vsel %vm299, %v277, 0
        %v382 = vsel %vm299, %v278, 0
        %v385 = vsel %vm299, %v279, 0
        %v388 = vsel %vm299, %v280, 0
        %v391 = vsel %vm299, %v281, 0
        %v394 = vsel %vm299, %v282, 0
        %396 = vmatpush.msra.mxu0 0.0
        %397 = vmatpush.msra.mxu0 0.0
        %398 = vmatpush.msra.mxu0 0.0
        %399 = vmatpush.msra.mxu0 0.0
        %400 = vmatpush.msra.mxu0 0.0
        %401 = vmatpush.msra.mxu0 0.0
        %402 = vmatpush.msra.mxu0 0.0
        %403 = vmatpush.msra.mxu0 0.0
        %404 = vmatpush.msra.mxu0 %v297
        %405 = vmatpush.msra.mxu0 %v295
        %406 = vmatpush.msra.mxu0 %v293
        %407 = vmatpush.msra.mxu0 %v291
        %408 = vmatpush.msra.mxu0 %v289
        %409 = vmatpush.msra.mxu0 %v287
        %410 = vmatpush.msra.mxu0 %v285
        %411 = vmatpush.msra.mxu0 %v283
        %412 = vmatmul.f32.gmra.mxu0 %v301
        %v413 = vpop.f32.mrf.mxu0
        %v414 = vadd.f32 0.0, %v413
        %415 = vmatmul.f32.gmra.mxu0 %v304
        %v416 = vpop.f32.mrf.mxu0
        %v417 = vadd.f32 0.0, %v416
        %418 = vmatmul.f32.gmra.mxu0 %v307
        %v419 = vpop.f32.mrf.mxu0
        %v420 = vadd.f32 0.0, %v419
        %421 = vmatmul.f32.gmra.mxu0 %v310
        %v422 = vpop.f32.mrf.mxu0
        %v423 = vadd.f32 0.0, %v422
        %424 = vmatmul.f32.gmra.mxu0 %v313
        %v425 = vpop.f32.mrf.mxu0
        %v426 = vadd.f32 0.0, %v425
        %427 = vmatmul.f32.gmra.mxu0 %v316
        %v428 = vpop.f32.mrf.mxu0
        %v429 = vadd.f32 0.0, %v428
        %430 = vmatmul.f32.gmra.mxu0 %v319
        %v431 = vpop.f32.mrf.mxu0
        %v432 = vadd.f32 0.0, %v431
        %433 = vmatmul.f32.gmra.mxu0 %v322
        %v434 = vpop.f32.mrf.mxu0
        %v435 = vadd.f32 0.0, %v434
        %436 = vmatmul.f32.gmra.mxu0 %v325
        %v437 = vpop.f32.mrf.mxu0
        %v438 = vadd.f32 0.0, %v437
        %439 = vmatmul.f32.gmra.mxu0 %v328
        %v440 = vpop.f32.mrf.mxu0
        %v441 = vadd.f32 0.0, %v440
        %442 = vmatmul.f32.gmra.mxu0 %v331
        %v443 = vpop.f32.mrf.mxu0
        %v444 = vadd.f32 0.0, %v443
        %445 = vmatmul.f32.gmra.mxu0 %v334
        %v446 = vpop.f32.mrf.mxu0
        %v447 = vadd.f32 0.0, %v446
        %448 = vmatmul.f32.gmra.mxu0 %v337
        %v449 = vpop.f32.mrf.mxu0
        %v450 = vadd.f32 0.0, %v449
        %451 = vmatmul.f32.gmra.mxu0 %v340
        %v452 = vpop.f32.mrf.mxu0
        %v453 = vadd.f32 0.0, %v452
        %454 = vmatmul.f32.gmra.mxu0 %v343
        %v455 = vpop.f32.mrf.mxu0
        %v456 = vadd.f32 0.0, %v455
        %457 = vmatmul.f32.gmra.mxu0 %v346
        %v458 = vpop.f32.mrf.mxu0
        %v459 = vadd.f32 0.0, %v458
        %460 = vmatmul.f32.gmra.mxu0 %v349
        %v461 = vpop.f32.mrf.mxu0
        %v462 = vadd.f32 0.0, %v461
        %463 = vmatmul.f32.gmra.mxu0 %v352
        %v464 = vpop.f32.mrf.mxu0
        %v465 = vadd.f32 0.0, %v464
        %466 = vmatmul.f32.gmra.mxu0 %v355
        %v467 = vpop.f32.mrf.mxu0
        %v468 = vadd.f32 0.0, %v467
        %469 = vmatmul.f32.gmra.mxu0 %v358
        %v470 = vpop.f32.mrf.mxu0
        %v471 = vadd.f32 0.0, %v470
        %472 = vmatmul.f32.gmra.mxu0 %v361
        %v473 = vpop.f32.mrf.mxu0
        %v474 = vadd.f32 0.0, %v473
        %475 = vmatmul.f32.gmra.mxu0 %v364
        %v476 = vpop.f32.mrf.mxu0
        %v477 = vadd.f32 0.0, %v476
        %478 = vmatmul.f32.gmra.mxu0 %v367
        %v479 = vpop.f32.mrf.mxu0
        %v480 = vadd.f32 0.0, %v479
        %481 = vmatmul.f32.gmra.mxu0 %v370
        %v482 = vpop.f32.mrf.mxu0
        %v483 = vadd.f32 0.0, %v482
        %484 = vmatmul.f32.gmra.mxu0 %v373
        %v485 = vpop.f32.mrf.mxu0
        %v486 = vadd.f32 0.0, %v485
        %487 = vmatmul.f32.gmra.mxu0 %v376
        %v488 = vpop.f32.mrf.mxu0
        %v489 = vadd.f32 0.0, %v488
        %490 = vmatmul.f32.gmra.mxu0 %v379
        %v491 = vpop.f32.mrf.mxu0
        %v492 = vadd.f32 0.0, %v491
        %493 = vmatmul.f32.gmra.mxu0 %v382
        %v494 = vpop.f32.mrf.mxu0
        %v495 = vadd.f32 0.0, %v494
        %496 = vmatmul.f32.gmra.mxu0 %v385
        %v497 = vpop.f32.mrf.mxu0
        %v498 = vadd.f32 0.0, %v497
        %499 = vmatmul.f32.gmra.mxu0 %v388
        %v500 = vpop.f32.mrf.mxu0
        %v501 = vadd.f32 0.0, %v500
        %502 = vmatmul.f32.gmra.mxu0 %v391
        %v503 = vpop.f32.mrf.mxu0
        %v504 = vadd.f32 0.0, %v503
        %505 = vmatmul.f32.gmra.mxu0 %v394
        %v506 = vpop.f32.mrf.mxu0
        %v507 = vadd.f32 0.0, %v506
        %508 = vdwg.mxu0
        %509 = vmatpush.msra.mxu0 0.0
        %510 = vmatpush.msra.mxu0 0.0
        %511 = vmatpush.msra.mxu0 0.0
        %512 = vmatpush.msra.mxu0 0.0
        %513 = vmatpush.msra.mxu0 0.0
        %514 = vmatpush.msra.mxu0 0.0
        %515 = vmatpush.msra.mxu0 0.0
        %516 = vmatpush.msra.mxu0 0.0
        %517 = vmatpush.msra.mxu0 %v298
        %518 = vmatpush.msra.mxu0 %v296
        %519 = vmatpush.msra.mxu0 %v294
        %520 = vmatpush.msra.mxu0 %v292
        %521 = vmatpush.msra.mxu0 %v290
        %522 = vmatpush.msra.mxu0 %v288
        %523 = vmatpush.msra.mxu0 %v286
        %524 = vmatpush.msra.mxu0 %v284
        %525 = vmatmul.f32.gmra.mxu0 %v301
        %v526 = vpop.f32.mrf.mxu0
        %v527 = vadd.f32 0.0, %v526
        %528 = vmatmul.f32.gmra.mxu0 %v304
        %v529 = vpop.f32.mrf.mxu0
        %v530 = vadd.f32 0.0, %v529
        %531 = vmatmul.f32.gmra.mxu0 %v307
        %v532 = vpop.f32.mrf.mxu0
        %v533 = vadd.f32 0.0, %v532
        %534 = vmatmul.f32.gmra.mxu0 %v310
        %v535 = vpop.f32.mrf.mxu0
        %v536 = vadd.f32 0.0, %v535
        %537 = vmatmul.f32.gmra.mxu0 %v313
        %v538 = vpop.f32.mrf.mxu0
        %v539 = vadd.f32 0.0, %v538
        %540 = vmatmul.f32.gmra.mxu0 %v316
        %v541 = vpop.f32.mrf.mxu0
        %v542 = vadd.f32 0.0, %v541
        %543 = vmatmul.f32.gmra.mxu0 %v319
        %v544 = vpop.f32.mrf.mxu0
        %v545 = vadd.f32 0.0, %v544
        %546 = vmatmul.f32.gmra.mxu0 %v322
        %v547 = vpop.f32.mrf.mxu0
        %v548 = vadd.f32 0.0, %v547
        %549 = vmatmul.f32.gmra.mxu0 %v325
        %v550 = vpop.f32.mrf.mxu0
        %v551 = vadd.f32 0.0, %v550
        %552 = vmatmul.f32.gmra.mxu0 %v328
        %v553 = vpop.f32.mrf.mxu0
        %v554 = vadd.f32 0.0, %v553
        %555 = vmatmul.f32.gmra.mxu0 %v331
        %v556 = vpop.f32.mrf.mxu0
        %v557 = vadd.f32 0.0, %v556
        %558 = vmatmul.f32.gmra.mxu0 %v334
        %v559 = vpop.f32.mrf.mxu0
        %v560 = vadd.f32 0.0, %v559
        %561 = vmatmul.f32.gmra.mxu0 %v337
        %v562 = vpop.f32.mrf.mxu0
        %v563 = vadd.f32 0.0, %v562
        %564 = vmatmul.f32.gmra.mxu0 %v340
        %v565 = vpop.f32.mrf.mxu0
        %v566 = vadd.f32 0.0, %v565
        %567 = vmatmul.f32.gmra.mxu0 %v343
        %v568 = vpop.f32.mrf.mxu0
        %v569 = vadd.f32 0.0, %v568
        %570 = vmatmul.f32.gmra.mxu0 %v346
        %v571 = vpop.f32.mrf.mxu0
        %v572 = vadd.f32 0.0, %v571
        %573 = vmatmul.f32.gmra.mxu0 %v349
        %v574 = vpop.f32.mrf.mxu0
        %v575 = vadd.f32 0.0, %v574
        %576 = vmatmul.f32.gmra.mxu0 %v352
        %v577 = vpop.f32.mrf.mxu0
        %v578 = vadd.f32 0.0, %v577
        %579 = vmatmul.f32.gmra.mxu0 %v355
        %v580 = vpop.f32.mrf.mxu0
        %v581 = vadd.f32 0.0, %v580
        %582 = vmatmul.f32.gmra.mxu0 %v358
        %v583 = vpop.f32.mrf.mxu0
        %v584 = vadd.f32 0.0, %v583
        %585 = vmatmul.f32.gmra.mxu0 %v361
        %v586 = vpop.f32.mrf.mxu0
        %v587 = vadd.f32 0.0, %v586
        %588 = vmatmul.f32.gmra.mxu0 %v364
        %v589 = vpop.f32.mrf.mxu0
        %v590 = vadd.f32 0.0, %v589
        %591 = vmatmul.f32.gmra.mxu0 %v367
        %v592 = vpop.f32.mrf.mxu0
        %v593 = vadd.f32 0.0, %v592
        %594 = vmatmul.f32.gmra.mxu0 %v370
        %v595 = vpop.f32.mrf.mxu0
        %v596 = vadd.f32 0.0, %v595
        %597 = vmatmul.f32.gmra.mxu0 %v373
        %v598 = vpop.f32.mrf.mxu0
        %v599 = vadd.f32 0.0, %v598
        %600 = vmatmul.f32.gmra.mxu0 %v376
        %v601 = vpop.f32.mrf.mxu0
        %v602 = vadd.f32 0.0, %v601
        %603 = vmatmul.f32.gmra.mxu0 %v379
        %v604 = vpop.f32.mrf.mxu0
        %v605 = vadd.f32 0.0, %v604
        %606 = vmatmul.f32.gmra.mxu0 %v382
        %v607 = vpop.f32.mrf.mxu0
        %v608 = vadd.f32 0.0, %v607
        %609 = vmatmul.f32.gmra.mxu0 %v385
        %v610 = vpop.f32.mrf.mxu0
        %v611 = vadd.f32 0.0, %v610
        %612 = vmatmul.f32.gmra.mxu0 %v388
        %v613 = vpop.f32.mrf.mxu0
        %v614 = vadd.f32 0.0, %v613
        %615 = vmatmul.f32.gmra.mxu0 %v391
        %v616 = vpop.f32.mrf.mxu0
        %v617 = vadd.f32 0.0, %v616
        %618 = vmatmul.f32.gmra.mxu0 %v394
        %v619 = vpop.f32.mrf.mxu0
        %v620 = vadd.f32 0.0, %v619
        %621 = vdwg.mxu0
        %v622 = vld [vmem:[%s2] sm:$0x3]
        %v624 = vperm.slane %v622, 0
        %v625 = vperm.slane %v622, 1
        %v628 = vmul.f32 %v414, %v624
        %v629 = vmul.f32 %v527, %v625
        %v630 = vmul.f32 %v417, %v624
        %v631 = vmul.f32 %v530, %v625
        %v632 = vmul.f32 %v420, %v624
        %v633 = vmul.f32 %v533, %v625
        %v634 = vmul.f32 %v423, %v624
        %v635 = vmul.f32 %v536, %v625
        %v636 = vmul.f32 %v426, %v624
        %v637 = vmul.f32 %v539, %v625
        %v638 = vmul.f32 %v429, %v624
        %v639 = vmul.f32 %v542, %v625
        %v640 = vmul.f32 %v432, %v624
        %v641 = vmul.f32 %v545, %v625
        %v642 = vmul.f32 %v435, %v624
        %v643 = vmul.f32 %v548, %v625
        %v644 = vmul.f32 %v438, %v624
        %v645 = vmul.f32 %v551, %v625
        %v646 = vmul.f32 %v441, %v624
        %v647 = vmul.f32 %v554, %v625
        %v648 = vmul.f32 %v444, %v624
        %v649 = vmul.f32 %v557, %v625
        %v650 = vmul.f32 %v447, %v624
        %v651 = vmul.f32 %v560, %v625
        %v652 = vmul.f32 %v450, %v624
        %v653 = vmul.f32 %v563, %v625
        %v654 = vmul.f32 %v453, %v624
        %v655 = vmul.f32 %v566, %v625
        %v656 = vmul.f32 %v456, %v624
        %v657 = vmul.f32 %v569, %v625
        %v658 = vmul.f32 %v459, %v624
        %v659 = vmul.f32 %v572, %v625
        %v660 = vmul.f32 %v462, %v624
        %v661 = vmul.f32 %v575, %v625
        %v662 = vmul.f32 %v465, %v624
        %v663 = vmul.f32 %v578, %v625
        %v664 = vmul.f32 %v468, %v624
        %v665 = vmul.f32 %v581, %v625
        %v666 = vmul.f32 %v471, %v624
        %v667 = vmul.f32 %v584, %v625
        %v668 = vmul.f32 %v474, %v624
        %v669 = vmul.f32 %v587, %v625
        %v670 = vmul.f32 %v477, %v624
        %v671 = vmul.f32 %v590, %v625
        %v672 = vmul.f32 %v480, %v624
        %v673 = vmul.f32 %v593, %v625
        %v674 = vmul.f32 %v483, %v624
        %v675 = vmul.f32 %v596, %v625
        %v676 = vmul.f32 %v486, %v624
        %v677 = vmul.f32 %v599, %v625
        %v678 = vmul.f32 %v489, %v624
        %v679 = vmul.f32 %v602, %v625
        %v680 = vmul.f32 %v492, %v624
        %v681 = vmul.f32 %v605, %v625
        %v682 = vmul.f32 %v495, %v624
        %v683 = vmul.f32 %v608, %v625
        %v684 = vmul.f32 %v498, %v624
        %v685 = vmul.f32 %v611, %v625
        %v686 = vmul.f32 %v501, %v624
        %v687 = vmul.f32 %v614, %v625
        %v688 = vmul.f32 %v504, %v624
        %v689 = vmul.f32 %v617, %v625
        %v690 = vmul.f32 %v507, %v624
        %v691 = vmul.f32 %v620, %v625
        %v692 = vld [vmem:[%s3] sm:$0x3]
        %v694 = vperm.slane %v692, 0
        %v695 = vperm.slane %v692, 1
        %v698 = vadd.f32 %v628, %v694
        %v699 = vadd.f32 %v629, %v695
        %v700 = vadd.f32 %v630, %v694
        %v701 = vadd.f32 %v631, %v695
        %v702 = vadd.f32 %v632, %v694
        %v703 = vadd.f32 %v633, %v695
        %v704 = vadd.f32 %v634, %v694
        %v705 = vadd.f32 %v635, %v695
        %v706 = vadd.f32 %v636, %v694
        %v707 = vadd.f32 %v637, %v695
        %v708 = vadd.f32 %v638, %v694
        %v709 = vadd.f32 %v639, %v695
        %v710 = vadd.f32 %v640, %v694
        %v711 = vadd.f32 %v641, %v695
        %v712 = vadd.f32 %v642, %v694
        %v713 = vadd.f32 %v643, %v695
        %v714 = vadd.f32 %v644, %v694
        %v715 = vadd.f32 %v645, %v695
        %v716 = vadd.f32 %v646, %v694
        %v717 = vadd.f32 %v647, %v695
        %v718 = vadd.f32 %v648, %v694
        %v719 = vadd.f32 %v649, %v695
        %v720 = vadd.f32 %v650, %v694
        %v721 = vadd.f32 %v651, %v695
        %v722 = vadd.f32 %v652, %v694
        %v723 = vadd.f32 %v653, %v695
        %v724 = vadd.f32 %v654, %v694
        %v725 = vadd.f32 %v655, %v695
        %v726 = vadd.f32 %v656, %v694
        %v727 = vadd.f32 %v657, %v695
        %v728 = vadd.f32 %v658, %v694
        %v729 = vadd.f32 %v659, %v695
        %v730 = vadd.f32 %v660, %v694
        %v731 = vadd.f32 %v661, %v695
        %v732 = vadd.f32 %v662, %v694
        %v733 = vadd.f32 %v663, %v695
        %v734 = vadd.f32 %v664, %v694
        %v735 = vadd.f32 %v665, %v695
        %v736 = vadd.f32 %v666, %v694
        %v737 = vadd.f32 %v667, %v695
        %v738 = vadd.f32 %v668, %v694
        %v739 = vadd.f32 %v669, %v695
        %v740 = vadd.f32 %v670, %v694
        %v741 = vadd.f32 %v671, %v695
        %v742 = vadd.f32 %v672, %v694
        %v743 = vadd.f32 %v673, %v695
        %v744 = vadd.f32 %v674, %v694
        %v745 = vadd.f32 %v675, %v695
        %v746 = vadd.f32 %v676, %v694
        %v747 = vadd.f32 %v677, %v695
        %v748 = vadd.f32 %v678, %v694
        %v749 = vadd.f32 %v679, %v695
        %v750 = vadd.f32 %v680, %v694
        %v751 = vadd.f32 %v681, %v695
        %v752 = vadd.f32 %v682, %v694
        %v753 = vadd.f32 %v683, %v695
        %v754 = vadd.f32 %v684, %v694
        %v755 = vadd.f32 %v685, %v695
        %v756 = vadd.f32 %v686, %v694
        %v757 = vadd.f32 %v687, %v695
        %v758 = vadd.f32 %v688, %v694
        %v759 = vadd.f32 %v689, %v695
        %v760 = vadd.f32 %v690, %v694
        %v761 = vadd.f32 %v691, %v695
        %v762 = vld [vmem:[%s248] sm:$0xff]
        %v763 = vld [vmem:[%s248 + $0x8] sm:$0xff]
        %v764 = vld [vmem:[%s248 + $0x10] sm:$0xff]
        %v765 = vld [vmem:[%s248 + $0x18] sm:$0xff]
        %v766 = vld [vmem:[%s248 + $0x20] sm:$0xff]
        %v767 = vld [vmem:[%s248 + $0x28] sm:$0xff]
        %v768 = vld [vmem:[%s248 + $0x30] sm:$0xff]
        %v769 = vld [vmem:[%s248 + $0x38] sm:$0xff]
        %v770 = vld [vmem:[%s248 + $0x40] sm:$0xff]
        %v771 = vld [vmem:[%s248 + $0x48] sm:$0xff]
        %v772 = vld [vmem:[%s248 + $0x50] sm:$0xff]
        %v773 = vld [vmem:[%s248 + $0x58] sm:$0xff]
        %v774 = vld [vmem:[%s248 + $0x60] sm:$0xff]
        %v775 = vld [vmem:[%s248 + $0x68] sm:$0xff]
        %v776 = vld [vmem:[%s248 + $0x70] sm:$0xff]
        %v777 = vld [vmem:[%s248 + $0x78] sm:$0xff]
        %v778 = vld [vmem:[%s248 + $0x80] sm:$0xff]
        %v779 = vld [vmem:[%s248 + $0x88] sm:$0xff]
        %v780 = vld [vmem:[%s248 + $0x90] sm:$0xff]
        %v781 = vld [vmem:[%s248 + $0x98] sm:$0xff]
        %v782 = vld [vmem:[%s248 + $0xa0] sm:$0xff]
        %v783 = vld [vmem:[%s248 + $0xa8] sm:$0xff]
        %v784 = vld [vmem:[%s248 + $0xb0] sm:$0xff]
        %v785 = vld [vmem:[%s248 + $0xb8] sm:$0xff]
        %v786 = vld [vmem:[%s248 + $0xc0] sm:$0xff]
        %v787 = vld [vmem:[%s248 + $0xc8] sm:$0xff]
        %v788 = vld [vmem:[%s248 + $0xd0] sm:$0xff]
        %v789 = vld [vmem:[%s248 + $0xd8] sm:$0xff]
        %v790 = vld [vmem:[%s248 + $0xe0] sm:$0xff]
        %v791 = vld [vmem:[%s248 + $0xe8] sm:$0xff]
        %v792 = vld [vmem:[%s248 + $0xf0] sm:$0xff]
        %v793 = vld [vmem:[%s248 + $0xf8] sm:$0xff]
        %v794 = vld [vmem:[%s248 + $0x100] sm:$0xff]
        %v795 = vld [vmem:[%s248 + $0x108] sm:$0xff]
        %v796 = vld [vmem:[%s248 + $0x110] sm:$0xff]
        %v797 = vld [vmem:[%s248 + $0x118] sm:$0xff]
        %v798 = vld [vmem:[%s248 + $0x120] sm:$0xff]
        %v799 = vld [vmem:[%s248 + $0x128] sm:$0xff]
        %v800 = vld [vmem:[%s248 + $0x130] sm:$0xff]
        %v801 = vld [vmem:[%s248 + $0x138] sm:$0xff]
        %v802 = vld [vmem:[%s248 + $0x140] sm:$0xff]
        %v803 = vld [vmem:[%s248 + $0x148] sm:$0xff]
        %v804 = vld [vmem:[%s248 + $0x150] sm:$0xff]
        %v805 = vld [vmem:[%s248 + $0x158] sm:$0xff]
        %v806 = vld [vmem:[%s248 + $0x160] sm:$0xff]
        %v807 = vld [vmem:[%s248 + $0x168] sm:$0xff]
        %v808 = vld [vmem:[%s248 + $0x170] sm:$0xff]
        %v809 = vld [vmem:[%s248 + $0x178] sm:$0xff]
        %v810 = vld [vmem:[%s248 + $0x180] sm:$0xff]
        %v811 = vld [vmem:[%s248 + $0x188] sm:$0xff]
        %v812 = vld [vmem:[%s248 + $0x190] sm:$0xff]
        %v813 = vld [vmem:[%s248 + $0x198] sm:$0xff]
        %v814 = vld [vmem:[%s248 + $0x1a0] sm:$0xff]
        %v815 = vld [vmem:[%s248 + $0x1a8] sm:$0xff]
        %v816 = vld [vmem:[%s248 + $0x1b0] sm:$0xff]
        %v817 = vld [vmem:[%s248 + $0x1b8] sm:$0xff]
        %v818 = vld [vmem:[%s248 + $0x1c0] sm:$0xff]
        %v819 = vld [vmem:[%s248 + $0x1c8] sm:$0xff]
        %v820 = vld [vmem:[%s248 + $0x1d0] sm:$0xff]
        %v821 = vld [vmem:[%s248 + $0x1d8] sm:$0xff]
        %v822 = vld [vmem:[%s248 + $0x1e0] sm:$0xff]
        %v823 = vld [vmem:[%s248 + $0x1e8] sm:$0xff]
        %v824 = vld [vmem:[%s248 + $0x1f0] sm:$0xff]
        %v825 = vld [vmem:[%s248 + $0x1f8] sm:$0xff]
        %v826 = vadd.f32 %v698, %v762
        %v827 = vadd.f32 %v699, %v763
        %v828 = vadd.f32 %v700, %v764
        %v829 = vadd.f32 %v701, %v765
        %v830 = vadd.f32 %v702, %v766
        %v831 = vadd.f32 %v703, %v767
        %v832 = vadd.f32 %v704, %v768
        %v833 = vadd.f32 %v705, %v769
        %v834 = vadd.f32 %v706, %v770
        %v835 = vadd.f32 %v707, %v771
        %v836 = vadd.f32 %v708, %v772
        %v837 = vadd.f32 %v709, %v773
        %v838 = vadd.f32 %v710, %v774
        %v839 = vadd.f32 %v711, %v775
        %v840 = vadd.f32 %v712, %v776
        %v841 = vadd.f32 %v713, %v777
        %v842 = vadd.f32 %v714, %v778
        %v843 = vadd.f32 %v715, %v779
        %v844 = vadd.f32 %v716, %v780
        %v845 = vadd.f32 %v717, %v781
        %v846 = vadd.f32 %v718, %v782
        %v847 = vadd.f32 %v719, %v783
        %v848 = vadd.f32 %v720, %v784
        %v849 = vadd.f32 %v721, %v785
        %v850 = vadd.f32 %v722, %v786
        %v851 = vadd.f32 %v723, %v787
        %v852 = vadd.f32 %v724, %v788
        %v853 = vadd.f32 %v725, %v789
        %v854 = vadd.f32 %v726, %v790
        %v855 = vadd.f32 %v727, %v791
        %v856 = vadd.f32 %v728, %v792
        %v857 = vadd.f32 %v729, %v793
        %v858 = vadd.f32 %v730, %v794
        %v859 = vadd.f32 %v731, %v795
        %v860 = vadd.f32 %v732, %v796
        %v861 = vadd.f32 %v733, %v797
        %v862 = vadd.f32 %v734, %v798
        %v863 = vadd.f32 %v735, %v799
        %v864 = vadd.f32 %v736, %v800
        %v865 = vadd.f32 %v737, %v801
        %v866 = vadd.f32 %v738, %v802
        %v867 = vadd.f32 %v739, %v803
        %v868 = vadd.f32 %v740, %v804
        %v869 = vadd.f32 %v741, %v805
        %v870 = vadd.f32 %v742, %v806
        %v871 = vadd.f32 %v743, %v807
        %v872 = vadd.f32 %v744, %v808
        %v873 = vadd.f32 %v745, %v809
        %v874 = vadd.f32 %v746, %v810
        %v875 = vadd.f32 %v747, %v811
        %v876 = vadd.f32 %v748, %v812
        %v877 = vadd.f32 %v749, %v813
        %v878 = vadd.f32 %v750, %v814
        %v879 = vadd.f32 %v751, %v815
        %v880 = vadd.f32 %v752, %v816
        %v881 = vadd.f32 %v753, %v817
        %v882 = vadd.f32 %v754, %v818
        %v883 = vadd.f32 %v755, %v819
        %v884 = vadd.f32 %v756, %v820
        %v885 = vadd.f32 %v757, %v821
        %v886 = vadd.f32 %v758, %v822
        %v887 = vadd.f32 %v759, %v823
        %v888 = vadd.f32 %v760, %v824
        %v889 = vadd.f32 %v761, %v825
        %v890 = vmax.f32 %v826, 0.0
        %v891 = vmax.f32 %v827, 0.0
        %v892 = vmax.f32 %v828, 0.0
        %v893 = vmax.f32 %v829, 0.0
        %v894 = vmax.f32 %v830, 0.0
        %v895 = vmax.f32 %v831, 0.0
        %v896 = vmax.f32 %v832, 0.0
        %v897 = vmax.f32 %v833, 0.0
        %v898 = vmax.f32 %v834, 0.0
        %v899 = vmax.f32 %v835, 0.0
        %v900 = vmax.f32 %v836, 0.0
        %v901 = vmax.f32 %v837, 0.0
        %v902 = vmax.f32 %v838, 0.0
        %v903 = vmax.f32 %v839, 0.0
        %v904 = vmax.f32 %v840, 0.0
        %v905 = vmax.f32 %v841, 0.0
        %v906 = vmax.f32 %v842, 0.0
        %v907 = vmax.f32 %v843, 0.0
        %v908 = vmax.f32 %v844, 0.0
        %v909 = vmax.f32 %v845, 0.0
        %v910 = vmax.f32 %v846, 0.0
        %v911 = vmax.f32 %v847, 0.0
        %v912 = vmax.f32 %v848, 0.0
        %v913 = vmax.f32 %v849, 0.0
        %v914 = vmax.f32 %v850, 0.0
        %v915 = vmax.f32 %v851, 0.0
        %v916 = vmax.f32 %v852, 0.0
        %v917 = vmax.f32 %v853, 0.0
        %v918 = vmax.f32 %v854, 0.0
        %v919 = vmax.f32 %v855, 0.0
        %v920 = vmax.f32 %v856, 0.0
        %v921 = vmax.f32 %v857, 0.0
        %v922 = vmax.f32 %v858, 0.0
        %v923 = vmax.f32 %v859, 0.0
        %v924 = vmax.f32 %v860, 0.0
        %v925 = vmax.f32 %v861, 0.0
        %v926 = vmax.f32 %v862, 0.0
        %v927 = vmax.f32 %v863, 0.0
        %v928 = vmax.f32 %v864, 0.0
        %v929 = vmax.f32 %v865, 0.0
        %v930 = vmax.f32 %v866, 0.0
        %v931 = vmax.f32 %v867, 0.0
        %v932 = vmax.f32 %v868, 0.0
        %v933 = vmax.f32 %v869, 0.0
        %v934 = vmax.f32 %v870, 0.0
        %v935 = vmax.f32 %v871, 0.0
        %v936 = vmax.f32 %v872, 0.0
        %v937 = vmax.f32 %v873, 0.0
        %v938 = vmax.f32 %v874, 0.0
        %v939 = vmax.f32 %v875, 0.0
        %v940 = vmax.f32 %v876, 0.0
        %v941 = vmax.f32 %v877, 0.0
        %v942 = vmax.f32 %v878, 0.0
        %v943 = vmax.f32 %v879, 0.0
        %v944 = vmax.f32 %v880, 0.0
        %v945 = vmax.f32 %v881, 0.0
        %v946 = vmax.f32 %v882, 0.0
        %v947 = vmax.f32 %v883, 0.0
        %v948 = vmax.f32 %v884, 0.0
        %v949 = vmax.f32 %v885, 0.0
        %v950 = vmax.f32 %v886, 0.0
        %v951 = vmax.f32 %v887, 0.0
        %v952 = vmax.f32 %v888, 0.0
        %v953 = vmax.f32 %v889, 0.0
        %954 = vst [vmem:[%s236] sm:$0xff] %v890
        %955 = vst [vmem:[%s236 + $0x8] sm:$0xff] %v891
        %956 = vst [vmem:[%s236 + $0x10] sm:$0xff] %v892
        %957 = vst [vmem:[%s236 + $0x18] sm:$0xff] %v893
        %958 = vst [vmem:[%s236 + $0x20] sm:$0xff] %v894
        %959 = vst [vmem:[%s236 + $0x28] sm:$0xff] %v895
        %960 = vst [vmem:[%s236 + $0x30] sm:$0xff] %v896
        %961 = vst [vmem:[%s236 + $0x38] sm:$0xff] %v897
        %962 = vst [vmem:[%s236 + $0x40] sm:$0xff] %v898
        %963 = vst [vmem:[%s236 + $0x48] sm:$0xff] %v899
        %964 = vst [vmem:[%s236 + $0x50] sm:$0xff] %v900
        %965 = vst [vmem:[%s236 + $0x58] sm:$0xff] %v901
        %966 = vst [vmem:[%s236 + $0x60] sm:$0xff] %v902
        %967 = vst [vmem:[%s236 + $0x68] sm:$0xff] %v903
        %968 = vst [vmem:[%s236 + $0x70] sm:$0xff] %v904
        %969 = vst [vmem:[%s236 + $0x78] sm:$0xff] %v905
        %970 = vst [vmem:[%s236 + $0x80] sm:$0xff] %v906
        %971 = vst [vmem:[%s236 + $0x88] sm:$0xff] %v907
        %972 = vst [vmem:[%s236 + $0x90] sm:$0xff] %v908
        %973 = vst [vmem:[%s236 + $0x98] sm:$0xff] %v909
        %974 = vst [vmem:[%s236 + $0xa0] sm:$0xff] %v910
        %975 = vst [vmem:[%s236 + $0xa8] sm:$0xff] %v911
        %976 = vst [vmem:[%s236 + $0xb0] sm:$0xff] %v912
        %977 = vst [vmem:[%s236 + $0xb8] sm:$0xff] %v913
        %978 = vst [vmem:[%s236 + $0xc0] sm:$0xff] %v914
        %979 = vst [vmem:[%s236 + $0xc8] sm:$0xff] %v915
        %980 = vst [vmem:[%s236 + $0xd0] sm:$0xff] %v916
        %981 = vst [vmem:[%s236 + $0xd8] sm:$0xff] %v917
        %982 = vst [vmem:[%s236 + $0xe0] sm:$0xff] %v918
        %983 = vst [vmem:[%s236 + $0xe8] sm:$0xff] %v919
        %984 = vst [vmem:[%s236 + $0xf0] sm:$0xff] %v920
        %985 = vst [vmem:[%s236 + $0xf8] sm:$0xff] %v921
        %986 = vst [vmem:[%s236 + $0x100] sm:$0xff] %v922
        %987 = vst [vmem:[%s236 + $0x108] sm:$0xff] %v923
        %988 = vst [vmem:[%s236 + $0x110] sm:$0xff] %v924
        %989 = vst [vmem:[%s236 + $0x118] sm:$0xff] %v925
        %990 = vst [vmem:[%s236 + $0x120] sm:$0xff] %v926
        %991 = vst [vmem:[%s236 + $0x128] sm:$0xff] %v927
        %992 = vst [vmem:[%s236 + $0x130] sm:$0xff] %v928
        %993 = vst [vmem:[%s236 + $0x138] sm:$0xff] %v929
        %994 = vst [vmem:[%s236 + $0x140] sm:$0xff] %v930
        %995 = vst [vmem:[%s236 + $0x148] sm:$0xff] %v931
        %996 = vst [vmem:[%s236 + $0x150] sm:$0xff] %v932
        %997 = vst [vmem:[%s236 + $0x158] sm:$0xff] %v933
        %998 = vst [vmem:[%s236 + $0x160] sm:$0xff] %v934
        %999 = vst [vmem:[%s236 + $0x168] sm:$0xff] %v935
        %1000 = vst [vmem:[%s236 + $0x170] sm:$0xff] %v936
        %1001 = vst [vmem:[%s236 + $0x178] sm:$0xff] %v937
        %1002 = vst [vmem:[%s236 + $0x180] sm:$0xff] %v938
        %1003 = vst [vmem:[%s236 + $0x188] sm:$0xff] %v939
        %1004 = vst [vmem:[%s236 + $0x190] sm:$0xff] %v940
        %1005 = vst [vmem:[%s236 + $0x198] sm:$0xff] %v941
        %1006 = vst [vmem:[%s236 + $0x1a0] sm:$0xff] %v942
        %1007 = vst [vmem:[%s236 + $0x1a8] sm:$0xff] %v943
        %1008 = vst [vmem:[%s236 + $0x1b0] sm:$0xff] %v944
        %1009 = vst [vmem:[%s236 + $0x1b8] sm:$0xff] %v945
        %1010 = vst [vmem:[%s236 + $0x1c0] sm:$0xff] %v946
        %1011 = vst [vmem:[%s236 + $0x1c8] sm:$0xff] %v947
        %1012 = vst [vmem:[%s236 + $0x1d0] sm:$0xff] %v948
        %1013 = vst [vmem:[%s236 + $0x1d8] sm:$0xff] %v949
        %1014 = vst [vmem:[%s236 + $0x1e0] sm:$0xff] %v950
        %1015 = vst [vmem:[%s236 + $0x1e8] sm:$0xff] %v951
        %1016 = vst [vmem:[%s236 + $0x1f0] sm:$0xff] %v952
        %1017 = vst [vmem:[%s236 + $0x1f8] sm:$0xff] %v953
        %s1018 = sand.u32 %s142, 1
        %s1019 = scalar_lea.sflag [#allocation3], %s1018
        %s1020 = sand.u32 %s142, 1
        %s1021 = smul.addr %s1020, 512
        %s1022 = scalar_lea.vmem [#allocation2], %s1021
        // Predicated region
        $region41: #{bottleneck_forward.5} parent=39 // pred_check
          %p1023 = pneg %p152
        $region42: #{bottleneck_forward.5} parent=39 // pred_check_branch
          %1025 = sbr.rel (%p1023) target = $region44
        $region43: #{bottleneck_forward.5} parent=39 // pred_region
          %s1026 = smul.u32 32, %s19
          %1028 = vsyncadd %s1019, 0
          %s1029 = smul.addr %s1026, 2
          %s1030 = smul.addr %s1029, 8
          %s1031 = scalar_lea.hbm %s5, %s1030
          %s1032 = sshll.u32 %s1022, 4
          %s1033 = int_to_ptr.vmem [resolvable:$true] %s1032
          %s1034 = sshll.u32 %s1031, 4
          %s1035 = int_to_ptr.hbm [resolvable:$true] %s1034
          %1040 = dma.vmem_to_hbm [thread:$0]  %s1033, 8192, %s1035, %s1019, 256, 256, 16
        $region44: #{bottleneck_forward.5} parent=39 // pred_fallthru
          _
      $region40: #{bottleneck_forward.5} parent=5 // pred_fallthru
        _
      %p1041 = scmp.le.s32.totalorder 2, %s14
      // Predicated region
      $region45: #{bottleneck_forward.5} parent=5 // pred_check
        %p1042 = pneg %p1041
      $region46: #{bottleneck_forward.5} parent=5 // pred_check_branch
        %1044 = sbr.rel (%p1042) target = $region48
      $region47: #{bottleneck_forward.5} parent=5 // pred_region
        %s1045 = ssub.s32 %s14, 2
        // Predicated region
        $region49: #{bottleneck_forward.5} parent=47 // pred_check
          %p1046 = pneg %p158
        $region50: #{bottleneck_forward.5} parent=47 // pred_check_branch
          %1048 = sbr.rel (%p1046) target = $region52
        $region51: #{bottleneck_forward.5} parent=47 // pred_region
          %s1049 = sand.u32 %s143, 1
          %s1050 = scalar_lea.sflag [#allocation3], %s1049
          %s1051 = sand.u32 %s143, 1
          %s1052 = smul.addr %s1051, 512
          %s1053 = scalar_lea.vmem [#allocation2], %s1052
          %1055 = dma.done %s1050, 8192
        $region52: #{bottleneck_forward.5} parent=47 // pred_fallthru
          _
      $region48: #{bottleneck_forward.5} parent=5 // pred_fallthru
        _
    $region6: #{bottleneck_forward.5} parent=1 // loop_footer
      %s18 = sadd.s32 1, %s14
    $region7: #{bottleneck_forward.5} parent=1 // loop_footer_branch
      %13 = sbr.rel target = $region3
    $region8: #{bottleneck_forward.5} parent=1 // loop_exit
      _
    %1056 = vsyncpa [#allocation3], 1
    %s1057 = scalar_lea.sflag [#allocation3], 1
    %1058 = vsyncpa %s1057, 1

// kernel: bottleneck_forward.4
$region0: #{bottleneck_forward.4}
  #allocation0 [shape = 'u32[]', space=smem, size = 0x4, offset = 0x4, fixed_abs, tag = 'smem constant byte address 0x4 - core index']
  #allocation1 [shape = 'u32[72,128]{1,0:T(1,128)}', space=vmem, size = 0x9000, scoped, tag = 'internal scratch']
  %s0 = inlined_call_operand.vmem [shape: f32[2,18,18,64], index: 0, kind: input, shape index: {}]
  %s1 = inlined_call_operand.vmem [shape: f32[3,3,64,64], index: 1, kind: input, shape index: {}]
  %s2 = inlined_call_operand.vmem [shape: f32[1,64], index: 2, kind: input, shape index: {}]
  %s3 = inlined_call_operand.vmem [shape: f32[1,64], index: 3, kind: input, shape index: {}]
  %s4 = inlined_call_operand.vmem [shape: f32[2,16,16,64], index: 4, kind: output, shape index: {}]
  %s5 = sld [smem:[#allocation0]]
  $region49: #{bottleneck_forward.4} parent=0
    _
  %s7 = ssub.s32 1, %s5
  %s8 = scalar_select 0, %s7, %s5
  loop: start=0, step=1, limit=4
  $region2: #{bottleneck_forward.4} parent=0 // loop_pre_header
    _
  $region3: #{bottleneck_forward.4} parent=0 // loop_header
    %s10 = sphi 0, %s14
    %p11 = scmp.ge.s32.totalorder %s10, 4
    %s20 = sphi 0, %s22
    %s23 = sphi 0, %s20
    %s24 = sphi 0, %s23
    %s40 = sphi 0, %s24
    %s44 = sphi 0, %s44
    %s46 = sphi 0, %s44
    %s47 = sphi 0, %s46
    %s61 = sphi 0, %s47
    %s65 = sphi 0, %s65
    %s67 = sphi 0, %s65
    %s68 = sphi 0, %s67
    %s82 = sphi 0, %s68
    %s86 = sphi 0, %s86
    %s88 = sphi 0, %s86
    %s89 = sphi 0, %s88
    %s103 = sphi 0, %s89
    %s109 = sphi 0, %s111
    %s112 = sphi 0, %s109
    %s113 = sphi 0, %s112
    %s129 = sphi 0, %s113
  $region4: #{bottleneck_forward.4} parent=0 // loop_header_branch
    %13 = sbr.rel (%p11) target = $region8
  $region5: #{bottleneck_forward.4} parent=0 // loop_body
    %s15 = ssub.s32 %s10, 1
    %s16 = ssub.s32 %s10, 2
    %s17 = sadd.s32 %s10, 1
    %s18 = ssub.s32 %s10, %s17
    %p19 = scmp.eq.s32.totalorder %s18, 0
    %s21 = sadd.s32 %s20, 1
    %s22 = scalar_select %p19, %s20, %s21
    %p25 = pneg %p19
    %p26 = scmp.eq.s32.totalorder %s10, 1
    %p27 = por %p25, %p26
    %p28 = scmp.ne.s32.totalorder %s20, %s23
    %p29 = scmp.eq.s32.totalorder %s10, 0
    %p30 = por %p28, %p29
    %p31 = scmp.ne.s32.totalorder %s20, %s23
    %p32 = scmp.eq.s32.totalorder %s15, 1
    %p33 = por %p31, %p32
    %p34 = scmp.ne.s32.totalorder %s23, %s24
    %p35 = scmp.eq.s32.totalorder %s15, 0
    %p36 = por %p34, %p35
    %p37 = scmp.ne.s32.totalorder %s23, %s24
    %p38 = scmp.eq.s32.totalorder %s16, 1
    %p39 = por %p37, %p38
    %p41 = scmp.ne.s32.totalorder %s24, %s40
    %p42 = scmp.eq.s32.totalorder %s16, 0
    %p43 = por %p41, %p42
    %s45 = sadd.s32 %s44, 1
    %p48 = scmp.eq.s32.totalorder %s10, 1
    %p49 = scmp.ne.s32.totalorder %s44, %s46
    %p50 = scmp.eq.s32.totalorder %s10, 0
    %p51 = por %p49, %p50
    %p52 = scmp.ne.s32.totalorder %s44, %s46
    %p53 = scmp.eq.s32.totalorder %s15, 1
    %p54 = por %p52, %p53
    %p55 = scmp.ne.s32.totalorder %s46, %s47
    %p56 = scmp.eq.s32.totalorder %s15, 0
    %p57 = por %p55, %p56
    %p58 = scmp.ne.s32.totalorder %s46, %s47
    %p59 = scmp.eq.s32.totalorder %s16, 1
    %p60 = por %p58, %p59
    %p62 = scmp.ne.s32.totalorder %s47, %s61
    %p63 = scmp.eq.s32.totalorder %s16, 0
    %p64 = por %p62, %p63
    %s66 = sadd.s32 %s65, 1
    %p69 = scmp.eq.s32.totalorder %s10, 1
    %p70 = scmp.ne.s32.totalorder %s65, %s67
    %p71 = scmp.eq.s32.totalorder %s10, 0
    %p72 = por %p70, %p71
    %p73 = scmp.ne.s32.totalorder %s65, %s67
    %p74 = scmp.eq.s32.totalorder %s15, 1
    %p75 = por %p73, %p74
    %p76 = scmp.ne.s32.totalorder %s67, %s68
    %p77 = scmp.eq.s32.totalorder %s15, 0
    %p78 = por %p76, %p77
    %p79 = scmp.ne.s32.totalorder %s67, %s68
    %p80 = scmp.eq.s32.totalorder %s16, 1
    %p81 = por %p79, %p80
    %p83 = scmp.ne.s32.totalorder %s68, %s82
    %p84 = scmp.eq.s32.totalorder %s16, 0
    %p85 = por %p83, %p84
    %s87 = sadd.s32 %s86, 1
    %p90 = scmp.eq.s32.totalorder %s10, 1
    %p91 = scmp.ne.s32.totalorder %s86, %s88
    %p92 = scmp.eq.s32.totalorder %s10, 0
    %p93 = por %p91, %p92
    %p94 = scmp.ne.s32.totalorder %s86, %s88
    %p95 = scmp.eq.s32.totalorder %s15, 1
    %p96 = por %p94, %p95
    %p97 = scmp.ne.s32.totalorder %s88, %s89
    %p98 = scmp.eq.s32.totalorder %s15, 0
    %p99 = por %p97, %p98
    %p100 = scmp.ne.s32.totalorder %s88, %s89
    %p101 = scmp.eq.s32.totalorder %s16, 1
    %p102 = por %p100, %p101
    %p104 = scmp.ne.s32.totalorder %s89, %s103
    %p105 = scmp.eq.s32.totalorder %s16, 0
    %p106 = por %p104, %p105
    %s107 = ssub.s32 %s10, %s17
    %p108 = scmp.eq.s32.totalorder %s107, 0
    %s110 = sadd.s32 %s109, 1
    %s111 = scalar_select %p108, %s109, %s110
    %p114 = pneg %p108
    %p115 = scmp.eq.s32.totalorder %s10, 1
    %p116 = por %p114, %p115
    %p117 = scmp.ne.s32.totalorder %s109, %s112
    %p118 = scmp.eq.s32.totalorder %s10, 0
    %p119 = por %p117, %p118
    %p120 = scmp.ne.s32.totalorder %s109, %s112
    %p121 = scmp.eq.s32.totalorder %s15, 1
    %p122 = por %p120, %p121
    %p123 = scmp.ne.s32.totalorder %s112, %s113
    %p124 = scmp.eq.s32.totalorder %s15, 0
    %p125 = por %p123, %p124
    %p126 = scmp.ne.s32.totalorder %s112, %s113
    %p127 = scmp.eq.s32.totalorder %s16, 1
    %p128 = por %p126, %p127
    %p130 = scmp.ne.s32.totalorder %s113, %s129
    %p131 = scmp.eq.s32.totalorder %s16, 0
    %p132 = por %p130, %p131
    %p133 = scmp.le.s32.totalorder 1, %s10
    %p134 = scmp.lt.s32.totalorder %s10, 3
    %p135 = pnand %p133, %p134
    %p136 = pneg %p135
    // Predicated region
    $region9: #{bottleneck_forward.4} parent=5 // pred_check
      _
    $region10: #{bottleneck_forward.4} parent=5 // pred_check_branch
      %138 = sbr.rel (%p135) target = $region12
    $region11: #{bottleneck_forward.4} parent=5 // pred_region
      %s139 = ssub.s32 %s10, 1
      // Predicated region
      $region13: #{bottleneck_forward.4} parent=11 // pred_check
        %p140 = pneg %p57
      $region14: #{bottleneck_forward.4} parent=11 // pred_check_branch
        %142 = sbr.rel (%p140) target = $region16
      $region15: #{bottleneck_forward.4} parent=11 // pred_region
        _
      $region16: #{bottleneck_forward.4} parent=11 // pred_fallthru
        _
      // Predicated region
      $region17: #{bottleneck_forward.4} parent=11 // pred_check
        %p143 = pneg %p78
      $region18: #{bottleneck_forward.4} parent=11 // pred_check_branch
        %145 = sbr.rel (%p143) target = $region20
      $region19: #{bottleneck_forward.4} parent=11 // pred_region
        _
      $region20: #{bottleneck_forward.4} parent=11 // pred_fallthru
        _
      // Predicated region
      $region21: #{bottleneck_forward.4} parent=11 // pred_check
        %p146 = pneg %p99
      $region22: #{bottleneck_forward.4} parent=11 // pred_check_branch
        %148 = sbr.rel (%p146) target = $region24
      $region23: #{bottleneck_forward.4} parent=11 // pred_region
        _
      $region24: #{bottleneck_forward.4} parent=11 // pred_fallthru
        _
    $region12: #{bottleneck_forward.4} parent=5 // pred_fallthru
      _
    %p149 = scmp.lt.s32.totalorder %s10, 2
    // Predicated region
    $region25: #{bottleneck_forward.4} parent=5 // pred_check
      %p150 = pneg %p149
    $region26: #{bottleneck_forward.4} parent=5 // pred_check_branch
      %152 = sbr.rel (%p150) target = $region28
    $region27: #{bottleneck_forward.4} parent=5 // pred_region
      // Predicated region
      $region29: #{bottleneck_forward.4} parent=27 // pred_check
        %p153 = pneg %p30
      $region30: #{bottleneck_forward.4} parent=27 // pred_check_branch
        %155 = sbr.rel (%p153) target = $region32
      $region31: #{bottleneck_forward.4} parent=27 // pred_region
        %p156 = scmp.lt.s32.totalorder %s10, 1
        %s157 = scalar_select %p156, %s10, 1
        %s158 = smul.addr %s157, 54
        %s159 = smul.addr %s158, 8
        %s160 = scalar_lea.vmem %s0, %s159
      $region32: #{bottleneck_forward.4} parent=27 // pred_fallthru
        _
    $region28: #{bottleneck_forward.4} parent=5 // pred_fallthru
      _
    %p161 = scmp.le.s32.totalorder 1, %s10
    %p162 = scmp.lt.s32.totalorder %s10, 3
    %p163 = pnand %p161, %p162
    %p164 = pneg %p163
    // Predicated region
    $region33: #{bottleneck_forward.4} parent=5 // pred_check
      _
    $region34: #{bottleneck_forward.4} parent=5 // pred_check_branch
      %166 = sbr.rel (%p163) target = $region36
    $region35: #{bottleneck_forward.4} parent=5 // pred_region
      %s167 = ssub.s32 %s10, 1
      %p168 = scmp.lt.s32.totalorder %s15, 1
      %s169 = scalar_select %p168, %s15, 1
      %s170 = smul.addr %s169, 54
      %s171 = smul.addr %s170, 8
      %s172 = scalar_lea.vmem %s0, %s171
      %p173 = pneg %p36
      %p174 = pneg %p33
      %p175 = pneg %p57
      %p176 = pneg %p54
      %p177 = pneg %p78
      %p178 = pneg %p75
      %p179 = pneg %p99
      %p180 = pneg %p96
      %p181 = pneg %p125
      %p182 = pneg %p122
      %p183 = scmp.lt.s32.totalorder %s15, 1
      %s184 = scalar_select %p183, %s15, 1
      %s185 = smul.addr %s184, 32
      %s186 = smul.addr %s185, 8
      %s187 = scalar_lea.vmem %s4, %s186
      %p188 = scmp.lt.s32.totalorder %s15, 1
      %s189 = scalar_select %p188, %s15, 1
      %s190 = smul.addr %s189, 54
      %s191 = smul.addr %s190, 8
      %s192 = scalar_lea.vmem %s0, %s191
      %p193 = scmp.lt.s32.totalorder %s15, 1
      %s194 = scalar_select %p193, %s15, 1
      %s195 = smul.addr %s194, 32
      %s196 = smul.addr %s195, 8
      %s197 = scalar_lea.vmem %s4, %s196
      %v198 = vld [vmem:[%s192] sm:$0xff]
      %v199 = vld [vmem:[%s192 + $0x8] sm:$0xff]
      %v200 = vld [vmem:[%s192 + $0x18] sm:$0xff]
      %v201 = vld [vmem:[%s192 + $0x20] sm:$0xff]
      %v202 = vld [vmem:[%s192 + $0x30] sm:$0xff]
      %v203 = vld [vmem:[%s192 + $0x38] sm:$0xff]
      %v204 = vld [vmem:[%s192 + $0x48] sm:$0xff]
      %v205 = vld [vmem:[%s192 + $0x50] sm:$0xff]
      %v206 = vld [vmem:[%s192 + $0x60] sm:$0xff]
      %v207 = vld [vmem:[%s192 + $0x68] sm:$0xff]
      %v208 = vld [vmem:[%s192 + $0x78] sm:$0xff]
      %v209 = vld [vmem:[%s192 + $0x80] sm:$0xff]
      %v210 = vld [vmem:[%s192 + $0x90] sm:$0xff]
      %v211 = vld [vmem:[%s192 + $0x98] sm:$0xff]
      %v212 = vld [vmem:[%s192 + $0xa8] sm:$0xff]
      %v213 = vld [vmem:[%s192 + $0xb0] sm:$0xff]
      %v214 = vld [vmem:[%s192 + $0xc0] sm:$0xff]
      %v215 = vld [vmem:[%s192 + $0xc8] sm:$0xff]
      %v216 = vld [vmem:[%s192 + $0xd8] sm:$0xff]
      %v217 = vld [vmem:[%s192 + $0xe0] sm:$0xff]
      %v218 = vld [vmem:[%s192 + $0xf0] sm:$0xff]
      %v219 = vld [vmem:[%s192 + $0xf8] sm:$0xff]
      %v220 = vld [vmem:[%s192 + $0x108] sm:$0xff]
      %v221 = vld [vmem:[%s192 + $0x110] sm:$0xff]
      %v222 = vld [vmem:[%s192 + $0x120] sm:$0xff]
      %v223 = vld [vmem:[%s192 + $0x128] sm:$0xff]
      %v224 = vld [vmem:[%s192 + $0x138] sm:$0xff]
      %v225 = vld [vmem:[%s192 + $0x140] sm:$0xff]
      %v226 = vld [vmem:[%s192 + $0x150] sm:$0xff]
      %v227 = vld [vmem:[%s192 + $0x158] sm:$0xff]
      %v228 = vld [vmem:[%s192 + $0x168] sm:$0xff]
      %v229 = vld [vmem:[%s192 + $0x170] sm:$0xff]
      %v230 = vld [vmem:[%s1] sm:$0xff]
      %v231 = vld [vmem:[%s1 + $0x8] sm:$0xff]
      %v232 = vld [vmem:[%s1 + $0x10] sm:$0xff]
      %v233 = vld [vmem:[%s1 + $0x18] sm:$0xff]
      %v234 = vld [vmem:[%s1 + $0x20] sm:$0xff]
      %v235 = vld [vmem:[%s1 + $0x28] sm:$0xff]
      %v236 = vld [vmem:[%s1 + $0x30] sm:$0xff]
      %v237 = vld [vmem:[%s1 + $0x38] sm:$0xff]
      %v238 = vld [vmem:[%s192 + $0x1] sm:$0xff]
      %v239 = vld [vmem:[%s192 + $0x9] sm:$0xff]
      %v240 = vld [vmem:[%s192 + $0x19] sm:$0xff]
      %v241 = vld [vmem:[%s192 + $0x21] sm:$0xff]
      %v242 = vld [vmem:[%s192 + $0x31] sm:$0xff]
      %v243 = vld [vmem:[%s192 + $0x39] sm:$0xff]
      %v244 = vld [vmem:[%s192 + $0x49] sm:$0xff]
      %v245 = vld [vmem:[%s192 + $0x51] sm:$0xff]
      %v246 = vld [vmem:[%s192 + $0x61] sm:$0xff]
      %v247 = vld [vmem:[%s192 + $0x69] sm:$0xff]
      %v248 = vld [vmem:[%s192 + $0x79] sm:$0xff]
      %v249 = vld [vmem:[%s192 + $0x81] sm:$0xff]
      %v250 = vld [vmem:[%s192 + $0x91] sm:$0xff]
      %v251 = vld [vmem:[%s192 + $0x99] sm:$0xff]
      %v252 = vld [vmem:[%s192 + $0xa9] sm:$0xff]
      %v253 = vld [vmem:[%s192 + $0xb1] sm:$0xff]
      %v254 = vld [vmem:[%s192 + $0xc1] sm:$0xff]
      %v255 = vld [vmem:[%s192 + $0xc9] sm:$0xff]
      %v256 = vld [vmem:[%s192 + $0xd9] sm:$0xff]
      %v257 = vld [vmem:[%s192 + $0xe1] sm:$0xff]
      %v258 = vld [vmem:[%s192 + $0xf1] sm:$0xff]
      %v259 = vld [vmem:[%s192 + $0xf9] sm:$0xff]
      %v260 = vld [vmem:[%s192 + $0x109] sm:$0xff]
      %v261 = vld [vmem:[%s192 + $0x111] sm:$0xff]
      %v262 = vld [vmem:[%s192 + $0x121] sm:$0xff]
      %v263 = vld [vmem:[%s192 + $0x129] sm:$0xff]
      %v264 = vld [vmem:[%s192 + $0x139] sm:$0xff]
      %v265 = vld [vmem:[%s192 + $0x141] sm:$0xff]
      %v266 = vld [vmem:[%s192 + $0x151] sm:$0xff]
      %v267 = vld [vmem:[%s192 + $0x159] sm:$0xff]
      %v268 = vld [vmem:[%s192 + $0x169] sm:$0xff]
      %v269 = vld [vmem:[%s192 + $0x171] sm:$0xff]
      %s270 = scalar_lea.vmem %s1, 64
      %v271 = vld [vmem:[%s270] sm:$0xff]
      %v272 = vld [vmem:[%s270 + $0x8] sm:$0xff]
      %v273 = vld [vmem:[%s270 + $0x10] sm:$0xff]
      %v274 = vld [vmem:[%s270 + $0x18] sm:$0xff]
      %v275 = vld [vmem:[%s270 + $0x20] sm:$0xff]
      %v276 = vld [vmem:[%s270 + $0x28] sm:$0xff]
      %v277 = vld [vmem:[%s270 + $0x30] sm:$0xff]
      %v278 = vld [vmem:[%s270 + $0x38] sm:$0xff]
      %vm279 = vcmask 523264
      %v281 = vsel %vm279, %v238, 0
      %v284 = vsel %vm279, %v239, 0
      %v287 = vsel %vm279, %v240, 0
      %v290 = vsel %vm279, %v241, 0
      %v293 = vsel %vm279, %v242, 0
      %v296 = vsel %vm279, %v243, 0
      %v299 = vsel %vm279, %v244, 0
      %v302 = vsel %vm279, %v245, 0
      %v305 = vsel %vm279, %v246, 0
      %v308 = vsel %vm279, %v247, 0
      %v311 = vsel %vm279, %v248, 0
      %v314 = vsel %vm279, %v249, 0
      %v317 = vsel %vm279, %v250, 0
      %v320 = vsel %vm279, %v251, 0
      %v323 = vsel %vm279, %v252, 0
      %v326 = vsel %vm279, %v253, 0
      %v329 = vsel %vm279, %v254, 0
      %v332 = vsel %vm279, %v255, 0
      %v335 = vsel %vm279, %v256, 0
      %v338 = vsel %vm279, %v257, 0
      %v341 = vsel %vm279, %v258, 0
      %v344 = vsel %vm279, %v259, 0
      %v347 = vsel %vm279, %v260, 0
      %v350 = vsel %vm279, %v261, 0
      %v353 = vsel %vm279, %v262, 0
      %v356 = vsel %vm279, %v263, 0
      %v359 = vsel %vm279, %v264, 0
      %v362 = vsel %vm279, %v265, 0
      %v365 = vsel %vm279, %v266, 0
      %v368 = vsel %vm279, %v267, 0
      %v371 = vsel %vm279, %v268, 0
      %v374 = vsel %vm279, %v269, 0
      %376 = vmatpush.msra.mxu0 0.0
      %377 = vmatpush.msra.mxu0 0.0
      %378 = vmatpush.msra.mxu0 0.0
      %379 = vmatpush.msra.mxu0 0.0
      %380 = vmatpush.msra.mxu0 0.0
      %381 = vmatpush.msra.mxu0 0.0
      %382 = vmatpush.msra.mxu0 0.0
      %383 = vmatpush.msra.mxu0 0.0
      %384 = vmatpush.msra.mxu0 %v278
      %385 = vmatpush.msra.mxu0 %v277
      %386 = vmatpush.msra.mxu0 %v276
      %387 = vmatpush.msra.mxu0 %v275
      %388 = vmatpush.msra.mxu0 %v274
      %389 = vmatpush.msra.mxu0 %v273
      %390 = vmatpush.msra.mxu0 %v272
      %391 = vmatpush.msra.mxu0 %v271
      %392 = vmatmul.f32.gmra.mxu0 %v281
      %v393 = vpop.f32.mrf.mxu0
      %v394 = vadd.f32 0.0, %v393
      %395 = vmatmul.f32.gmra.mxu0 %v284
      %v396 = vpop.f32.mrf.mxu0
      %v397 = vadd.f32 0.0, %v396
      %398 = vmatmul.f32.gmra.mxu0 %v287
      %v399 = vpop.f32.mrf.mxu0
      %v400 = vadd.f32 0.0, %v399
      %401 = vmatmul.f32.gmra.mxu0 %v290
      %v402 = vpop.f32.mrf.mxu0
      %v403 = vadd.f32 0.0, %v402
      %404 = vmatmul.f32.gmra.mxu0 %v293
      %v405 = vpop.f32.mrf.mxu0
      %v406 = vadd.f32 0.0, %v405
      %407 = vmatmul.f32.gmra.mxu0 %v296
      %v408 = vpop.f32.mrf.mxu0
      %v409 = vadd.f32 0.0, %v408
      %410 = vmatmul.f32.gmra.mxu0 %v299
      %v411 = vpop.f32.mrf.mxu0
      %v412 = vadd.f32 0.0, %v411
      %413 = vmatmul.f32.gmra.mxu0 %v302
      %v414 = vpop.f32.mrf.mxu0
      %v415 = vadd.f32 0.0, %v414
      %416 = vmatmul.f32.gmra.mxu0 %v305
      %v417 = vpop.f32.mrf.mxu0
      %v418 = vadd.f32 0.0, %v417
      %419 = vmatmul.f32.gmra.mxu0 %v308
      %v420 = vpop.f32.mrf.mxu0
      %v421 = vadd.f32 0.0, %v420
      %422 = vmatmul.f32.gmra.mxu0 %v311
      %v423 = vpop.f32.mrf.mxu0
      %v424 = vadd.f32 0.0, %v423
      %425 = vmatmul.f32.gmra.mxu0 %v314
      %v426 = vpop.f32.mrf.mxu0
      %v427 = vadd.f32 0.0, %v426
      %428 = vmatmul.f32.gmra.mxu0 %v317
      %v429 = vpop.f32.mrf.mxu0
      %v430 = vadd.f32 0.0, %v429
      %431 = vmatmul.f32.gmra.mxu0 %v320
      %v432 = vpop.f32.mrf.mxu0
      %v433 = vadd.f32 0.0, %v432
      %434 = vmatmul.f32.gmra.mxu0 %v323
      %v435 = vpop.f32.mrf.mxu0
      %v436 = vadd.f32 0.0, %v435
      %437 = vmatmul.f32.gmra.mxu0 %v326
      %v438 = vpop.f32.mrf.mxu0
      %v439 = vadd.f32 0.0, %v438
      %440 = vmatmul.f32.gmra.mxu0 %v329
      %v441 = vpop.f32.mrf.mxu0
      %v442 = vadd.f32 0.0, %v441
      %443 = vmatmul.f32.gmra.mxu0 %v332
      %v444 = vpop.f32.mrf.mxu0
      %v445 = vadd.f32 0.0, %v444
      %446 = vmatmul.f32.gmra.mxu0 %v335
      %v447 = vpop.f32.mrf.mxu0
      %v448 = vadd.f32 0.0, %v447
      %449 = vmatmul.f32.gmra.mxu0 %v338
      %v450 = vpop.f32.mrf.mxu0
      %v451 = vadd.f32 0.0, %v450
      %452 = vmatmul.f32.gmra.mxu0 %v341
      %v453 = vpop.f32.mrf.mxu0
      %v454 = vadd.f32 0.0, %v453
      %455 = vmatmul.f32.gmra.mxu0 %v344
      %v456 = vpop.f32.mrf.mxu0
      %v457 = vadd.f32 0.0, %v456
      %458 = vmatmul.f32.gmra.mxu0 %v347
      %v459 = vpop.f32.mrf.mxu0
      %v460 = vadd.f32 0.0, %v459
      %461 = vmatmul.f32.gmra.mxu0 %v350
      %v462 = vpop.f32.mrf.mxu0
      %v463 = vadd.f32 0.0, %v462
      %464 = vmatmul.f32.gmra.mxu0 %v353
      %v465 = vpop.f32.mrf.mxu0
      %v466 = vadd.f32 0.0, %v465
      %467 = vmatmul.f32.gmra.mxu0 %v356
      %v468 = vpop.f32.mrf.mxu0
      %v469 = vadd.f32 0.0, %v468
      %470 = vmatmul.f32.gmra.mxu0 %v359
      %v471 = vpop.f32.mrf.mxu0
      %v472 = vadd.f32 0.0, %v471
      %473 = vmatmul.f32.gmra.mxu0 %v362
      %v474 = vpop.f32.mrf.mxu0
      %v475 = vadd.f32 0.0, %v474
      %476 = vmatmul.f32.gmra.mxu0 %v365
      %v477 = vpop.f32.mrf.mxu0
      %v478 = vadd.f32 0.0, %v477
      %479 = vmatmul.f32.gmra.mxu0 %v368
      %v480 = vpop.f32.mrf.mxu0
      %v481 = vadd.f32 0.0, %v480
      %482 = vmatmul.f32.gmra.mxu0 %v371
      %v483 = vpop.f32.mrf.mxu0
      %v484 = vadd.f32 0.0, %v483
      %485 = vmatmul.f32.gmra.mxu0 %v374
      %v486 = vpop.f32.mrf.mxu0
      %v487 = vadd.f32 0.0, %v486
      %488 = vdwg.mxu0
      %v490 = vsel %vm279, %v198, 0
      %v493 = vsel %vm279, %v199, 0
      %v496 = vsel %vm279, %v200, 0
      %v499 = vsel %vm279, %v201, 0
      %v502 = vsel %vm279, %v202, 0
      %v505 = vsel %vm279, %v203, 0
      %v508 = vsel %vm279, %v204, 0
      %v511 = vsel %vm279, %v205, 0
      %v514 = vsel %vm279, %v206, 0
      %v517 = vsel %vm279, %v207, 0
      %v520 = vsel %vm279, %v208, 0
      %v523 = vsel %vm279, %v209, 0
      %v526 = vsel %vm279, %v210, 0
      %v529 = vsel %vm279, %v211, 0
      %v532 = vsel %vm279, %v212, 0
      %v535 = vsel %vm279, %v213, 0
      %v538 = vsel %vm279, %v214, 0
      %v541 = vsel %vm279, %v215, 0
      %v544 = vsel %vm279, %v216, 0
      %v547 = vsel %vm279, %v217, 0
      %v550 = vsel %vm279, %v218, 0
      %v553 = vsel %vm279, %v219, 0
      %v556 = vsel %vm279, %v220, 0
      %v559 = vsel %vm279, %v221, 0
      %v562 = vsel %vm279, %v222, 0
      %v565 = vsel %vm279, %v223, 0
      %v568 = vsel %vm279, %v224, 0
      %v571 = vsel %vm279, %v225, 0
      %v574 = vsel %vm279, %v226, 0
      %v577 = vsel %vm279, %v227, 0
      %v580 = vsel %vm279, %v228, 0
      %v583 = vsel %vm279, %v229, 0
      %585 = vmatpush.msra.mxu0 0.0
      %586 = vmatpush.msra.mxu0 0.0
      %587 = vmatpush.msra.mxu0 0.0
      %588 = vmatpush.msra.mxu0 0.0
      %589 = vmatpush.msra.mxu0 0.0
      %590 = vmatpush.msra.mxu0 0.0
      %591 = vmatpush.msra.mxu0 0.0
      %592 = vmatpush.msra.mxu0 0.0
      %593 = vmatpush.msra.mxu0 %v237
      %594 = vmatpush.msra.mxu0 %v236
      %595 = vmatpush.msra.mxu0 %v235
      %596 = vmatpush.msra.mxu0 %v234
      %597 = vmatpush.msra.mxu0 %v233
      %598 = vmatpush.msra.mxu0 %v232
      %599 = vmatpush.msra.mxu0 %v231
      %600 = vmatpush.msra.mxu0 %v230
      %601 = vmatmul.f32.gmra.mxu0 %v490
      %v602 = vpop.f32.mrf.mxu0
      %v603 = vadd.f32 %v394, %v602
      %604 = vmatmul.f32.gmra.mxu0 %v493
      %v605 = vpop.f32.mrf.mxu0
      %v606 = vadd.f32 %v397, %v605
      %607 = vmatmul.f32.gmra.mxu0 %v496
      %v608 = vpop.f32.mrf.mxu0
      %v609 = vadd.f32 %v400, %v608
      %610 = vmatmul.f32.gmra.mxu0 %v499
      %v611 = vpop.f32.mrf.mxu0
      %v612 = vadd.f32 %v403, %v611
      %613 = vmatmul.f32.gmra.mxu0 %v502
      %v614 = vpop.f32.mrf.mxu0
      %v615 = vadd.f32 %v406, %v614
      %616 = vmatmul.f32.gmra.mxu0 %v505
      %v617 = vpop.f32.mrf.mxu0
      %v618 = vadd.f32 %v409, %v617
      %619 = vmatmul.f32.gmra.mxu0 %v508
      %v620 = vpop.f32.mrf.mxu0
      %v621 = vadd.f32 %v412, %v620
      %622 = vmatmul.f32.gmra.mxu0 %v511
      %v623 = vpop.f32.mrf.mxu0
      %v624 = vadd.f32 %v415, %v623
      %625 = vmatmul.f32.gmra.mxu0 %v514
      %v626 = vpop.f32.mrf.mxu0
      %v627 = vadd.f32 %v418, %v626
      %628 = vmatmul.f32.gmra.mxu0 %v517
      %v629 = vpop.f32.mrf.mxu0
      %v630 = vadd.f32 %v421, %v629
      %631 = vmatmul.f32.gmra.mxu0 %v520
      %v632 = vpop.f32.mrf.mxu0
      %v633 = vadd.f32 %v424, %v632
      %634 = vmatmul.f32.gmra.mxu0 %v523
      %v635 = vpop.f32.mrf.mxu0
      %v636 = vadd.f32 %v427, %v635
      %637 = vmatmul.f32.gmra.mxu0 %v526
      %v638 = vpop.f32.mrf.mxu0
      %v639 = vadd.f32 %v430, %v638
      %640 = vmatmul.f32.gmra.mxu0 %v529
      %v641 = vpop.f32.mrf.mxu0
      %v642 = vadd.f32 %v433, %v641
      %643 = vmatmul.f32.gmra.mxu0 %v532
      %v644 = vpop.f32.mrf.mxu0
      %v645 = vadd.f32 %v436, %v644
      %646 = vmatmul.f32.gmra.mxu0 %v535
      %v647 = vpop.f32.mrf.mxu0
      %v648 = vadd.f32 %v439, %v647
      %649 = vmatmul.f32.gmra.mxu0 %v538
      %v650 = vpop.f32.mrf.mxu0
      %v651 = vadd.f32 %v442, %v650
      %652 = vmatmul.f32.gmra.mxu0 %v541
      %v653 = vpop.f32.mrf.mxu0
      %v654 = vadd.f32 %v445, %v653
      %655 = vmatmul.f32.gmra.mxu0 %v544
      %v656 = vpop.f32.mrf.mxu0
      %v657 = vadd.f32 %v448, %v656
      %658 = vmatmul.f32.gmra.mxu0 %v547
      %v659 = vpop.f32.mrf.mxu0
      %v660 = vadd.f32 %v451, %v659
      %661 = vmatmul.f32.gmra.mxu0 %v550
      %v662 = vpop.f32.mrf.mxu0
      %v663 = vadd.f32 %v454, %v662
      %664 = vmatmul.f32.gmra.mxu0 %v553
      %v665 = vpop.f32.mrf.mxu0
      %v666 = vadd.f32 %v457, %v665
      %667 = vmatmul.f32.gmra.mxu0 %v556
      %v668 = vpop.f32.mrf.mxu0
      %v669 = vadd.f32 %v460, %v668
      %670 = vmatmul.f32.gmra.mxu0 %v559
      %v671 = vpop.f32.mrf.mxu0
      %v672 = vadd.f32 %v463, %v671
      %673 = vmatmul.f32.gmra.mxu0 %v562
      %v674 = vpop.f32.mrf.mxu0
      %v675 = vadd.f32 %v466, %v674
      %676 = vmatmul.f32.gmra.mxu0 %v565
      %v677 = vpop.f32.mrf.mxu0
      %v678 = vadd.f32 %v469, %v677
      %679 = vmatmul.f32.gmra.mxu0 %v568
      %v680 = vpop.f32.mrf.mxu0
      %v681 = vadd.f32 %v472, %v680
      %682 = vmatmul.f32.gmra.mxu0 %v571
      %v683 = vpop.f32.mrf.mxu0
      %v684 = vadd.f32 %v475, %v683
      %685 = vmatmul.f32.gmra.mxu0 %v574
      %v686 = vpop.f32.mrf.mxu0
      %v687 = vadd.f32 %v478, %v686
      %688 = vmatmul.f32.gmra.mxu0 %v577
      %v689 = vpop.f32.mrf.mxu0
      %v690 = vadd.f32 %v481, %v689
      %691 = vmatmul.f32.gmra.mxu0 %v580
      %v692 = vpop.f32.mrf.mxu0
      %v693 = vadd.f32 %v484, %v692
      %694 = vmatmul.f32.gmra.mxu0 %v583
      %v695 = vpop.f32.mrf.mxu0
      %v696 = vadd.f32 %v487, %v695
      %697 = vdwg.mxu0
      %v698 = vld [vmem:[%s192 + $0x2] sm:$0xff]
      %v699 = vld [vmem:[%s192 + $0xa] sm:$0xff]
      %v700 = vld [vmem:[%s192 + $0x1a] sm:$0xff]
      %v701 = vld [vmem:[%s192 + $0x22] sm:$0xff]
      %v702 = vld [vmem:[%s192 + $0x32] sm:$0xff]
      %v703 = vld [vmem:[%s192 + $0x3a] sm:$0xff]
      %v704 = vld [vmem:[%s192 + $0x4a] sm:$0xff]
      %v705 = vld [vmem:[%s192 + $0x52] sm:$0xff]
      %v706 = vld [vmem:[%s192 + $0x62] sm:$0xff]
      %v707 = vld [vmem:[%s192 + $0x6a] sm:$0xff]
      %v708 = vld [vmem:[%s192 + $0x7a] sm:$0xff]
      %v709 = vld [vmem:[%s192 + $0x82] sm:$0xff]
      %v710 = vld [vmem:[%s192 + $0x92] sm:$0xff]
      %v711 = vld [vmem:[%s192 + $0x9a] sm:$0xff]
      %v712 = vld [vmem:[%s192 + $0xaa] sm:$0xff]
      %v713 = vld [vmem:[%s192 + $0xb2] sm:$0xff]
      %v714 = vld [vmem:[%s192 + $0xc2] sm:$0xff]
      %v715 = vld [vmem:[%s192 + $0xca] sm:$0xff]
      %v716 = vld [vmem:[%s192 + $0xda] sm:$0xff]
      %v717 = vld [vmem:[%s192 + $0xe2] sm:$0xff]
      %v718 = vld [vmem:[%s192 + $0xf2] sm:$0xff]
      %v719 = vld [vmem:[%s192 + $0xfa] sm:$0xff]
      %v720 = vld [vmem:[%s192 + $0x10a] sm:$0xff]
      %v721 = vld [vmem:[%s192 + $0x112] sm:$0xff]
      %v722 = vld [vmem:[%s192 + $0x122] sm:$0xff]
      %v723 = vld [vmem:[%s192 + $0x12a] sm:$0xff]
      %v724 = vld [vmem:[%s192 + $0x13a] sm:$0xff]
      %v725 = vld [vmem:[%s192 + $0x142] sm:$0xff]
      %v726 = vld [vmem:[%s192 + $0x152] sm:$0xff]
      %v727 = vld [vmem:[%s192 + $0x15a] sm:$0xff]
      %v728 = vld [vmem:[%s192 + $0x16a] sm:$0xff]
      %v729 = vld [vmem:[%s192 + $0x172] sm:$0xff]
      %s730 = scalar_lea.vmem %s1, 128
      %v731 = vld [vmem:[%s730] sm:$0xff]
      %v732 = vld [vmem:[%s730 + $0x8] sm:$0xff]
      %v733 = vld [vmem:[%s730 + $0x10] sm:$0xff]
      %v734 = vld [vmem:[%s730 + $0x18] sm:$0xff]
      %v735 = vld [vmem:[%s730 + $0x20] sm:$0xff]
      %v736 = vld [vmem:[%s730 + $0x28] sm:$0xff]
      %v737 = vld [vmem:[%s730 + $0x30] sm:$0xff]
      %v738 = vld [vmem:[%s730 + $0x38] sm:$0xff]
      %v740 = vsel %vm279, %v698, 0
      %v743 = vsel %vm279, %v699, 0
      %v746 = vsel %vm279, %v700, 0
      %v749 = vsel %vm279, %v701, 0
      %v752 = vsel %vm279, %v702, 0
      %v755 = vsel %vm279, %v703, 0
      %v758 = vsel %vm279, %v704, 0
      %v761 = vsel %vm279, %v705, 0
      %v764 = vsel %vm279, %v706, 0
      %v767 = vsel %vm279, %v707, 0
      %v770 = vsel %vm279, %v708, 0
      %v773 = vsel %vm279, %v709, 0
      %v776 = vsel %vm279, %v710, 0
      %v779 = vsel %vm279, %v711, 0
      %v782 = vsel %vm279, %v712, 0
      %v785 = vsel %vm279, %v713, 0
      %v788 = vsel %vm279, %v714, 0
      %v791 = vsel %vm279, %v715, 0
      %v794 = vsel %vm279, %v716, 0
      %v797 = vsel %vm279, %v717, 0
      %v800 = vsel %vm279, %v718, 0
      %v803 = vsel %vm279, %v719, 0
      %v806 = vsel %vm279, %v720, 0
      %v809 = vsel %vm279, %v721, 0
      %v812 = vsel %vm279, %v722, 0
      %v815 = vsel %vm279, %v723, 0
      %v818 = vsel %vm279, %v724, 0
      %v821 = vsel %vm279, %v725, 0
      %v824 = vsel %vm279, %v726, 0
      %v827 = vsel %vm279, %v727, 0
      %v830 = vsel %vm279, %v728, 0
      %v833 = vsel %vm279, %v729, 0
      %835 = vmatpush.msra.mxu0 0.0
      %836 = vmatpush.msra.mxu0 0.0
      %837 = vmatpush.msra.mxu0 0.0
      %838 = vmatpush.msra.mxu0 0.0
      %839 = vmatpush.msra.mxu0 0.0
      %840 = vmatpush.msra.mxu0 0.0
      %841 = vmatpush.msra.mxu0 0.0
      %842 = vmatpush.msra.mxu0 0.0
      %843 = vmatpush.msra.mxu0 %v738
      %844 = vmatpush.msra.mxu0 %v737
      %845 = vmatpush.msra.mxu0 %v736
      %846 = vmatpush.msra.mxu0 %v735
      %847 = vmatpush.msra.mxu0 %v734
      %848 = vmatpush.msra.mxu0 %v733
      %849 = vmatpush.msra.mxu0 %v732
      %850 = vmatpush.msra.mxu0 %v731
      %851 = vmatmul.f32.gmra.mxu0 %v740
      %v852 = vpop.f32.mrf.mxu0
      %v853 = vadd.f32 0.0, %v852
      %854 = vmatmul.f32.gmra.mxu0 %v743
      %v855 = vpop.f32.mrf.mxu0
      %v856 = vadd.f32 0.0, %v855
      %857 = vmatmul.f32.gmra.mxu0 %v746
      %v858 = vpop.f32.mrf.mxu0
      %v859 = vadd.f32 0.0, %v858
      %860 = vmatmul.f32.gmra.mxu0 %v749
      %v861 = vpop.f32.mrf.mxu0
      %v862 = vadd.f32 0.0, %v861
      %863 = vmatmul.f32.gmra.mxu0 %v752
      %v864 = vpop.f32.mrf.mxu0
      %v865 = vadd.f32 0.0, %v864
      %866 = vmatmul.f32.gmra.mxu0 %v755
      %v867 = vpop.f32.mrf.mxu0
      %v868 = vadd.f32 0.0, %v867
      %869 = vmatmul.f32.gmra.mxu0 %v758
      %v870 = vpop.f32.mrf.mxu0
      %v871 = vadd.f32 0.0, %v870
      %872 = vmatmul.f32.gmra.mxu0 %v761
      %v873 = vpop.f32.mrf.mxu0
      %v874 = vadd.f32 0.0, %v873
      %875 = vmatmul.f32.gmra.mxu0 %v764
      %v876 = vpop.f32.mrf.mxu0
      %v877 = vadd.f32 0.0, %v876
      %878 = vmatmul.f32.gmra.mxu0 %v767
      %v879 = vpop.f32.mrf.mxu0
      %v880 = vadd.f32 0.0, %v879
      %881 = vmatmul.f32.gmra.mxu0 %v770
      %v882 = vpop.f32.mrf.mxu0
      %v883 = vadd.f32 0.0, %v882
      %884 = vmatmul.f32.gmra.mxu0 %v773
      %v885 = vpop.f32.mrf.mxu0
      %v886 = vadd.f32 0.0, %v885
      %887 = vmatmul.f32.gmra.mxu0 %v776
      %v888 = vpop.f32.mrf.mxu0
      %v889 = vadd.f32 0.0, %v888
      %890 = vmatmul.f32.gmra.mxu0 %v779
      %v891 = vpop.f32.mrf.mxu0
      %v892 = vadd.f32 0.0, %v891
      %893 = vmatmul.f32.gmra.mxu0 %v782
      %v894 = vpop.f32.mrf.mxu0
      %v895 = vadd.f32 0.0, %v894
      %896 = vmatmul.f32.gmra.mxu0 %v785
      %v897 = vpop.f32.mrf.mxu0
      %v898 = vadd.f32 0.0, %v897
      %899 = vmatmul.f32.gmra.mxu0 %v788
      %v900 = vpop.f32.mrf.mxu0
      %v901 = vadd.f32 0.0, %v900
      %902 = vmatmul.f32.gmra.mxu0 %v791
      %v903 = vpop.f32.mrf.mxu0
      %v904 = vadd.f32 0.0, %v903
      %905 = vmatmul.f32.gmra.mxu0 %v794
      %v906 = vpop.f32.mrf.mxu0
      %v907 = vadd.f32 0.0, %v906
      %908 = vmatmul.f32.gmra.mxu0 %v797
      %v909 = vpop.f32.mrf.mxu0
      %v910 = vadd.f32 0.0, %v909
      %911 = vmatmul.f32.gmra.mxu0 %v800
      %v912 = vpop.f32.mrf.mxu0
      %v913 = vadd.f32 0.0, %v912
      %914 = vmatmul.f32.gmra.mxu0 %v803
      %v915 = vpop.f32.mrf.mxu0
      %v916 = vadd.f32 0.0, %v915
      %917 = vmatmul.f32.gmra.mxu0 %v806
      %v918 = vpop.f32.mrf.mxu0
      %v919 = vadd.f32 0.0, %v918
      %920 = vmatmul.f32.gmra.mxu0 %v809
      %v921 = vpop.f32.mrf.mxu0
      %v922 = vadd.f32 0.0, %v921
      %923 = vmatmul.f32.gmra.mxu0 %v812
      %v924 = vpop.f32.mrf.mxu0
      %v925 = vadd.f32 0.0, %v924
      %926 = vmatmul.f32.gmra.mxu0 %v815
      %v927 = vpop.f32.mrf.mxu0
      %v928 = vadd.f32 0.0, %v927
      %929 = vmatmul.f32.gmra.mxu0 %v818
      %v930 = vpop.f32.mrf.mxu0
      %v931 = vadd.f32 0.0, %v930
      %932 = vmatmul.f32.gmra.mxu0 %v821
      %v933 = vpop.f32.mrf.mxu0
      %v934 = vadd.f32 0.0, %v933
      %935 = vmatmul.f32.gmra.mxu0 %v824
      %v936 = vpop.f32.mrf.mxu0
      %v937 = vadd.f32 0.0, %v936
      %938 = vmatmul.f32.gmra.mxu0 %v827
      %v939 = vpop.f32.mrf.mxu0
      %v940 = vadd.f32 0.0, %v939
      %941 = vmatmul.f32.gmra.mxu0 %v830
      %v942 = vpop.f32.mrf.mxu0
      %v943 = vadd.f32 0.0, %v942
      %944 = vmatmul.f32.gmra.mxu0 %v833
      %v945 = vpop.f32.mrf.mxu0
      %v946 = vadd.f32 0.0, %v945
      %947 = vdwg.mxu0
      %v948 = vadd.f32 %v603, %v853
      %v949 = vadd.f32 %v606, %v856
      %v950 = vadd.f32 %v609, %v859
      %v951 = vadd.f32 %v612, %v862
      %v952 = vadd.f32 %v615, %v865
      %v953 = vadd.f32 %v618, %v868
      %v954 = vadd.f32 %v621, %v871
      %v955 = vadd.f32 %v624, %v874
      %v956 = vadd.f32 %v627, %v877
      %v957 = vadd.f32 %v630, %v880
      %v958 = vadd.f32 %v633, %v883
      %v959 = vadd.f32 %v636, %v886
      %v960 = vadd.f32 %v639, %v889
      %v961 = vadd.f32 %v642, %v892
      %v962 = vadd.f32 %v645, %v895
      %v963 = vadd.f32 %v648, %v898
      %v964 = vadd.f32 %v651, %v901
      %v965 = vadd.f32 %v654, %v904
      %v966 = vadd.f32 %v657, %v907
      %v967 = vadd.f32 %v660, %v910
      %v968 = vadd.f32 %v663, %v913
      %v969 = vadd.f32 %v666, %v916
      %v970 = vadd.f32 %v669, %v919
      %v971 = vadd.f32 %v672, %v922
      %v972 = vadd.f32 %v675, %v925
      %v973 = vadd.f32 %v678, %v928
      %v974 = vadd.f32 %v681, %v931
      %v975 = vadd.f32 %v684, %v934
      %v976 = vadd.f32 %v687, %v937
      %v977 = vadd.f32 %v690, %v940
      %v978 = vadd.f32 %v693, %v943
      %v979 = vadd.f32 %v696, %v946
      %s980 = scalar_lea.vmem %s192, 24
      %v981 = vld [vmem:[%s980] sm:$0xff]
      %v982 = vld [vmem:[%s980 + $0x8] sm:$0xff]
      %v983 = vld [vmem:[%s980 + $0x18] sm:$0xff]
      %v984 = vld [vmem:[%s980 + $0x20] sm:$0xff]
      %v985 = vld [vmem:[%s980 + $0x30] sm:$0xff]
      %v986 = vld [vmem:[%s980 + $0x38] sm:$0xff]
      %v987 = vld [vmem:[%s980 + $0x48] sm:$0xff]
      %v988 = vld [vmem:[%s980 + $0x50] sm:$0xff]
      %v989 = vld [vmem:[%s980 + $0x60] sm:$0xff]
      %v990 = vld [vmem:[%s980 + $0x68] sm:$0xff]
      %v991 = vld [vmem:[%s980 + $0x78] sm:$0xff]
      %v992 = vld [vmem:[%s980 + $0x80] sm:$0xff]
      %v993 = vld [vmem:[%s980 + $0x90] sm:$0xff]
      %v994 = vld [vmem:[%s980 + $0x98] sm:$0xff]
      %v995 = vld [vmem:[%s980 + $0xa8] sm:$0xff]
      %v996 = vld [vmem:[%s980 + $0xb0] sm:$0xff]
      %v997 = vld [vmem:[%s980 + $0xc0] sm:$0xff]
      %v998 = vld [vmem:[%s980 + $0xc8] sm:$0xff]
      %v999 = vld [vmem:[%s980 + $0xd8] sm:$0xff]
      %v1000 = vld [vmem:[%s980 + $0xe0] sm:$0xff]
      %v1001 = vld [vmem:[%s980 + $0xf0] sm:$0xff]
      %v1002 = vld [vmem:[%s980 + $0xf8] sm:$0xff]
      %v1003 = vld [vmem:[%s980 + $0x108] sm:$0xff]
      %v1004 = vld [vmem:[%s980 + $0x110] sm:$0xff]
      %v1005 = vld [vmem:[%s980 + $0x120] sm:$0xff]
      %v1006 = vld [vmem:[%s980 + $0x128] sm:$0xff]
      %v1007 = vld [vmem:[%s980 + $0x138] sm:$0xff]
      %v1008 = vld [vmem:[%s980 + $0x140] sm:$0xff]
      %v1009 = vld [vmem:[%s980 + $0x150] sm:$0xff]
      %v1010 = vld [vmem:[%s980 + $0x158] sm:$0xff]
      %v1011 = vld [vmem:[%s980 + $0x168] sm:$0xff]
      %v1012 = vld [vmem:[%s980 + $0x170] sm:$0xff]
      %s1013 = scalar_lea.vmem %s1, 192
      %v1014 = vld [vmem:[%s1013] sm:$0xff]
      %v1015 = vld [vmem:[%s1013 + $0x8] sm:$0xff]
      %v1016 = vld [vmem:[%s1013 + $0x10] sm:$0xff]
      %v1017 = vld [vmem:[%s1013 + $0x18] sm:$0xff]
      %v1018 = vld [vmem:[%s1013 + $0x20] sm:$0xff]
      %v1019 = vld [vmem:[%s1013 + $0x28] sm:$0xff]
      %v1020 = vld [vmem:[%s1013 + $0x30] sm:$0xff]
      %v1021 = vld [vmem:[%s1013 + $0x38] sm:$0xff]
      %v1023 = vsel %vm279, %v981, 0
      %v1026 = vsel %vm279, %v982, 0
      %v1029 = vsel %vm279, %v983, 0
      %v1032 = vsel %vm279, %v984, 0
      %v1035 = vsel %vm279, %v985, 0
      %v1038 = vsel %vm279, %v986, 0
      %v1041 = vsel %vm279, %v987, 0
      %v1044 = vsel %vm279, %v988, 0
      %v1047 = vsel %vm279, %v989, 0
      %v1050 = vsel %vm279, %v990, 0
      %v1053 = vsel %vm279, %v991, 0
      %v1056 = vsel %vm279, %v992, 0
      %v1059 = vsel %vm279, %v993, 0
      %v1062 = vsel %vm279, %v994, 0
      %v1065 = vsel %vm279, %v995, 0
      %v1068 = vsel %vm279, %v996, 0
      %v1071 = vsel %vm279, %v997, 0
      %v1074 = vsel %vm279, %v998, 0
      %v1077 = vsel %vm279, %v999, 0
      %v1080 = vsel %vm279, %v1000, 0
      %v1083 = vsel %vm279, %v1001, 0
      %v1086 = vsel %vm279, %v1002, 0
      %v1089 = vsel %vm279, %v1003, 0
      %v1092 = vsel %vm279, %v1004, 0
      %v1095 = vsel %vm279, %v1005, 0
      %v1098 = vsel %vm279, %v1006, 0
      %v1101 = vsel %vm279, %v1007, 0
      %v1104 = vsel %vm279, %v1008, 0
      %v1107 = vsel %vm279, %v1009, 0
      %v1110 = vsel %vm279, %v1010, 0
      %v1113 = vsel %vm279, %v1011, 0
      %v1116 = vsel %vm279, %v1012, 0
      %1118 = vmatpush.msra.mxu0 0.0
      %1119 = vmatpush.msra.mxu0 0.0
      %1120 = vmatpush.msra.mxu0 0.0
      %1121 = vmatpush.msra.mxu0 0.0
      %1122 = vmatpush.msra.mxu0 0.0
      %1123 = vmatpush.msra.mxu0 0.0
      %1124 = vmatpush.msra.mxu0 0.0
      %1125 = vmatpush.msra.mxu0 0.0
      %1126 = vmatpush.msra.mxu0 %v1021
      %1127 = vmatpush.msra.mxu0 %v1020
      %1128 = vmatpush.msra.mxu0 %v1019
      %1129 = vmatpush.msra.mxu0 %v1018
      %1130 = vmatpush.msra.mxu0 %v1017
      %1131 = vmatpush.msra.mxu0 %v1016
      %1132 = vmatpush.msra.mxu0 %v1015
      %1133 = vmatpush.msra.mxu0 %v1014
      %1134 = vmatmul.f32.gmra.mxu0 %v1023
      %v1135 = vpop.f32.mrf.mxu0
      %v1136 = vadd.f32 0.0, %v1135
      %1137 = vmatmul.f32.gmra.mxu0 %v1026
      %v1138 = vpop.f32.mrf.mxu0
      %v1139 = vadd.f32 0.0, %v1138
      %1140 = vmatmul.f32.gmra.mxu0 %v1029
      %v1141 = vpop.f32.mrf.mxu0
      %v1142 = vadd.f32 0.0, %v1141
      %1143 = vmatmul.f32.gmra.mxu0 %v1032
      %v1144 = vpop.f32.mrf.mxu0
      %v1145 = vadd.f32 0.0, %v1144
      %1146 = vmatmul.f32.gmra.mxu0 %v1035
      %v1147 = vpop.f32.mrf.mxu0
      %v1148 = vadd.f32 0.0, %v1147
      %1149 = vmatmul.f32.gmra.mxu0 %v1038
      %v1150 = vpop.f32.mrf.mxu0
      %v1151 = vadd.f32 0.0, %v1150
      %1152 = vmatmul.f32.gmra.mxu0 %v1041
      %v1153 = vpop.f32.mrf.mxu0
      %v1154 = vadd.f32 0.0, %v1153
      %1155 = vmatmul.f32.gmra.mxu0 %v1044
      %v1156 = vpop.f32.mrf.mxu0
      %v1157 = vadd.f32 0.0, %v1156
      %1158 = vmatmul.f32.gmra.mxu0 %v1047
      %v1159 = vpop.f32.mrf.mxu0
      %v1160 = vadd.f32 0.0, %v1159
      %1161 = vmatmul.f32.gmra.mxu0 %v1050
      %v1162 = vpop.f32.mrf.mxu0
      %v1163 = vadd.f32 0.0, %v1162
      %1164 = vmatmul.f32.gmra.mxu0 %v1053
      %v1165 = vpop.f32.mrf.mxu0
      %v1166 = vadd.f32 0.0, %v1165
      %1167 = vmatmul.f32.gmra.mxu0 %v1056
      %v1168 = vpop.f32.mrf.mxu0
      %v1169 = vadd.f32 0.0, %v1168
      %1170 = vmatmul.f32.gmra.mxu0 %v1059
      %v1171 = vpop.f32.mrf.mxu0
      %v1172 = vadd.f32 0.0, %v1171
      %1173 = vmatmul.f32.gmra.mxu0 %v1062
      %v1174 = vpop.f32.mrf.mxu0
      %v1175 = vadd.f32 0.0, %v1174
      %1176 = vmatmul.f32.gmra.mxu0 %v1065
      %v1177 = vpop.f32.mrf.mxu0
      %v1178 = vadd.f32 0.0, %v1177
      %1179 = vmatmul.f32.gmra.mxu0 %v1068
      %v1180 = vpop.f32.mrf.mxu0
      %v1181 = vadd.f32 0.0, %v1180
      %1182 = vmatmul.f32.gmra.mxu0 %v1071
      %v1183 = vpop.f32.mrf.mxu0
      %v1184 = vadd.f32 0.0, %v1183
      %1185 = vmatmul.f32.gmra.mxu0 %v1074
      %v1186 = vpop.f32.mrf.mxu0
      %v1187 = vadd.f32 0.0, %v1186
      %1188 = vmatmul.f32.gmra.mxu0 %v1077
      %v1189 = vpop.f32.mrf.mxu0
      %v1190 = vadd.f32 0.0, %v1189
      %1191 = vmatmul.f32.gmra.mxu0 %v1080
      %v1192 = vpop.f32.mrf.mxu0
      %v1193 = vadd.f32 0.0, %v1192
      %1194 = vmatmul.f32.gmra.mxu0 %v1083
      %v1195 = vpop.f32.mrf.mxu0
      %v1196 = vadd.f32 0.0, %v1195
      %1197 = vmatmul.f32.gmra.mxu0 %v1086
      %v1198 = vpop.f32.mrf.mxu0
      %v1199 = vadd.f32 0.0, %v1198
      %1200 = vmatmul.f32.gmra.mxu0 %v1089
      %v1201 = vpop.f32.mrf.mxu0
      %v1202 = vadd.f32 0.0, %v1201
      %1203 = vmatmul.f32.gmra.mxu0 %v1092
      %v1204 = vpop.f32.mrf.mxu0
      %v1205 = vadd.f32 0.0, %v1204
      %1206 = vmatmul.f32.gmra.mxu0 %v1095
      %v1207 = vpop.f32.mrf.mxu0
      %v1208 = vadd.f32 0.0, %v1207
      %1209 = vmatmul.f32.gmra.mxu0 %v1098
      %v1210 = vpop.f32.mrf.mxu0
      %v1211 = vadd.f32 0.0, %v1210
      %1212 = vmatmul.f32.gmra.mxu0 %v1101
      %v1213 = vpop.f32.mrf.mxu0
      %v1214 = vadd.f32 0.0, %v1213
      %1215 = vmatmul.f32.gmra.mxu0 %v1104
      %v1216 = vpop.f32.mrf.mxu0
      %v1217 = vadd.f32 0.0, %v1216
      %1218 = vmatmul.f32.gmra.mxu0 %v1107
      %v1219 = vpop.f32.mrf.mxu0
      %v1220 = vadd.f32 0.0, %v1219
      %1221 = vmatmul.f32.gmra.mxu0 %v1110
      %v1222 = vpop.f32.mrf.mxu0
      %v1223 = vadd.f32 0.0, %v1222
      %1224 = vmatmul.f32.gmra.mxu0 %v1113
      %v1225 = vpop.f32.mrf.mxu0
      %v1226 = vadd.f32 0.0, %v1225
      %1227 = vmatmul.f32.gmra.mxu0 %v1116
      %v1228 = vpop.f32.mrf.mxu0
      %v1229 = vadd.f32 0.0, %v1228
      %1230 = vdwg.mxu0
      %v1231 = vadd.f32 %v948, %v1136
      %v1232 = vadd.f32 %v949, %v1139
      %v1233 = vadd.f32 %v950, %v1142
      %v1234 = vadd.f32 %v951, %v1145
      %v1235 = vadd.f32 %v952, %v1148
      %v1236 = vadd.f32 %v953, %v1151
      %v1237 = vadd.f32 %v954, %v1154
      %v1238 = vadd.f32 %v955, %v1157
      %v1239 = vadd.f32 %v956, %v1160
      %v1240 = vadd.f32 %v957, %v1163
      %v1241 = vadd.f32 %v958, %v1166
      %v1242 = vadd.f32 %v959, %v1169
      %v1243 = vadd.f32 %v960, %v1172
      %v1244 = vadd.f32 %v961, %v1175
      %v1245 = vadd.f32 %v962, %v1178
      %v1246 = vadd.f32 %v963, %v1181
      %v1247 = vadd.f32 %v964, %v1184
      %v1248 = vadd.f32 %v965, %v1187
      %v1249 = vadd.f32 %v966, %v1190
      %v1250 = vadd.f32 %v967, %v1193
      %v1251 = vadd.f32 %v968, %v1196
      %v1252 = vadd.f32 %v969, %v1199
      %v1253 = vadd.f32 %v970, %v1202
      %v1254 = vadd.f32 %v971, %v1205
      %v1255 = vadd.f32 %v972, %v1208
      %v1256 = vadd.f32 %v973, %v1211
      %v1257 = vadd.f32 %v974, %v1214
      %v1258 = vadd.f32 %v975, %v1217
      %v1259 = vadd.f32 %v976, %v1220
      %v1260 = vadd.f32 %v977, %v1223
      %v1261 = vadd.f32 %v978, %v1226
      %v1262 = vadd.f32 %v979, %v1229
      %v1263 = vld [vmem:[%s980 + $0x1] sm:$0xff]
      %v1264 = vld [vmem:[%s980 + $0x9] sm:$0xff]
      %v1265 = vld [vmem:[%s980 + $0x19] sm:$0xff]
      %v1266 = vld [vmem:[%s980 + $0x21] sm:$0xff]
      %v1267 = vld [vmem:[%s980 + $0x31] sm:$0xff]
      %v1268 = vld [vmem:[%s980 + $0x39] sm:$0xff]
      %v1269 = vld [vmem:[%s980 + $0x49] sm:$0xff]
      %v1270 = vld [vmem:[%s980 + $0x51] sm:$0xff]
      %v1271 = vld [vmem:[%s980 + $0x61] sm:$0xff]
      %v1272 = vld [vmem:[%s980 + $0x69] sm:$0xff]
      %v1273 = vld [vmem:[%s980 + $0x79] sm:$0xff]
      %v1274 = vld [vmem:[%s980 + $0x81] sm:$0xff]
      %v1275 = vld [vmem:[%s980 + $0x91] sm:$0xff]
      %v1276 = vld [vmem:[%s980 + $0x99] sm:$0xff]
      %v1277 = vld [vmem:[%s980 + $0xa9] sm:$0xff]
      %v1278 = vld [vmem:[%s980 + $0xb1] sm:$0xff]
      %v1279 = vld [vmem:[%s980 + $0xc1] sm:$0xff]
      %v1280 = vld [vmem:[%s980 + $0xc9] sm:$0xff]
      %v1281 = vld [vmem:[%s980 + $0xd9] sm:$0xff]
      %v1282 = vld [vmem:[%s980 + $0xe1] sm:$0xff]
      %v1283 = vld [vmem:[%s980 + $0xf1] sm:$0xff]
      %v1284 = vld [vmem:[%s980 + $0xf9] sm:$0xff]
      %v1285 = vld [vmem:[%s980 + $0x109] sm:$0xff]
      %v1286 = vld [vmem:[%s980 + $0x111] sm:$0xff]
      %v1287 = vld [vmem:[%s980 + $0x121] sm:$0xff]
      %v1288 = vld [vmem:[%s980 + $0x129] sm:$0xff]
      %v1289 = vld [vmem:[%s980 + $0x139] sm:$0xff]
      %v1290 = vld [vmem:[%s980 + $0x141] sm:$0xff]
      %v1291 = vld [vmem:[%s980 + $0x151] sm:$0xff]
      %v1292 = vld [vmem:[%s980 + $0x159] sm:$0xff]
      %v1293 = vld [vmem:[%s980 + $0x169] sm:$0xff]
      %v1294 = vld [vmem:[%s980 + $0x171] sm:$0xff]
      %s1295 = scalar_lea.vmem %s1, 256
      %v1296 = vld [vmem:[%s1295] sm:$0xff]
      %v1297 = vld [vmem:[%s1295 + $0x8] sm:$0xff]
      %v1298 = vld [vmem:[%s1295 + $0x10] sm:$0xff]
      %v1299 = vld [vmem:[%s1295 + $0x18] sm:$0xff]
      %v1300 = vld [vmem:[%s1295 + $0x20] sm:$0xff]
      %v1301 = vld [vmem:[%s1295 + $0x28] sm:$0xff]
      %v1302 = vld [vmem:[%s1295 + $0x30] sm:$0xff]
      %v1303 = vld [vmem:[%s1295 + $0x38] sm:$0xff]
      %v1305 = vsel %vm279, %v1263, 0
      %v1308 = vsel %vm279, %v1264, 0
      %v1311 = vsel %vm279, %v1265, 0
      %v1314 = vsel %vm279, %v1266, 0
      %v1317 = vsel %vm279, %v1267, 0
      %v1320 = vsel %vm279, %v1268, 0
      %v1323 = vsel %vm279, %v1269, 0
      %v1326 = vsel %vm279, %v1270, 0
      %v1329 = vsel %vm279, %v1271, 0
      %v1332 = vsel %vm279, %v1272, 0
      %v1335 = vsel %vm279, %v1273, 0
      %v1338 = vsel %vm279, %v1274, 0
      %v1341 = vsel %vm279, %v1275, 0
      %v1344 = vsel %vm279, %v1276, 0
      %v1347 = vsel %vm279, %v1277, 0
      %v1350 = vsel %vm279, %v1278, 0
      %v1353 = vsel %vm279, %v1279, 0
      %v1356 = vsel %vm279, %v1280, 0
      %v1359 = vsel %vm279, %v1281, 0
      %v1362 = vsel %vm279, %v1282, 0
      %v1365 = vsel %vm279, %v1283, 0
      %v1368 = vsel %vm279, %v1284, 0
      %v1371 = vsel %vm279, %v1285, 0
      %v1374 = vsel %vm279, %v1286, 0
      %v1377 = vsel %vm279, %v1287, 0
      %v1380 = vsel %vm279, %v1288, 0
      %v1383 = vsel %vm279, %v1289, 0
      %v1386 = vsel %vm279, %v1290, 0
      %v1389 = vsel %vm279, %v1291, 0
      %v1392 = vsel %vm279, %v1292, 0
      %v1395 = vsel %vm279, %v1293, 0
      %v1398 = vsel %vm279, %v1294, 0
      %1400 = vmatpush.msra.mxu0 0.0
      %1401 = vmatpush.msra.mxu0 0.0
      %1402 = vmatpush.msra.mxu0 0.0
      %1403 = vmatpush.msra.mxu0 0.0
      %1404 = vmatpush.msra.mxu0 0.0
      %1405 = vmatpush.msra.mxu0 0.0
      %1406 = vmatpush.msra.mxu0 0.0
      %1407 = vmatpush.msra.mxu0 0.0
      %1408 = vmatpush.msra.mxu0 %v1303
      %1409 = vmatpush.msra.mxu0 %v1302
      %1410 = vmatpush.msra.mxu0 %v1301
      %1411 = vmatpush.msra.mxu0 %v1300
      %1412 = vmatpush.msra.mxu0 %v1299
      %1413 = vmatpush.msra.mxu0 %v1298
      %1414 = vmatpush.msra.mxu0 %v1297
      %1415 = vmatpush.msra.mxu0 %v1296
      %1416 = vmatmul.f32.gmra.mxu0 %v1305
      %v1417 = vpop.f32.mrf.mxu0
      %v1418 = vadd.f32 0.0, %v1417
      %1419 = vmatmul.f32.gmra.mxu0 %v1308
      %v1420 = vpop.f32.mrf.mxu0
      %v1421 = vadd.f32 0.0, %v1420
      %1422 = vmatmul.f32.gmra.mxu0 %v1311
      %v1423 = vpop.f32.mrf.mxu0
      %v1424 = vadd.f32 0.0, %v1423
      %1425 = vmatmul.f32.gmra.mxu0 %v1314
      %v1426 = vpop.f32.mrf.mxu0
      %v1427 = vadd.f32 0.0, %v1426
      %1428 = vmatmul.f32.gmra.mxu0 %v1317
      %v1429 = vpop.f32.mrf.mxu0
      %v1430 = vadd.f32 0.0, %v1429
      %1431 = vmatmul.f32.gmra.mxu0 %v1320
      %v1432 = vpop.f32.mrf.mxu0
      %v1433 = vadd.f32 0.0, %v1432
      %1434 = vmatmul.f32.gmra.mxu0 %v1323
      %v1435 = vpop.f32.mrf.mxu0
      %v1436 = vadd.f32 0.0, %v1435
      %1437 = vmatmul.f32.gmra.mxu0 %v1326
      %v1438 = vpop.f32.mrf.mxu0
      %v1439 = vadd.f32 0.0, %v1438
      %1440 = vmatmul.f32.gmra.mxu0 %v1329
      %v1441 = vpop.f32.mrf.mxu0
      %v1442 = vadd.f32 0.0, %v1441
      %1443 = vmatmul.f32.gmra.mxu0 %v1332
      %v1444 = vpop.f32.mrf.mxu0
      %v1445 = vadd.f32 0.0, %v1444
      %1446 = vmatmul.f32.gmra.mxu0 %v1335
      %v1447 = vpop.f32.mrf.mxu0
      %v1448 = vadd.f32 0.0, %v1447
      %1449 = vmatmul.f32.gmra.mxu0 %v1338
      %v1450 = vpop.f32.mrf.mxu0
      %v1451 = vadd.f32 0.0, %v1450
      %1452 = vmatmul.f32.gmra.mxu0 %v1341
      %v1453 = vpop.f32.mrf.mxu0
      %v1454 = vadd.f32 0.0, %v1453
      %1455 = vmatmul.f32.gmra.mxu0 %v1344
      %v1456 = vpop.f32.mrf.mxu0
      %v1457 = vadd.f32 0.0, %v1456
      %1458 = vmatmul.f32.gmra.mxu0 %v1347
      %v1459 = vpop.f32.mrf.mxu0
      %v1460 = vadd.f32 0.0, %v1459
      %1461 = vmatmul.f32.gmra.mxu0 %v1350
      %v1462 = vpop.f32.mrf.mxu0
      %v1463 = vadd.f32 0.0, %v1462
      %1464 = vmatmul.f32.gmra.mxu0 %v1353
      %v1465 = vpop.f32.mrf.mxu0
      %v1466 = vadd.f32 0.0, %v1465
      %1467 = vmatmul.f32.gmra.mxu0 %v1356
      %v1468 = vpop.f32.mrf.mxu0
      %v1469 = vadd.f32 0.0, %v1468
      %1470 = vmatmul.f32.gmra.mxu0 %v1359
      %v1471 = vpop.f32.mrf.mxu0
      %v1472 = vadd.f32 0.0, %v1471
      %1473 = vmatmul.f32.gmra.mxu0 %v1362
      %v1474 = vpop.f32.mrf.mxu0
      %v1475 = vadd.f32 0.0, %v1474
      %1476 = vmatmul.f32.gmra.mxu0 %v1365
      %v1477 = vpop.f32.mrf.mxu0
      %v1478 = vadd.f32 0.0, %v1477
      %1479 = vmatmul.f32.gmra.mxu0 %v1368
      %v1480 = vpop.f32.mrf.mxu0
      %v1481 = vadd.f32 0.0, %v1480
      %1482 = vmatmul.f32.gmra.mxu0 %v1371
      %v1483 = vpop.f32.mrf.mxu0
      %v1484 = vadd.f32 0.0, %v1483
      %1485 = vmatmul.f32.gmra.mxu0 %v1374
      %v1486 = vpop.f32.mrf.mxu0
      %v1487 = vadd.f32 0.0, %v1486
      %1488 = vmatmul.f32.gmra.mxu0 %v1377
      %v1489 = vpop.f32.mrf.mxu0
      %v1490 = vadd.f32 0.0, %v1489
      %1491 = vmatmul.f32.gmra.mxu0 %v1380
      %v1492 = vpop.f32.mrf.mxu0
      %v1493 = vadd.f32 0.0, %v1492
      %1494 = vmatmul.f32.gmra.mxu0 %v1383
      %v1495 = vpop.f32.mrf.mxu0
      %v1496 = vadd.f32 0.0, %v1495
      %1497 = vmatmul.f32.gmra.mxu0 %v1386
      %v1498 = vpop.f32.mrf.mxu0
      %v1499 = vadd.f32 0.0, %v1498
      %1500 = vmatmul.f32.gmra.mxu0 %v1389
      %v1501 = vpop.f32.mrf.mxu0
      %v1502 = vadd.f32 0.0, %v1501
      %1503 = vmatmul.f32.gmra.mxu0 %v1392
      %v1504 = vpop.f32.mrf.mxu0
      %v1505 = vadd.f32 0.0, %v1504
      %1506 = vmatmul.f32.gmra.mxu0 %v1395
      %v1507 = vpop.f32.mrf.mxu0
      %v1508 = vadd.f32 0.0, %v1507
      %1509 = vmatmul.f32.gmra.mxu0 %v1398
      %v1510 = vpop.f32.mrf.mxu0
      %v1511 = vadd.f32 0.0, %v1510
      %1512 = vdwg.mxu0
      %v1513 = vadd.f32 %v1231, %v1418
      %v1514 = vadd.f32 %v1232, %v1421
      %v1515 = vadd.f32 %v1233, %v1424
      %v1516 = vadd.f32 %v1234, %v1427
      %v1517 = vadd.f32 %v1235, %v1430
      %v1518 = vadd.f32 %v1236, %v1433
      %v1519 = vadd.f32 %v1237, %v1436
      %v1520 = vadd.f32 %v1238, %v1439
      %v1521 = vadd.f32 %v1239, %v1442
      %v1522 = vadd.f32 %v1240, %v1445
      %v1523 = vadd.f32 %v1241, %v1448
      %v1524 = vadd.f32 %v1242, %v1451
      %v1525 = vadd.f32 %v1243, %v1454
      %v1526 = vadd.f32 %v1244, %v1457
      %v1527 = vadd.f32 %v1245, %v1460
      %v1528 = vadd.f32 %v1246, %v1463
      %v1529 = vadd.f32 %v1247, %v1466
      %v1530 = vadd.f32 %v1248, %v1469
      %v1531 = vadd.f32 %v1249, %v1472
      %v1532 = vadd.f32 %v1250, %v1475
      %v1533 = vadd.f32 %v1251, %v1478
      %v1534 = vadd.f32 %v1252, %v1481
      %v1535 = vadd.f32 %v1253, %v1484
      %v1536 = vadd.f32 %v1254, %v1487
      %v1537 = vadd.f32 %v1255, %v1490
      %v1538 = vadd.f32 %v1256, %v1493
      %v1539 = vadd.f32 %v1257, %v1496
      %v1540 = vadd.f32 %v1258, %v1499
      %v1541 = vadd.f32 %v1259, %v1502
      %v1542 = vadd.f32 %v1260, %v1505
      %v1543 = vadd.f32 %v1261, %v1508
      %v1544 = vadd.f32 %v1262, %v1511
      %v1545 = vld [vmem:[%s980 + $0x2] sm:$0xff]
      %v1546 = vld [vmem:[%s980 + $0xa] sm:$0xff]
      %v1547 = vld [vmem:[%s980 + $0x1a] sm:$0xff]
      %v1548 = vld [vmem:[%s980 + $0x22] sm:$0xff]
      %v1549 = vld [vmem:[%s980 + $0x32] sm:$0xff]
      %v1550 = vld [vmem:[%s980 + $0x3a] sm:$0xff]
      %v1551 = vld [vmem:[%s980 + $0x4a] sm:$0xff]
      %v1552 = vld [vmem:[%s980 + $0x52] sm:$0xff]
      %v1553 = vld [vmem:[%s980 + $0x62] sm:$0xff]
      %v1554 = vld [vmem:[%s980 + $0x6a] sm:$0xff]
      %v1555 = vld [vmem:[%s980 + $0x7a] sm:$0xff]
      %v1556 = vld [vmem:[%s980 + $0x82] sm:$0xff]
      %v1557 = vld [vmem:[%s980 + $0x92] sm:$0xff]
      %v1558 = vld [vmem:[%s980 + $0x9a] sm:$0xff]
      %v1559 = vld [vmem:[%s980 + $0xaa] sm:$0xff]
      %v1560 = vld [vmem:[%s980 + $0xb2] sm:$0xff]
      %v1561 = vld [vmem:[%s980 + $0xc2] sm:$0xff]
      %v1562 = vld [vmem:[%s980 + $0xca] sm:$0xff]
      %v1563 = vld [vmem:[%s980 + $0xda] sm:$0xff]
      %v1564 = vld [vmem:[%s980 + $0xe2] sm:$0xff]
      %v1565 = vld [vmem:[%s980 + $0xf2] sm:$0xff]
      %v1566 = vld [vmem:[%s980 + $0xfa] sm:$0xff]
      %v1567 = vld [vmem:[%s980 + $0x10a] sm:$0xff]
      %v1568 = vld [vmem:[%s980 + $0x112] sm:$0xff]
      %v1569 = vld [vmem:[%s980 + $0x122] sm:$0xff]
      %v1570 = vld [vmem:[%s980 + $0x12a] sm:$0xff]
      %v1571 = vld [vmem:[%s980 + $0x13a] sm:$0xff]
      %v1572 = vld [vmem:[%s980 + $0x142] sm:$0xff]
      %v1573 = vld [vmem:[%s980 + $0x152] sm:$0xff]
      %v1574 = vld [vmem:[%s980 + $0x15a] sm:$0xff]
      %v1575 = vld [vmem:[%s980 + $0x16a] sm:$0xff]
      %v1576 = vld [vmem:[%s980 + $0x172] sm:$0xff]
      %s1577 = scalar_lea.vmem %s1, 320
      %v1578 = vld [vmem:[%s1577] sm:$0xff]
      %v1579 = vld [vmem:[%s1577 + $0x8] sm:$0xff]
      %v1580 = vld [vmem:[%s1577 + $0x10] sm:$0xff]
      %v1581 = vld [vmem:[%s1577 + $0x18] sm:$0xff]
      %v1582 = vld [vmem:[%s1577 + $0x20] sm:$0xff]
      %v1583 = vld [vmem:[%s1577 + $0x28] sm:$0xff]
      %v1584 = vld [vmem:[%s1577 + $0x30] sm:$0xff]
      %v1585 = vld [vmem:[%s1577 + $0x38] sm:$0xff]
      %v1587 = vsel %vm279, %v1545, 0
      %v1590 = vsel %vm279, %v1546, 0
      %v1593 = vsel %vm279, %v1547, 0
      %v1596 = vsel %vm279, %v1548, 0
      %v1599 = vsel %vm279, %v1549, 0
      %v1602 = vsel %vm279, %v1550, 0
      %v1605 = vsel %vm279, %v1551, 0
      %v1608 = vsel %vm279, %v1552, 0
      %v1611 = vsel %vm279, %v1553, 0
      %v1614 = vsel %vm279, %v1554, 0
      %v1617 = vsel %vm279, %v1555, 0
      %v1620 = vsel %vm279, %v1556, 0
      %v1623 = vsel %vm279, %v1557, 0
      %v1626 = vsel %vm279, %v1558, 0
      %v1629 = vsel %vm279, %v1559, 0
      %v1632 = vsel %vm279, %v1560, 0
      %v1635 = vsel %vm279, %v1561, 0
      %v1638 = vsel %vm279, %v1562, 0
      %v1641 = vsel %vm279, %v1563, 0
      %v1644 = vsel %vm279, %v1564, 0
      %v1647 = vsel %vm279, %v1565, 0
      %v1650 = vsel %vm279, %v1566, 0
      %v1653 = vsel %vm279, %v1567, 0
      %v1656 = vsel %vm279, %v1568, 0
      %v1659 = vsel %vm279, %v1569, 0
      %v1662 = vsel %vm279, %v1570, 0
      %v1665 = vsel %vm279, %v1571, 0
      %v1668 = vsel %vm279, %v1572, 0
      %v1671 = vsel %vm279, %v1573, 0
      %v1674 = vsel %vm279, %v1574, 0
      %v1677 = vsel %vm279, %v1575, 0
      %v1680 = vsel %vm279, %v1576, 0
      %1682 = vmatpush.msra.mxu0 0.0
      %1683 = vmatpush.msra.mxu0 0.0
      %1684 = vmatpush.msra.mxu0 0.0
      %1685 = vmatpush.msra.mxu0 0.0
      %1686 = vmatpush.msra.mxu0 0.0
      %1687 = vmatpush.msra.mxu0 0.0
      %1688 = vmatpush.msra.mxu0 0.0
      %1689 = vmatpush.msra.mxu0 0.0
      %1690 = vmatpush.msra.mxu0 %v1585
      %1691 = vmatpush.msra.mxu0 %v1584
      %1692 = vmatpush.msra.mxu0 %v1583
      %1693 = vmatpush.msra.mxu0 %v1582
      %1694 = vmatpush.msra.mxu0 %v1581
      %1695 = vmatpush.msra.mxu0 %v1580
      %1696 = vmatpush.msra.mxu0 %v1579
      %1697 = vmatpush.msra.mxu0 %v1578
      %1698 = vmatmul.f32.gmra.mxu0 %v1587
      %v1699 = vpop.f32.mrf.mxu0
      %v1700 = vadd.f32 0.0, %v1699
      %1701 = vmatmul.f32.gmra.mxu0 %v1590
      %v1702 = vpop.f32.mrf.mxu0
      %v1703 = vadd.f32 0.0, %v1702
      %1704 = vmatmul.f32.gmra.mxu0 %v1593
      %v1705 = vpop.f32.mrf.mxu0
      %v1706 = vadd.f32 0.0, %v1705
      %1707 = vmatmul.f32.gmra.mxu0 %v1596
      %v1708 = vpop.f32.mrf.mxu0
      %v1709 = vadd.f32 0.0, %v1708
      %1710 = vmatmul.f32.gmra.mxu0 %v1599
      %v1711 = vpop.f32.mrf.mxu0
      %v1712 = vadd.f32 0.0, %v1711
      %1713 = vmatmul.f32.gmra.mxu0 %v1602
      %v1714 = vpop.f32.mrf.mxu0
      %v1715 = vadd.f32 0.0, %v1714
      %1716 = vmatmul.f32.gmra.mxu0 %v1605
      %v1717 = vpop.f32.mrf.mxu0
      %v1718 = vadd.f32 0.0, %v1717
      %1719 = vmatmul.f32.gmra.mxu0 %v1608
      %v1720 = vpop.f32.mrf.mxu0
      %v1721 = vadd.f32 0.0, %v1720
      %1722 = vmatmul.f32.gmra.mxu0 %v1611
      %v1723 = vpop.f32.mrf.mxu0
      %v1724 = vadd.f32 0.0, %v1723
      %1725 = vmatmul.f32.gmra.mxu0 %v1614
      %v1726 = vpop.f32.mrf.mxu0
      %v1727 = vadd.f32 0.0, %v1726
      %1728 = vmatmul.f32.gmra.mxu0 %v1617
      %v1729 = vpop.f32.mrf.mxu0
      %v1730 = vadd.f32 0.0, %v1729
      %1731 = vmatmul.f32.gmra.mxu0 %v1620
      %v1732 = vpop.f32.mrf.mxu0
      %v1733 = vadd.f32 0.0, %v1732
      %1734 = vmatmul.f32.gmra.mxu0 %v1623
      %v1735 = vpop.f32.mrf.mxu0
      %v1736 = vadd.f32 0.0, %v1735
      %1737 = vmatmul.f32.gmra.mxu0 %v1626
      %v1738 = vpop.f32.mrf.mxu0
      %v1739 = vadd.f32 0.0, %v1738
      %1740 = vmatmul.f32.gmra.mxu0 %v1629
      %v1741 = vpop.f32.mrf.mxu0
      %v1742 = vadd.f32 0.0, %v1741
      %1743 = vmatmul.f32.gmra.mxu0 %v1632
      %v1744 = vpop.f32.mrf.mxu0
      %v1745 = vadd.f32 0.0, %v1744
      %1746 = vmatmul.f32.gmra.mxu0 %v1635
      %v1747 = vpop.f32.mrf.mxu0
      %v1748 = vadd.f32 0.0, %v1747
      %1749 = vmatmul.f32.gmra.mxu0 %v1638
      %v1750 = vpop.f32.mrf.mxu0
      %v1751 = vadd.f32 0.0, %v1750
      %1752 = vmatmul.f32.gmra.mxu0 %v1641
      %v1753 = vpop.f32.mrf.mxu0
      %v1754 = vadd.f32 0.0, %v1753
      %1755 = vmatmul.f32.gmra.mxu0 %v1644
      %v1756 = vpop.f32.mrf.mxu0
      %v1757 = vadd.f32 0.0, %v1756
      %1758 = vmatmul.f32.gmra.mxu0 %v1647
      %v1759 = vpop.f32.mrf.mxu0
      %v1760 = vadd.f32 0.0, %v1759
      %1761 = vmatmul.f32.gmra.mxu0 %v1650
      %v1762 = vpop.f32.mrf.mxu0
      %v1763 = vadd.f32 0.0, %v1762
      %1764 = vmatmul.f32.gmra.mxu0 %v1653
      %v1765 = vpop.f32.mrf.mxu0
      %v1766 = vadd.f32 0.0, %v1765
      %1767 = vmatmul.f32.gmra.mxu0 %v1656
      %v1768 = vpop.f32.mrf.mxu0
      %v1769 = vadd.f32 0.0, %v1768
      %1770 = vmatmul.f32.gmra.mxu0 %v1659
      %v1771 = vpop.f32.mrf.mxu0
      %v1772 = vadd.f32 0.0, %v1771
      %1773 = vmatmul.f32.gmra.mxu0 %v1662
      %v1774 = vpop.f32.mrf.mxu0
      %v1775 = vadd.f32 0.0, %v1774
      %1776 = vmatmul.f32.gmra.mxu0 %v1665
      %v1777 = vpop.f32.mrf.mxu0
      %v1778 = vadd.f32 0.0, %v1777
      %1779 = vmatmul.f32.gmra.mxu0 %v1668
      %v1780 = vpop.f32.mrf.mxu0
      %v1781 = vadd.f32 0.0, %v1780
      %1782 = vmatmul.f32.gmra.mxu0 %v1671
      %v1783 = vpop.f32.mrf.mxu0
      %v1784 = vadd.f32 0.0, %v1783
      %1785 = vmatmul.f32.gmra.mxu0 %v1674
      %v1786 = vpop.f32.mrf.mxu0
      %v1787 = vadd.f32 0.0, %v1786
      %1788 = vmatmul.f32.gmra.mxu0 %v1677
      %v1789 = vpop.f32.mrf.mxu0
      %v1790 = vadd.f32 0.0, %v1789
      %1791 = vmatmul.f32.gmra.mxu0 %v1680
      %v1792 = vpop.f32.mrf.mxu0
      %v1793 = vadd.f32 0.0, %v1792
      %1794 = vdwg.mxu0
      %v1795 = vadd.f32 %v1513, %v1700
      %v1796 = vadd.f32 %v1514, %v1703
      %v1797 = vadd.f32 %v1515, %v1706
      %v1798 = vadd.f32 %v1516, %v1709
      %v1799 = vadd.f32 %v1517, %v1712
      %v1800 = vadd.f32 %v1518, %v1715
      %v1801 = vadd.f32 %v1519, %v1718
      %v1802 = vadd.f32 %v1520, %v1721
      %v1803 = vadd.f32 %v1521, %v1724
      %v1804 = vadd.f32 %v1522, %v1727
      %v1805 = vadd.f32 %v1523, %v1730
      %v1806 = vadd.f32 %v1524, %v1733
      %v1807 = vadd.f32 %v1525, %v1736
      %v1808 = vadd.f32 %v1526, %v1739
      %v1809 = vadd.f32 %v1527, %v1742
      %v1810 = vadd.f32 %v1528, %v1745
      %v1811 = vadd.f32 %v1529, %v1748
      %v1812 = vadd.f32 %v1530, %v1751
      %v1813 = vadd.f32 %v1531, %v1754
      %v1814 = vadd.f32 %v1532, %v1757
      %v1815 = vadd.f32 %v1533, %v1760
      %v1816 = vadd.f32 %v1534, %v1763
      %v1817 = vadd.f32 %v1535, %v1766
      %v1818 = vadd.f32 %v1536, %v1769
      %v1819 = vadd.f32 %v1537, %v1772
      %v1820 = vadd.f32 %v1538, %v1775
      %v1821 = vadd.f32 %v1539, %v1778
      %v1822 = vadd.f32 %v1540, %v1781
      %v1823 = vadd.f32 %v1541, %v1784
      %v1824 = vadd.f32 %v1542, %v1787
      %v1825 = vadd.f32 %v1543, %v1790
      %v1826 = vadd.f32 %v1544, %v1793
      %s1827 = scalar_lea.vmem %s192, 48
      %v1828 = vld [vmem:[%s1827] sm:$0xff]
      %v1829 = vld [vmem:[%s1827 + $0x8] sm:$0xff]
      %v1830 = vld [vmem:[%s1827 + $0x18] sm:$0xff]
      %v1831 = vld [vmem:[%s1827 + $0x20] sm:$0xff]
      %v1832 = vld [vmem:[%s1827 + $0x30] sm:$0xff]
      %v1833 = vld [vmem:[%s1827 + $0x38] sm:$0xff]
      %v1834 = vld [vmem:[%s1827 + $0x48] sm:$0xff]
      %v1835 = vld [vmem:[%s1827 + $0x50] sm:$0xff]
      %v1836 = vld [vmem:[%s1827 + $0x60] sm:$0xff]
      %v1837 = vld [vmem:[%s1827 + $0x68] sm:$0xff]
      %v1838 = vld [vmem:[%s1827 + $0x78] sm:$0xff]
      %v1839 = vld [vmem:[%s1827 + $0x80] sm:$0xff]
      %v1840 = vld [vmem:[%s1827 + $0x90] sm:$0xff]
      %v1841 = vld [vmem:[%s1827 + $0x98] sm:$0xff]
      %v1842 = vld [vmem:[%s1827 + $0xa8] sm:$0xff]
      %v1843 = vld [vmem:[%s1827 + $0xb0] sm:$0xff]
      %v1844 = vld [vmem:[%s1827 + $0xc0] sm:$0xff]
      %v1845 = vld [vmem:[%s1827 + $0xc8] sm:$0xff]
      %v1846 = vld [vmem:[%s1827 + $0xd8] sm:$0xff]
      %v1847 = vld [vmem:[%s1827 + $0xe0] sm:$0xff]
      %v1848 = vld [vmem:[%s1827 + $0xf0] sm:$0xff]
      %v1849 = vld [vmem:[%s1827 + $0xf8] sm:$0xff]
      %v1850 = vld [vmem:[%s1827 + $0x108] sm:$0xff]
      %v1851 = vld [vmem:[%s1827 + $0x110] sm:$0xff]
      %v1852 = vld [vmem:[%s1827 + $0x120] sm:$0xff]
      %v1853 = vld [vmem:[%s1827 + $0x128] sm:$0xff]
      %v1854 = vld [vmem:[%s1827 + $0x138] sm:$0xff]
      %v1855 = vld [vmem:[%s1827 + $0x140] sm:$0xff]
      %v1856 = vld [vmem:[%s1827 + $0x150] sm:$0xff]
      %v1857 = vld [vmem:[%s1827 + $0x158] sm:$0xff]
      %v1858 = vld [vmem:[%s1827 + $0x168] sm:$0xff]
      %v1859 = vld [vmem:[%s1827 + $0x170] sm:$0xff]
      %s1860 = scalar_lea.vmem %s1, 384
      %v1861 = vld [vmem:[%s1860] sm:$0xff]
      %v1862 = vld [vmem:[%s1860 + $0x8] sm:$0xff]
      %v1863 = vld [vmem:[%s1860 + $0x10] sm:$0xff]
      %v1864 = vld [vmem:[%s1860 + $0x18] sm:$0xff]
      %v1865 = vld [vmem:[%s1860 + $0x20] sm:$0xff]
      %v1866 = vld [vmem:[%s1860 + $0x28] sm:$0xff]
      %v1867 = vld [vmem:[%s1860 + $0x30] sm:$0xff]
      %v1868 = vld [vmem:[%s1860 + $0x38] sm:$0xff]
      %v1870 = vsel %vm279, %v1828, 0
      %v1873 = vsel %vm279, %v1829, 0
      %v1876 = vsel %vm279, %v1830, 0
      %v1879 = vsel %vm279, %v1831, 0
      %v1882 = vsel %vm279, %v1832, 0
      %v1885 = vsel %vm279, %v1833, 0
      %v1888 = vsel %vm279, %v1834, 0
      %v1891 = vsel %vm279, %v1835, 0
      %v1894 = vsel %vm279, %v1836, 0
      %v1897 = vsel %vm279, %v1837, 0
      %v1900 = vsel %vm279, %v1838, 0
      %v1903 = vsel %vm279, %v1839, 0
      %v1906 = vsel %vm279, %v1840, 0
      %v1909 = vsel %vm279, %v1841, 0
      %v1912 = vsel %vm279, %v1842, 0
      %v1915 = vsel %vm279, %v1843, 0
      %v1918 = vsel %vm279, %v1844, 0
      %v1921 = vsel %vm279, %v1845, 0
      %v1924 = vsel %vm279, %v1846, 0
      %v1927 = vsel %vm279, %v1847, 0
      %v1930 = vsel %vm279, %v1848, 0
      %v1933 = vsel %vm279, %v1849, 0
      %v1936 = vsel %vm279, %v1850, 0
      %v1939 = vsel %vm279, %v1851, 0
      %v1942 = vsel %vm279, %v1852, 0
      %v1945 = vsel %vm279, %v1853, 0
      %v1948 = vsel %vm279, %v1854, 0
      %v1951 = vsel %vm279, %v1855, 0
      %v1954 = vsel %vm279, %v1856, 0
      %v1957 = vsel %vm279, %v1857, 0
      %v1960 = vsel %vm279, %v1858, 0
      %v1963 = vsel %vm279, %v1859, 0
      %1965 = vmatpush.msra.mxu0 0.0
      %1966 = vmatpush.msra.mxu0 0.0
      %1967 = vmatpush.msra.mxu0 0.0
      %1968 = vmatpush.msra.mxu0 0.0
      %1969 = vmatpush.msra.mxu0 0.0
      %1970 = vmatpush.msra.mxu0 0.0
      %1971 = vmatpush.msra.mxu0 0.0
      %1972 = vmatpush.msra.mxu0 0.0
      %1973 = vmatpush.msra.mxu0 %v1868
      %1974 = vmatpush.msra.mxu0 %v1867
      %1975 = vmatpush.msra.mxu0 %v1866
      %1976 = vmatpush.msra.mxu0 %v1865
      %1977 = vmatpush.msra.mxu0 %v1864
      %1978 = vmatpush.msra.mxu0 %v1863
      %1979 = vmatpush.msra.mxu0 %v1862
      %1980 = vmatpush.msra.mxu0 %v1861
      %1981 = vmatmul.f32.gmra.mxu0 %v1870
      %v1982 = vpop.f32.mrf.mxu0
      %v1983 = vadd.f32 0.0, %v1982
      %1984 = vmatmul.f32.gmra.mxu0 %v1873
      %v1985 = vpop.f32.mrf.mxu0
      %v1986 = vadd.f32 0.0, %v1985
      %1987 = vmatmul.f32.gmra.mxu0 %v1876
      %v1988 = vpop.f32.mrf.mxu0
      %v1989 = vadd.f32 0.0, %v1988
      %1990 = vmatmul.f32.gmra.mxu0 %v1879
      %v1991 = vpop.f32.mrf.mxu0
      %v1992 = vadd.f32 0.0, %v1991
      %1993 = vmatmul.f32.gmra.mxu0 %v1882
      %v1994 = vpop.f32.mrf.mxu0
      %v1995 = vadd.f32 0.0, %v1994
      %1996 = vmatmul.f32.gmra.mxu0 %v1885
      %v1997 = vpop.f32.mrf.mxu0
      %v1998 = vadd.f32 0.0, %v1997
      %1999 = vmatmul.f32.gmra.mxu0 %v1888
      %v2000 = vpop.f32.mrf.mxu0
      %v2001 = vadd.f32 0.0, %v2000
      %2002 = vmatmul.f32.gmra.mxu0 %v1891
      %v2003 = vpop.f32.mrf.mxu0
      %v2004 = vadd.f32 0.0, %v2003
      %2005 = vmatmul.f32.gmra.mxu0 %v1894
      %v2006 = vpop.f32.mrf.mxu0
      %v2007 = vadd.f32 0.0, %v2006
      %2008 = vmatmul.f32.gmra.mxu0 %v1897
      %v2009 = vpop.f32.mrf.mxu0
      %v2010 = vadd.f32 0.0, %v2009
      %2011 = vmatmul.f32.gmra.mxu0 %v1900
      %v2012 = vpop.f32.mrf.mxu0
      %v2013 = vadd.f32 0.0, %v2012
      %2014 = vmatmul.f32.gmra.mxu0 %v1903
      %v2015 = vpop.f32.mrf.mxu0
      %v2016 = vadd.f32 0.0, %v2015
      %2017 = vmatmul.f32.gmra.mxu0 %v1906
      %v2018 = vpop.f32.mrf.mxu0
      %v2019 = vadd.f32 0.0, %v2018
      %2020 = vmatmul.f32.gmra.mxu0 %v1909
      %v2021 = vpop.f32.mrf.mxu0
      %v2022 = vadd.f32 0.0, %v2021
      %2023 = vmatmul.f32.gmra.mxu0 %v1912
      %v2024 = vpop.f32.mrf.mxu0
      %v2025 = vadd.f32 0.0, %v2024
      %2026 = vmatmul.f32.gmra.mxu0 %v1915
      %v2027 = vpop.f32.mrf.mxu0
      %v2028 = vadd.f32 0.0, %v2027
      %2029 = vmatmul.f32.gmra.mxu0 %v1918
      %v2030 = vpop.f32.mrf.mxu0
      %v2031 = vadd.f32 0.0, %v2030
      %2032 = vmatmul.f32.gmra.mxu0 %v1921
      %v2033 = vpop.f32.mrf.mxu0
      %v2034 = vadd.f32 0.0, %v2033
      %2035 = vmatmul.f32.gmra.mxu0 %v1924
      %v2036 = vpop.f32.mrf.mxu0
      %v2037 = vadd.f32 0.0, %v2036
      %2038 = vmatmul.f32.gmra.mxu0 %v1927
      %v2039 = vpop.f32.mrf.mxu0
      %v2040 = vadd.f32 0.0, %v2039
      %2041 = vmatmul.f32.gmra.mxu0 %v1930
      %v2042 = vpop.f32.mrf.mxu0
      %v2043 = vadd.f32 0.0, %v2042
      %2044 = vmatmul.f32.gmra.mxu0 %v1933
      %v2045 = vpop.f32.mrf.mxu0
      %v2046 = vadd.f32 0.0, %v2045
      %2047 = vmatmul.f32.gmra.mxu0 %v1936
      %v2048 = vpop.f32.mrf.mxu0
      %v2049 = vadd.f32 0.0, %v2048
      %2050 = vmatmul.f32.gmra.mxu0 %v1939
      %v2051 = vpop.f32.mrf.mxu0
      %v2052 = vadd.f32 0.0, %v2051
      %2053 = vmatmul.f32.gmra.mxu0 %v1942
      %v2054 = vpop.f32.mrf.mxu0
      %v2055 = vadd.f32 0.0, %v2054
      %2056 = vmatmul.f32.gmra.mxu0 %v1945
      %v2057 = vpop.f32.mrf.mxu0
      %v2058 = vadd.f32 0.0, %v2057
      %2059 = vmatmul.f32.gmra.mxu0 %v1948
      %v2060 = vpop.f32.mrf.mxu0
      %v2061 = vadd.f32 0.0, %v2060
      %2062 = vmatmul.f32.gmra.mxu0 %v1951
      %v2063 = vpop.f32.mrf.mxu0
      %v2064 = vadd.f32 0.0, %v2063
      %2065 = vmatmul.f32.gmra.mxu0 %v1954
      %v2066 = vpop.f32.mrf.mxu0
      %v2067 = vadd.f32 0.0, %v2066
      %2068 = vmatmul.f32.gmra.mxu0 %v1957
      %v2069 = vpop.f32.mrf.mxu0
      %v2070 = vadd.f32 0.0, %v2069
      %2071 = vmatmul.f32.gmra.mxu0 %v1960
      %v2072 = vpop.f32.mrf.mxu0
      %v2073 = vadd.f32 0.0, %v2072
      %2074 = vmatmul.f32.gmra.mxu0 %v1963
      %v2075 = vpop.f32.mrf.mxu0
      %v2076 = vadd.f32 0.0, %v2075
      %2077 = vdwg.mxu0
      %v2078 = vadd.f32 %v1795, %v1983
      %v2079 = vadd.f32 %v1796, %v1986
      %v2080 = vadd.f32 %v1797, %v1989
      %v2081 = vadd.f32 %v1798, %v1992
      %v2082 = vadd.f32 %v1799, %v1995
      %v2083 = vadd.f32 %v1800, %v1998
      %v2084 = vadd.f32 %v1801, %v2001
      %v2085 = vadd.f32 %v1802, %v2004
      %v2086 = vadd.f32 %v1803, %v2007
      %v2087 = vadd.f32 %v1804, %v2010
      %v2088 = vadd.f32 %v1805, %v2013
      %v2089 = vadd.f32 %v1806, %v2016
      %v2090 = vadd.f32 %v1807, %v2019
      %v2091 = vadd.f32 %v1808, %v2022
      %v2092 = vadd.f32 %v1809, %v2025
      %v2093 = vadd.f32 %v1810, %v2028
      %v2094 = vadd.f32 %v1811, %v2031
      %v2095 = vadd.f32 %v1812, %v2034
      %v2096 = vadd.f32 %v1813, %v2037
      %v2097 = vadd.f32 %v1814, %v2040
      %v2098 = vadd.f32 %v1815, %v2043
      %v2099 = vadd.f32 %v1816, %v2046
      %v2100 = vadd.f32 %v1817, %v2049
      %v2101 = vadd.f32 %v1818, %v2052
      %v2102 = vadd.f32 %v1819, %v2055
      %v2103 = vadd.f32 %v1820, %v2058
      %v2104 = vadd.f32 %v1821, %v2061
      %v2105 = vadd.f32 %v1822, %v2064
      %v2106 = vadd.f32 %v1823, %v2067
      %v2107 = vadd.f32 %v1824, %v2070
      %v2108 = vadd.f32 %v1825, %v2073
      %v2109 = vadd.f32 %v1826, %v2076
      %v2110 = vld [vmem:[%s1827 + $0x1] sm:$0xff]
      %v2111 = vld [vmem:[%s1827 + $0x9] sm:$0xff]
      %v2112 = vld [vmem:[%s1827 + $0x19] sm:$0xff]
      %v2113 = vld [vmem:[%s1827 + $0x21] sm:$0xff]
      %v2114 = vld [vmem:[%s1827 + $0x31] sm:$0xff]
      %v2115 = vld [vmem:[%s1827 + $0x39] sm:$0xff]
      %v2116 = vld [vmem:[%s1827 + $0x49] sm:$0xff]
      %v2117 = vld [vmem:[%s1827 + $0x51] sm:$0xff]
      %v2118 = vld [vmem:[%s1827 + $0x61] sm:$0xff]
      %v2119 = vld [vmem:[%s1827 + $0x69] sm:$0xff]
      %v2120 = vld [vmem:[%s1827 + $0x79] sm:$0xff]
      %v2121 = vld [vmem:[%s1827 + $0x81] sm:$0xff]
      %v2122 = vld [vmem:[%s1827 + $0x91] sm:$0xff]
      %v2123 = vld [vmem:[%s1827 + $0x99] sm:$0xff]
      %v2124 = vld [vmem:[%s1827 + $0xa9] sm:$0xff]
      %v2125 = vld [vmem:[%s1827 + $0xb1] sm:$0xff]
      %v2126 = vld [vmem:[%s1827 + $0xc1] sm:$0xff]
      %v2127 = vld [vmem:[%s1827 + $0xc9] sm:$0xff]
      %v2128 = vld [vmem:[%s1827 + $0xd9] sm:$0xff]
      %v2129 = vld [vmem:[%s1827 + $0xe1] sm:$0xff]
      %v2130 = vld [vmem:[%s1827 + $0xf1] sm:$0xff]
      %v2131 = vld [vmem:[%s1827 + $0xf9] sm:$0xff]
      %v2132 = vld [vmem:[%s1827 + $0x109] sm:$0xff]
      %v2133 = vld [vmem:[%s1827 + $0x111] sm:$0xff]
      %v2134 = vld [vmem:[%s1827 + $0x121] sm:$0xff]
      %v2135 = vld [vmem:[%s1827 + $0x129] sm:$0xff]
      %v2136 = vld [vmem:[%s1827 + $0x139] sm:$0xff]
      %v2137 = vld [vmem:[%s1827 + $0x141] sm:$0xff]
      %v2138 = vld [vmem:[%s1827 + $0x151] sm:$0xff]
      %v2139 = vld [vmem:[%s1827 + $0x159] sm:$0xff]
      %v2140 = vld [vmem:[%s1827 + $0x169] sm:$0xff]
      %v2141 = vld [vmem:[%s1827 + $0x171] sm:$0xff]
      %s2142 = scalar_lea.vmem %s1, 448
      %v2143 = vld [vmem:[%s2142] sm:$0xff]
      %v2144 = vld [vmem:[%s2142 + $0x8] sm:$0xff]
      %v2145 = vld [vmem:[%s2142 + $0x10] sm:$0xff]
      %v2146 = vld [vmem:[%s2142 + $0x18] sm:$0xff]
      %v2147 = vld [vmem:[%s2142 + $0x20] sm:$0xff]
      %v2148 = vld [vmem:[%s2142 + $0x28] sm:$0xff]
      %v2149 = vld [vmem:[%s2142 + $0x30] sm:$0xff]
      %v2150 = vld [vmem:[%s2142 + $0x38] sm:$0xff]
      %v2152 = vsel %vm279, %v2110, 0
      %v2155 = vsel %vm279, %v2111, 0
      %v2158 = vsel %vm279, %v2112, 0
      %v2161 = vsel %vm279, %v2113, 0
      %v2164 = vsel %vm279, %v2114, 0
      %v2167 = vsel %vm279, %v2115, 0
      %v2170 = vsel %vm279, %v2116, 0
      %v2173 = vsel %vm279, %v2117, 0
      %v2176 = vsel %vm279, %v2118, 0
      %v2179 = vsel %vm279, %v2119, 0
      %v2182 = vsel %vm279, %v2120, 0
      %v2185 = vsel %vm279, %v2121, 0
      %v2188 = vsel %vm279, %v2122, 0
      %v2191 = vsel %vm279, %v2123, 0
      %v2194 = vsel %vm279, %v2124, 0
      %v2197 = vsel %vm279, %v2125, 0
      %v2200 = vsel %vm279, %v2126, 0
      %v2203 = vsel %vm279, %v2127, 0
      %v2206 = vsel %vm279, %v2128, 0
      %v2209 = vsel %vm279, %v2129, 0
      %v2212 = vsel %vm279, %v2130, 0
      %v2215 = vsel %vm279, %v2131, 0
      %v2218 = vsel %vm279, %v2132, 0
      %v2221 = vsel %vm279, %v2133, 0
      %v2224 = vsel %vm279, %v2134, 0
      %v2227 = vsel %vm279, %v2135, 0
      %v2230 = vsel %vm279, %v2136, 0
      %v2233 = vsel %vm279, %v2137, 0
      %v2236 = vsel %vm279, %v2138, 0
      %v2239 = vsel %vm279, %v2139, 0
      %v2242 = vsel %vm279, %v2140, 0
      %v2245 = vsel %vm279, %v2141, 0
      %2247 = vmatpush.msra.mxu0 0.0
      %2248 = vmatpush.msra.mxu0 0.0
      %2249 = vmatpush.msra.mxu0 0.0
      %2250 = vmatpush.msra.mxu0 0.0
      %2251 = vmatpush.msra.mxu0 0.0
      %2252 = vmatpush.msra.mxu0 0.0
      %2253 = vmatpush.msra.mxu0 0.0
      %2254 = vmatpush.msra.mxu0 0.0
      %2255 = vmatpush.msra.mxu0 %v2150
      %2256 = vmatpush.msra.mxu0 %v2149
      %2257 = vmatpush.msra.mxu0 %v2148
      %2258 = vmatpush.msra.mxu0 %v2147
      %2259 = vmatpush.msra.mxu0 %v2146
      %2260 = vmatpush.msra.mxu0 %v2145
      %2261 = vmatpush.msra.mxu0 %v2144
      %2262 = vmatpush.msra.mxu0 %v2143
      %2263 = vmatmul.f32.gmra.mxu0 %v2152
      %v2264 = vpop.f32.mrf.mxu0
      %v2265 = vadd.f32 0.0, %v2264
      %2266 = vmatmul.f32.gmra.mxu0 %v2155
      %v2267 = vpop.f32.mrf.mxu0
      %v2268 = vadd.f32 0.0, %v2267
      %2269 = vmatmul.f32.gmra.mxu0 %v2158
      %v2270 = vpop.f32.mrf.mxu0
      %v2271 = vadd.f32 0.0, %v2270
      %2272 = vmatmul.f32.gmra.mxu0 %v2161
      %v2273 = vpop.f32.mrf.mxu0
      %v2274 = vadd.f32 0.0, %v2273
      %2275 = vmatmul.f32.gmra.mxu0 %v2164
      %v2276 = vpop.f32.mrf.mxu0
      %v2277 = vadd.f32 0.0, %v2276
      %2278 = vmatmul.f32.gmra.mxu0 %v2167
      %v2279 = vpop.f32.mrf.mxu0
      %v2280 = vadd.f32 0.0, %v2279
      %2281 = vmatmul.f32.gmra.mxu0 %v2170
      %v2282 = vpop.f32.mrf.mxu0
      %v2283 = vadd.f32 0.0, %v2282
      %2284 = vmatmul.f32.gmra.mxu0 %v2173
      %v2285 = vpop.f32.mrf.mxu0
      %v2286 = vadd.f32 0.0, %v2285
      %2287 = vmatmul.f32.gmra.mxu0 %v2176
      %v2288 = vpop.f32.mrf.mxu0
      %v2289 = vadd.f32 0.0, %v2288
      %2290 = vmatmul.f32.gmra.mxu0 %v2179
      %v2291 = vpop.f32.mrf.mxu0
      %v2292 = vadd.f32 0.0, %v2291
      %2293 = vmatmul.f32.gmra.mxu0 %v2182
      %v2294 = vpop.f32.mrf.mxu0
      %v2295 = vadd.f32 0.0, %v2294
      %2296 = vmatmul.f32.gmra.mxu0 %v2185
      %v2297 = vpop.f32.mrf.mxu0
      %v2298 = vadd.f32 0.0, %v2297
      %2299 = vmatmul.f32.gmra.mxu0 %v2188
      %v2300 = vpop.f32.mrf.mxu0
      %v2301 = vadd.f32 0.0, %v2300
      %2302 = vmatmul.f32.gmra.mxu0 %v2191
      %v2303 = vpop.f32.mrf.mxu0
      %v2304 = vadd.f32 0.0, %v2303
      %2305 = vmatmul.f32.gmra.mxu0 %v2194
      %v2306 = vpop.f32.mrf.mxu0
      %v2307 = vadd.f32 0.0, %v2306
      %2308 = vmatmul.f32.gmra.mxu0 %v2197
      %v2309 = vpop.f32.mrf.mxu0
      %v2310 = vadd.f32 0.0, %v2309
      %2311 = vmatmul.f32.gmra.mxu0 %v2200
      %v2312 = vpop.f32.mrf.mxu0
      %v2313 = vadd.f32 0.0, %v2312
      %2314 = vmatmul.f32.gmra.mxu0 %v2203
      %v2315 = vpop.f32.mrf.mxu0
      %v2316 = vadd.f32 0.0, %v2315
      %2317 = vmatmul.f32.gmra.mxu0 %v2206
      %v2318 = vpop.f32.mrf.mxu0
      %v2319 = vadd.f32 0.0, %v2318
      %2320 = vmatmul.f32.gmra.mxu0 %v2209
      %v2321 = vpop.f32.mrf.mxu0
      %v2322 = vadd.f32 0.0, %v2321
      %2323 = vmatmul.f32.gmra.mxu0 %v2212
      %v2324 = vpop.f32.mrf.mxu0
      %v2325 = vadd.f32 0.0, %v2324
      %2326 = vmatmul.f32.gmra.mxu0 %v2215
      %v2327 = vpop.f32.mrf.mxu0
      %v2328 = vadd.f32 0.0, %v2327
      %2329 = vmatmul.f32.gmra.mxu0 %v2218
      %v2330 = vpop.f32.mrf.mxu0
      %v2331 = vadd.f32 0.0, %v2330
      %2332 = vmatmul.f32.gmra.mxu0 %v2221
      %v2333 = vpop.f32.mrf.mxu0
      %v2334 = vadd.f32 0.0, %v2333
      %2335 = vmatmul.f32.gmra.mxu0 %v2224
      %v2336 = vpop.f32.mrf.mxu0
      %v2337 = vadd.f32 0.0, %v2336
      %2338 = vmatmul.f32.gmra.mxu0 %v2227
      %v2339 = vpop.f32.mrf.mxu0
      %v2340 = vadd.f32 0.0, %v2339
      %2341 = vmatmul.f32.gmra.mxu0 %v2230
      %v2342 = vpop.f32.mrf.mxu0
      %v2343 = vadd.f32 0.0, %v2342
      %2344 = vmatmul.f32.gmra.mxu0 %v2233
      %v2345 = vpop.f32.mrf.mxu0
      %v2346 = vadd.f32 0.0, %v2345
      %2347 = vmatmul.f32.gmra.mxu0 %v2236
      %v2348 = vpop.f32.mrf.mxu0
      %v2349 = vadd.f32 0.0, %v2348
      %2350 = vmatmul.f32.gmra.mxu0 %v2239
      %v2351 = vpop.f32.mrf.mxu0
      %v2352 = vadd.f32 0.0, %v2351
      %2353 = vmatmul.f32.gmra.mxu0 %v2242
      %v2354 = vpop.f32.mrf.mxu0
      %v2355 = vadd.f32 0.0, %v2354
      %2356 = vmatmul.f32.gmra.mxu0 %v2245
      %v2357 = vpop.f32.mrf.mxu0
      %v2358 = vadd.f32 0.0, %v2357
      %2359 = vdwg.mxu0
      %v2360 = vadd.f32 %v2078, %v2265
      %v2361 = vadd.f32 %v2079, %v2268
      %v2362 = vadd.f32 %v2080, %v2271
      %v2363 = vadd.f32 %v2081, %v2274
      %v2364 = vadd.f32 %v2082, %v2277
      %v2365 = vadd.f32 %v2083, %v2280
      %v2366 = vadd.f32 %v2084, %v2283
      %v2367 = vadd.f32 %v2085, %v2286
      %v2368 = vadd.f32 %v2086, %v2289
      %v2369 = vadd.f32 %v2087, %v2292
      %v2370 = vadd.f32 %v2088, %v2295
      %v2371 = vadd.f32 %v2089, %v2298
      %v2372 = vadd.f32 %v2090, %v2301
      %v2373 = vadd.f32 %v2091, %v2304
      %v2374 = vadd.f32 %v2092, %v2307
      %v2375 = vadd.f32 %v2093, %v2310
      %v2376 = vadd.f32 %v2094, %v2313
      %v2377 = vadd.f32 %v2095, %v2316
      %v2378 = vadd.f32 %v2096, %v2319
      %v2379 = vadd.f32 %v2097, %v2322
      %v2380 = vadd.f32 %v2098, %v2325
      %v2381 = vadd.f32 %v2099, %v2328
      %v2382 = vadd.f32 %v2100, %v2331
      %v2383 = vadd.f32 %v2101, %v2334
      %v2384 = vadd.f32 %v2102, %v2337
      %v2385 = vadd.f32 %v2103, %v2340
      %v2386 = vadd.f32 %v2104, %v2343
      %v2387 = vadd.f32 %v2105, %v2346
      %v2388 = vadd.f32 %v2106, %v2349
      %v2389 = vadd.f32 %v2107, %v2352
      %v2390 = vadd.f32 %v2108, %v2355
      %v2391 = vadd.f32 %v2109, %v2358
      %v2392 = vld [vmem:[%s1827 + $0x2] sm:$0xff]
      %v2393 = vld [vmem:[%s1827 + $0xa] sm:$0xff]
      %v2394 = vld [vmem:[%s1827 + $0x1a] sm:$0xff]
      %v2395 = vld [vmem:[%s1827 + $0x22] sm:$0xff]
      %v2396 = vld [vmem:[%s1827 + $0x32] sm:$0xff]
      %v2397 = vld [vmem:[%s1827 + $0x3a] sm:$0xff]
      %v2398 = vld [vmem:[%s1827 + $0x4a] sm:$0xff]
      %v2399 = vld [vmem:[%s1827 + $0x52] sm:$0xff]
      %v2400 = vld [vmem:[%s1827 + $0x62] sm:$0xff]
      %v2401 = vld [vmem:[%s1827 + $0x6a] sm:$0xff]
      %v2402 = vld [vmem:[%s1827 + $0x7a] sm:$0xff]
      %v2403 = vld [vmem:[%s1827 + $0x82] sm:$0xff]
      %v2404 = vld [vmem:[%s1827 + $0x92] sm:$0xff]
      %v2405 = vld [vmem:[%s1827 + $0x9a] sm:$0xff]
      %v2406 = vld [vmem:[%s1827 + $0xaa] sm:$0xff]
      %v2407 = vld [vmem:[%s1827 + $0xb2] sm:$0xff]
      %v2408 = vld [vmem:[%s1827 + $0xc2] sm:$0xff]
      %v2409 = vld [vmem:[%s1827 + $0xca] sm:$0xff]
      %v2410 = vld [vmem:[%s1827 + $0xda] sm:$0xff]
      %v2411 = vld [vmem:[%s1827 + $0xe2] sm:$0xff]
      %v2412 = vld [vmem:[%s1827 + $0xf2] sm:$0xff]
      %v2413 = vld [vmem:[%s1827 + $0xfa] sm:$0xff]
      %v2414 = vld [vmem:[%s1827 + $0x10a] sm:$0xff]
      %v2415 = vld [vmem:[%s1827 + $0x112] sm:$0xff]
      %v2416 = vld [vmem:[%s1827 + $0x122] sm:$0xff]
      %v2417 = vld [vmem:[%s1827 + $0x12a] sm:$0xff]
      %v2418 = vld [vmem:[%s1827 + $0x13a] sm:$0xff]
      %v2419 = vld [vmem:[%s1827 + $0x142] sm:$0xff]
      %v2420 = vld [vmem:[%s1827 + $0x152] sm:$0xff]
      %v2421 = vld [vmem:[%s1827 + $0x15a] sm:$0xff]
      %v2422 = vld [vmem:[%s1827 + $0x16a] sm:$0xff]
      %v2423 = vld [vmem:[%s1827 + $0x172] sm:$0xff]
      %s2424 = scalar_lea.vmem %s1, 512
      %v2425 = vld [vmem:[%s2424] sm:$0xff]
      %v2426 = vld [vmem:[%s2424 + $0x8] sm:$0xff]
      %v2427 = vld [vmem:[%s2424 + $0x10] sm:$0xff]
      %v2428 = vld [vmem:[%s2424 + $0x18] sm:$0xff]
      %v2429 = vld [vmem:[%s2424 + $0x20] sm:$0xff]
      %v2430 = vld [vmem:[%s2424 + $0x28] sm:$0xff]
      %v2431 = vld [vmem:[%s2424 + $0x30] sm:$0xff]
      %v2432 = vld [vmem:[%s2424 + $0x38] sm:$0xff]
      %v2434 = vsel %vm279, %v2392, 0
      %v2437 = vsel %vm279, %v2393, 0
      %v2440 = vsel %vm279, %v2394, 0
      %v2443 = vsel %vm279, %v2395, 0
      %v2446 = vsel %vm279, %v2396, 0
      %v2449 = vsel %vm279, %v2397, 0
      %v2452 = vsel %vm279, %v2398, 0
      %v2455 = vsel %vm279, %v2399, 0
      %v2458 = vsel %vm279, %v2400, 0
      %v2461 = vsel %vm279, %v2401, 0
      %v2464 = vsel %vm279, %v2402, 0
      %v2467 = vsel %vm279, %v2403, 0
      %v2470 = vsel %vm279, %v2404, 0
      %v2473 = vsel %vm279, %v2405, 0
      %v2476 = vsel %vm279, %v2406, 0
      %v2479 = vsel %vm279, %v2407, 0
      %v2482 = vsel %vm279, %v2408, 0
      %v2485 = vsel %vm279, %v2409, 0
      %v2488 = vsel %vm279, %v2410, 0
      %v2491 = vsel %vm279, %v2411, 0
      %v2494 = vsel %vm279, %v2412, 0
      %v2497 = vsel %vm279, %v2413, 0
      %v2500 = vsel %vm279, %v2414, 0
      %v2503 = vsel %vm279, %v2415, 0
      %v2506 = vsel %vm279, %v2416, 0
      %v2509 = vsel %vm279, %v2417, 0
      %v2512 = vsel %vm279, %v2418, 0
      %v2515 = vsel %vm279, %v2419, 0
      %v2518 = vsel %vm279, %v2420, 0
      %v2521 = vsel %vm279, %v2421, 0
      %v2524 = vsel %vm279, %v2422, 0
      %v2527 = vsel %vm279, %v2423, 0
      %2529 = vmatpush.msra.mxu0 0.0
      %2530 = vmatpush.msra.mxu0 0.0
      %2531 = vmatpush.msra.mxu0 0.0
      %2532 = vmatpush.msra.mxu0 0.0
      %2533 = vmatpush.msra.mxu0 0.0
      %2534 = vmatpush.msra.mxu0 0.0
      %2535 = vmatpush.msra.mxu0 0.0
      %2536 = vmatpush.msra.mxu0 0.0
      %2537 = vmatpush.msra.mxu0 %v2432
      %2538 = vmatpush.msra.mxu0 %v2431
      %2539 = vmatpush.msra.mxu0 %v2430
      %2540 = vmatpush.msra.mxu0 %v2429
      %2541 = vmatpush.msra.mxu0 %v2428
      %2542 = vmatpush.msra.mxu0 %v2427
      %2543 = vmatpush.msra.mxu0 %v2426
      %2544 = vmatpush.msra.mxu0 %v2425
      %2545 = vmatmul.f32.gmra.mxu0 %v2434
      %v2546 = vpop.f32.mrf.mxu0
      %v2547 = vadd.f32 0.0, %v2546
      %2548 = vmatmul.f32.gmra.mxu0 %v2437
      %v2549 = vpop.f32.mrf.mxu0
      %v2550 = vadd.f32 0.0, %v2549
      %2551 = vmatmul.f32.gmra.mxu0 %v2440
      %v2552 = vpop.f32.mrf.mxu0
      %v2553 = vadd.f32 0.0, %v2552
      %2554 = vmatmul.f32.gmra.mxu0 %v2443
      %v2555 = vpop.f32.mrf.mxu0
      %v2556 = vadd.f32 0.0, %v2555
      %2557 = vmatmul.f32.gmra.mxu0 %v2446
      %v2558 = vpop.f32.mrf.mxu0
      %v2559 = vadd.f32 0.0, %v2558
      %2560 = vmatmul.f32.gmra.mxu0 %v2449
      %v2561 = vpop.f32.mrf.mxu0
      %v2562 = vadd.f32 0.0, %v2561
      %2563 = vmatmul.f32.gmra.mxu0 %v2452
      %v2564 = vpop.f32.mrf.mxu0
      %v2565 = vadd.f32 0.0, %v2564
      %2566 = vmatmul.f32.gmra.mxu0 %v2455
      %v2567 = vpop.f32.mrf.mxu0
      %v2568 = vadd.f32 0.0, %v2567
      %2569 = vmatmul.f32.gmra.mxu0 %v2458
      %v2570 = vpop.f32.mrf.mxu0
      %v2571 = vadd.f32 0.0, %v2570
      %2572 = vmatmul.f32.gmra.mxu0 %v2461
      %v2573 = vpop.f32.mrf.mxu0
      %v2574 = vadd.f32 0.0, %v2573
      %2575 = vmatmul.f32.gmra.mxu0 %v2464
      %v2576 = vpop.f32.mrf.mxu0
      %v2577 = vadd.f32 0.0, %v2576
      %2578 = vmatmul.f32.gmra.mxu0 %v2467
      %v2579 = vpop.f32.mrf.mxu0
      %v2580 = vadd.f32 0.0, %v2579
      %2581 = vmatmul.f32.gmra.mxu0 %v2470
      %v2582 = vpop.f32.mrf.mxu0
      %v2583 = vadd.f32 0.0, %v2582
      %2584 = vmatmul.f32.gmra.mxu0 %v2473
      %v2585 = vpop.f32.mrf.mxu0
      %v2586 = vadd.f32 0.0, %v2585
      %2587 = vmatmul.f32.gmra.mxu0 %v2476
      %v2588 = vpop.f32.mrf.mxu0
      %v2589 = vadd.f32 0.0, %v2588
      %2590 = vmatmul.f32.gmra.mxu0 %v2479
      %v2591 = vpop.f32.mrf.mxu0
      %v2592 = vadd.f32 0.0, %v2591
      %2593 = vmatmul.f32.gmra.mxu0 %v2482
      %v2594 = vpop.f32.mrf.mxu0
      %v2595 = vadd.f32 0.0, %v2594
      %2596 = vmatmul.f32.gmra.mxu0 %v2485
      %v2597 = vpop.f32.mrf.mxu0
      %v2598 = vadd.f32 0.0, %v2597
      %2599 = vmatmul.f32.gmra.mxu0 %v2488
      %v2600 = vpop.f32.mrf.mxu0
      %v2601 = vadd.f32 0.0, %v2600
      %2602 = vmatmul.f32.gmra.mxu0 %v2491
      %v2603 = vpop.f32.mrf.mxu0
      %v2604 = vadd.f32 0.0, %v2603
      %2605 = vmatmul.f32.gmra.mxu0 %v2494
      %v2606 = vpop.f32.mrf.mxu0
      %v2607 = vadd.f32 0.0, %v2606
      %2608 = vmatmul.f32.gmra.mxu0 %v2497
      %v2609 = vpop.f32.mrf.mxu0
      %v2610 = vadd.f32 0.0, %v2609
      %2611 = vmatmul.f32.gmra.mxu0 %v2500
      %v2612 = vpop.f32.mrf.mxu0
      %v2613 = vadd.f32 0.0, %v2612
      %2614 = vmatmul.f32.gmra.mxu0 %v2503
      %v2615 = vpop.f32.mrf.mxu0
      %v2616 = vadd.f32 0.0, %v2615
      %2617 = vmatmul.f32.gmra.mxu0 %v2506
      %v2618 = vpop.f32.mrf.mxu0
      %v2619 = vadd.f32 0.0, %v2618
      %2620 = vmatmul.f32.gmra.mxu0 %v2509
      %v2621 = vpop.f32.mrf.mxu0
      %v2622 = vadd.f32 0.0, %v2621
      %2623 = vmatmul.f32.gmra.mxu0 %v2512
      %v2624 = vpop.f32.mrf.mxu0
      %v2625 = vadd.f32 0.0, %v2624
      %2626 = vmatmul.f32.gmra.mxu0 %v2515
      %v2627 = vpop.f32.mrf.mxu0
      %v2628 = vadd.f32 0.0, %v2627
      %2629 = vmatmul.f32.gmra.mxu0 %v2518
      %v2630 = vpop.f32.mrf.mxu0
      %v2631 = vadd.f32 0.0, %v2630
      %2632 = vmatmul.f32.gmra.mxu0 %v2521
      %v2633 = vpop.f32.mrf.mxu0
      %v2634 = vadd.f32 0.0, %v2633
      %2635 = vmatmul.f32.gmra.mxu0 %v2524
      %v2636 = vpop.f32.mrf.mxu0
      %v2637 = vadd.f32 0.0, %v2636
      %2638 = vmatmul.f32.gmra.mxu0 %v2527
      %v2639 = vpop.f32.mrf.mxu0
      %v2640 = vadd.f32 0.0, %v2639
      %2641 = vdwg.mxu0
      %v2642 = vadd.f32 %v2360, %v2547
      %v2643 = vadd.f32 %v2361, %v2550
      %v2644 = vadd.f32 %v2362, %v2553
      %v2645 = vadd.f32 %v2363, %v2556
      %v2646 = vadd.f32 %v2364, %v2559
      %v2647 = vadd.f32 %v2365, %v2562
      %v2648 = vadd.f32 %v2366, %v2565
      %v2649 = vadd.f32 %v2367, %v2568
      %v2650 = vadd.f32 %v2368, %v2571
      %v2651 = vadd.f32 %v2369, %v2574
      %v2652 = vadd.f32 %v2370, %v2577
      %v2653 = vadd.f32 %v2371, %v2580
      %v2654 = vadd.f32 %v2372, %v2583
      %v2655 = vadd.f32 %v2373, %v2586
      %v2656 = vadd.f32 %v2374, %v2589
      %v2657 = vadd.f32 %v2375, %v2592
      %v2658 = vadd.f32 %v2376, %v2595
      %v2659 = vadd.f32 %v2377, %v2598
      %v2660 = vadd.f32 %v2378, %v2601
      %v2661 = vadd.f32 %v2379, %v2604
      %v2662 = vadd.f32 %v2380, %v2607
      %v2663 = vadd.f32 %v2381, %v2610
      %v2664 = vadd.f32 %v2382, %v2613
      %v2665 = vadd.f32 %v2383, %v2616
      %v2666 = vadd.f32 %v2384, %v2619
      %v2667 = vadd.f32 %v2385, %v2622
      %v2668 = vadd.f32 %v2386, %v2625
      %v2669 = vadd.f32 %v2387, %v2628
      %v2670 = vadd.f32 %v2388, %v2631
      %v2671 = vadd.f32 %v2389, %v2634
      %v2672 = vadd.f32 %v2390, %v2637
      %v2673 = vadd.f32 %v2391, %v2640
      %v2674 = vld [vmem:[%s2] sm:$0x1]
      %v2676 = vperm.slane %v2674, 0
      %v2678 = vmul.f32 %v2642, %v2676
      %v2679 = vmul.f32 %v2643, %v2676
      %v2680 = vmul.f32 %v2644, %v2676
      %v2681 = vmul.f32 %v2645, %v2676
      %v2682 = vmul.f32 %v2646, %v2676
      %v2683 = vmul.f32 %v2647, %v2676
      %v2684 = vmul.f32 %v2648, %v2676
      %v2685 = vmul.f32 %v2649, %v2676
      %v2686 = vmul.f32 %v2650, %v2676
      %v2687 = vmul.f32 %v2651, %v2676
      %v2688 = vmul.f32 %v2652, %v2676
      %v2689 = vmul.f32 %v2653, %v2676
      %v2690 = vmul.f32 %v2654, %v2676
      %v2691 = vmul.f32 %v2655, %v2676
      %v2692 = vmul.f32 %v2656, %v2676
      %v2693 = vmul.f32 %v2657, %v2676
      %v2694 = vmul.f32 %v2658, %v2676
      %v2695 = vmul.f32 %v2659, %v2676
      %v2696 = vmul.f32 %v2660, %v2676
      %v2697 = vmul.f32 %v2661, %v2676
      %v2698 = vmul.f32 %v2662, %v2676
      %v2699 = vmul.f32 %v2663, %v2676
      %v2700 = vmul.f32 %v2664, %v2676
      %v2701 = vmul.f32 %v2665, %v2676
      %v2702 = vmul.f32 %v2666, %v2676
      %v2703 = vmul.f32 %v2667, %v2676
      %v2704 = vmul.f32 %v2668, %v2676
      %v2705 = vmul.f32 %v2669, %v2676
      %v2706 = vmul.f32 %v2670, %v2676
      %v2707 = vmul.f32 %v2671, %v2676
      %v2708 = vmul.f32 %v2672, %v2676
      %v2709 = vmul.f32 %v2673, %v2676
      %v2710 = vld [vmem:[%s3] sm:$0x1]
      %v2712 = vperm.slane %v2710, 0
      %v2714 = vadd.f32 %v2678, %v2712
      %v2715 = vadd.f32 %v2679, %v2712
      %v2716 = vadd.f32 %v2680, %v2712
      %v2717 = vadd.f32 %v2681, %v2712
      %v2718 = vadd.f32 %v2682, %v2712
      %v2719 = vadd.f32 %v2683, %v2712
      %v2720 = vadd.f32 %v2684, %v2712
      %v2721 = vadd.f32 %v2685, %v2712
      %v2722 = vadd.f32 %v2686, %v2712
      %v2723 = vadd.f32 %v2687, %v2712
      %v2724 = vadd.f32 %v2688, %v2712
      %v2725 = vadd.f32 %v2689, %v2712
      %v2726 = vadd.f32 %v2690, %v2712
      %v2727 = vadd.f32 %v2691, %v2712
      %v2728 = vadd.f32 %v2692, %v2712
      %v2729 = vadd.f32 %v2693, %v2712
      %v2730 = vadd.f32 %v2694, %v2712
      %v2731 = vadd.f32 %v2695, %v2712
      %v2732 = vadd.f32 %v2696, %v2712
      %v2733 = vadd.f32 %v2697, %v2712
      %v2734 = vadd.f32 %v2698, %v2712
      %v2735 = vadd.f32 %v2699, %v2712
      %v2736 = vadd.f32 %v2700, %v2712
      %v2737 = vadd.f32 %v2701, %v2712
      %v2738 = vadd.f32 %v2702, %v2712
      %v2739 = vadd.f32 %v2703, %v2712
      %v2740 = vadd.f32 %v2704, %v2712
      %v2741 = vadd.f32 %v2705, %v2712
      %v2742 = vadd.f32 %v2706, %v2712
      %v2743 = vadd.f32 %v2707, %v2712
      %v2744 = vadd.f32 %v2708, %v2712
      %v2745 = vadd.f32 %v2709, %v2712
      %v2746 = vmax.f32 %v2714, 0.0
      %v2747 = vmax.f32 %v2715, 0.0
      %v2748 = vmax.f32 %v2716, 0.0
      %v2749 = vmax.f32 %v2717, 0.0
      %v2750 = vmax.f32 %v2718, 0.0
      %v2751 = vmax.f32 %v2719, 0.0
      %v2752 = vmax.f32 %v2720, 0.0
      %v2753 = vmax.f32 %v2721, 0.0
      %v2754 = vmax.f32 %v2722, 0.0
      %v2755 = vmax.f32 %v2723, 0.0
      %v2756 = vmax.f32 %v2724, 0.0
      %v2757 = vmax.f32 %v2725, 0.0
      %v2758 = vmax.f32 %v2726, 0.0
      %v2759 = vmax.f32 %v2727, 0.0
      %v2760 = vmax.f32 %v2728, 0.0
      %v2761 = vmax.f32 %v2729, 0.0
      %v2762 = vmax.f32 %v2730, 0.0
      %v2763 = vmax.f32 %v2731, 0.0
      %v2764 = vmax.f32 %v2732, 0.0
      %v2765 = vmax.f32 %v2733, 0.0
      %v2766 = vmax.f32 %v2734, 0.0
      %v2767 = vmax.f32 %v2735, 0.0
      %v2768 = vmax.f32 %v2736, 0.0
      %v2769 = vmax.f32 %v2737, 0.0
      %v2770 = vmax.f32 %v2738, 0.0
      %v2771 = vmax.f32 %v2739, 0.0
      %v2772 = vmax.f32 %v2740, 0.0
      %v2773 = vmax.f32 %v2741, 0.0
      %v2774 = vmax.f32 %v2742, 0.0
      %v2775 = vmax.f32 %v2743, 0.0
      %v2776 = vmax.f32 %v2744, 0.0
      %v2777 = vmax.f32 %v2745, 0.0
      %2778 = vst.msk [vmem:[%s197] sm:$0xff] %vm279, %v2746
      %2779 = vst.msk [vmem:[%s197 + $0x8] sm:$0xff] %vm279, %v2747
      %2780 = vst.msk [vmem:[%s197 + $0x10] sm:$0xff] %vm279, %v2748
      %2781 = vst.msk [vmem:[%s197 + $0x18] sm:$0xff] %vm279, %v2749
      %2782 = vst.msk [vmem:[%s197 + $0x20] sm:$0xff] %vm279, %v2750
      %2783 = vst.msk [vmem:[%s197 + $0x28] sm:$0xff] %vm279, %v2751
      %2784 = vst.msk [vmem:[%s197 + $0x30] sm:$0xff] %vm279, %v2752
      %2785 = vst.msk [vmem:[%s197 + $0x38] sm:$0xff] %vm279, %v2753
      %2786 = vst.msk [vmem:[%s197 + $0x40] sm:$0xff] %vm279, %v2754
      %2787 = vst.msk [vmem:[%s197 + $0x48] sm:$0xff] %vm279, %v2755
      %2788 = vst.msk [vmem:[%s197 + $0x50] sm:$0xff] %vm279, %v2756
      %2789 = vst.msk [vmem:[%s197 + $0x58] sm:$0xff] %vm279, %v2757
      %2790 = vst.msk [vmem:[%s197 + $0x60] sm:$0xff] %vm279, %v2758
      %2791 = vst.msk [vmem:[%s197 + $0x68] sm:$0xff] %vm279, %v2759
      %2792 = vst.msk [vmem:[%s197 + $0x70] sm:$0xff] %vm279, %v2760
      %2793 = vst.msk [vmem:[%s197 + $0x78] sm:$0xff] %vm279, %v2761
      %2794 = vst.msk [vmem:[%s197 + $0x80] sm:$0xff] %vm279, %v2762
      %2795 = vst.msk [vmem:[%s197 + $0x88] sm:$0xff] %vm279, %v2763
      %2796 = vst.msk [vmem:[%s197 + $0x90] sm:$0xff] %vm279, %v2764
      %2797 = vst.msk [vmem:[%s197 + $0x98] sm:$0xff] %vm279, %v2765
      %2798 = vst.msk [vmem:[%s197 + $0xa0] sm:$0xff] %vm279, %v2766
      %2799 = vst.msk [vmem:[%s197 + $0xa8] sm:$0xff] %vm279, %v2767
      %2800 = vst.msk [vmem:[%s197 + $0xb0] sm:$0xff] %vm279, %v2768
      %2801 = vst.msk [vmem:[%s197 + $0xb8] sm:$0xff] %vm279, %v2769
      %2802 = vst.msk [vmem:[%s197 + $0xc0] sm:$0xff] %vm279, %v2770
      %2803 = vst.msk [vmem:[%s197 + $0xc8] sm:$0xff] %vm279, %v2771
      %2804 = vst.msk [vmem:[%s197 + $0xd0] sm:$0xff] %vm279, %v2772
      %2805 = vst.msk [vmem:[%s197 + $0xd8] sm:$0xff] %vm279, %v2773
      %2806 = vst.msk [vmem:[%s197 + $0xe0] sm:$0xff] %vm279, %v2774
      %2807 = vst.msk [vmem:[%s197 + $0xe8] sm:$0xff] %vm279, %v2775
      %2808 = vst.msk [vmem:[%s197 + $0xf0] sm:$0xff] %vm279, %v2776
      %2809 = vst.msk [vmem:[%s197 + $0xf8] sm:$0xff] %vm279, %v2777
      %p2810 = scmp.lt.s32.totalorder %s15, 1
      %s2811 = scalar_select %p2810, %s15, 1
      %s2812 = smul.addr %s2811, 32
      %s2813 = smul.addr %s2812, 8
      %s2814 = scalar_lea.vmem %s4, %s2813
      // Predicated region
      $region37: #{bottleneck_forward.4} parent=35 // pred_check
        %p2815 = pneg %p122
      $region38: #{bottleneck_forward.4} parent=35 // pred_check_branch
        %2817 = sbr.rel (%p2815) target = $region40
      $region39: #{bottleneck_forward.4} parent=35 // pred_region
        _
      $region40: #{bottleneck_forward.4} parent=35 // pred_fallthru
        _
    $region36: #{bottleneck_forward.4} parent=5 // pred_fallthru
      _
    %p2818 = scmp.le.s32.totalorder 2, %s10
    // Predicated region
    $region41: #{bottleneck_forward.4} parent=5 // pred_check
      %p2819 = pneg %p2818
    $region42: #{bottleneck_forward.4} parent=5 // pred_check_branch
      %2821 = sbr.rel (%p2819) target = $region44
    $region43: #{bottleneck_forward.4} parent=5 // pred_region
      %s2822 = ssub.s32 %s10, 2
      // Predicated region
      $region45: #{bottleneck_forward.4} parent=43 // pred_check
        %p2823 = pneg %p128
      $region46: #{bottleneck_forward.4} parent=43 // pred_check_branch
        %2825 = sbr.rel (%p2823) target = $region48
      $region47: #{bottleneck_forward.4} parent=43 // pred_region
        %p2826 = scmp.lt.s32.totalorder %s16, 1
        %s2827 = scalar_select %p2826, %s16, 1
        %s2828 = smul.addr %s2827, 32
        %s2829 = smul.addr %s2828, 8
        %s2830 = scalar_lea.vmem %s4, %s2829
      $region48: #{bottleneck_forward.4} parent=43 // pred_fallthru
        _
    $region44: #{bottleneck_forward.4} parent=5 // pred_fallthru
      _
  $region6: #{bottleneck_forward.4} parent=0 // loop_footer
    %s14 = sadd.s32 1, %s10
  $region7: #{bottleneck_forward.4} parent=0 // loop_footer_branch
    %9 = sbr.rel target = $region3
  $region8: #{bottleneck_forward.4} parent=0 // loop_exit
    _

</llo_original>
